<compile_context>
chip_gen: v7x
topology: tpu7x:2x2x1
jax: 0.10.0
libtpu: 0.0.40
codegen_flags: <defaults>
</compile_context>

<pallas_src>
import functools

import jax
import jax.numpy as jnp
from jax.experimental import pallas as pl
from jax.experimental.pallas import tpu as pltpu

BN_EPS = 1e-5
LANE = 128
ROW_PAD = 8  # >= KW-1, multiple of 8: halo rows so shifted slab loads stay in bounds
VMEM_LIMIT = 32 * 1024 * 1024  # safe on v5e/v6e (128 MiB) and v7x (64 MiB physical)


def _conv_stats_kernel(x_ref, w_ref, y_ref, csum_ref, csq_ref, acc_ref, *, W, Wo):
    # Grid: (co, n, ci); ci (input-channel tile) is the reduction axis.
    #   x_ref:    (1, H*W + ROW_PAD, TCI)   flattened image, one Cin tile
    #   w_ref:    (KH, KW, TCI, TCO)        conv taps
    #   y_ref:    (1, Ho*W, TCO)            conv output rows (lane-dense)
    #   csum_ref: (1, TCO)   per-channel sum      (resident across n, ci)
    #   csq_ref:  (1, TCO)   per-channel sum-sq   (resident across n, ci)
    #   acc_ref:  (Ho*W, TCO) f32 VMEM scratch accumulator
    KH, KW, _, _ = w_ref.shape
    HoW = y_ref.shape[1]

    ci = pl.program_id(2)
    n = pl.program_id(1)
    num_ci = pl.num_programs(2)

    @pl.when(ci == 0)
    def _init_acc():
        acc_ref[...] = jnp.zeros_like(acc_ref)

    @pl.when(jnp.logical_and(n == 0, ci == 0))
    def _init_stats():
        csum_ref[...] = jnp.zeros_like(csum_ref)
        csq_ref[...] = jnp.zeros_like(csq_ref)

    # Conv as KH*KW shifted-slab matmuls: output row p = ho*W + wo takes
    # contribution x_flat[(ho+kh)*W + (wo+kw)] @ w[kh, kw].  Slabs are plain
    # (aligned-ish) sublane-offset loads from the ref -- no reshape/relayout.
    for kh in range(KH):
        for kw in range(KW):
            slab = x_ref[0, pl.ds(kh * W + kw, HoW), :]          # (HoW, TCI)
            acc_ref[...] += jnp.dot(slab, w_ref[kh, kw],
                                    preferred_element_type=jnp.float32)

    @pl.when(ci == num_ci - 1)
    def _finalize():
        acc = acc_ref[...]
        # Columns wo >= Wo of each row-group are conv garbage (window ran past
        # the right edge): exclude them from the BatchNorm statistics.
        row = jax.lax.broadcasted_iota(jnp.int32, (HoW, 1), 0)
        valid = (row % W) < Wo
        a = jnp.where(valid, acc, 0.0)
        csum_ref[...] += jnp.sum(a, axis=0, keepdims=True)
        csq_ref[...] += jnp.sum(a * a, axis=0, keepdims=True)
        y_ref[0] = acc.astype(y_ref.dtype)


def _bn_relu_kernel(y_ref, scale_ref, shift_ref, o_ref):
    # y_ref/o_ref: (1, TM, TCO); scale/shift: (1, TCO)
    y = y_ref[...].astype(jnp.float32)
    o_ref[...] = jnp.maximum(y * scale_ref[...] + shift_ref[...], 0.0
                             ).astype(o_ref.dtype)


def up_block_2d(x_nchw, w_oihw, gamma, beta, *, eps=BN_EPS):
    """x_nchw: (N, Cin, H, W); w_oihw: (Cout, Cin, KH, KW); gamma/beta: (Cout,)."""
    N, Cin, H, W = x_nchw.shape
    Cout, _, KH, KW = w_oihw.shape
    Ho, Wo = H - KH + 1, W - KW + 1
    HoW = Ho * W  # flattened output rows per image (W columns, only Wo valid)

    cin_p = Cin + (-Cin) % LANE
    cout_p = Cout + (-Cout) % LANE
    tci, tco = min(LANE, cin_p), min(LANE, cout_p)
    num_ci, num_co = cin_p // tci, cout_p // tco

    # ---- layout glue (outside the hot path) ----
    x_nhwc = jnp.transpose(x_nchw, (0, 2, 3, 1))                   # NCHW -> NHWC
    x_nhwc = jnp.pad(x_nhwc, ((0, 0), (0, 0), (0, 0), (0, cin_p - Cin)))
    x_flat = jnp.pad(x_nhwc.reshape(N, H * W, cin_p),
                     ((0, 0), (0, ROW_PAD), (0, 0)))               # halo rows
    w_hwio = jnp.transpose(w_oihw, (2, 3, 1, 0))                   # OIHW -> HWIO
    w_hwio = jnp.pad(w_hwio, ((0, 0), (0, 0),
                              (0, cin_p - Cin), (0, cout_p - Cout)))

    # ---- pass 1: conv + per-channel sum / sumsq ----
    conv_kernel = functools.partial(_conv_stats_kernel, W=W, Wo=Wo)
    y_flat, csum, csq = pl.pallas_call(
        conv_kernel,
        grid=(num_co, N, num_ci),
        in_specs=[
            pl.BlockSpec((1, H * W + ROW_PAD, tci), lambda co, n, ci: (n, 0, ci)),
            pl.BlockSpec((KH, KW, tci, tco), lambda co, n, ci: (0, 0, ci, co)),
        ],
        out_specs=(
            pl.BlockSpec((1, HoW, tco), lambda co, n, ci: (n, 0, co)),
            pl.BlockSpec((1, tco), lambda co, n, ci: (0, co)),
            pl.BlockSpec((1, tco), lambda co, n, ci: (0, co)),
        ),
        out_shape=(
            jax.ShapeDtypeStruct((N, HoW, cout_p), jnp.float32),
            jax.ShapeDtypeStruct((1, cout_p), jnp.float32),
            jax.ShapeDtypeStruct((1, cout_p), jnp.float32),
        ),
        scratch_shapes=[pltpu.VMEM((HoW, tco), jnp.float32)],
        compiler_params=pltpu.CompilerParams(
            dimension_semantics=("parallel", "arbitrary", "arbitrary"),
            vmem_limit_bytes=VMEM_LIMIT),
    )(x_flat, w_hwio)

    # ---- train-mode BatchNorm statistics (tiny O(Cout) wrapper-side math) ----
    m = jnp.float32(N * Ho * Wo)
    mean = csum[0] / m
    var = jnp.maximum(csq[0] / m - mean * mean, 0.0)          # biased variance
    gamma_p = jnp.pad(gamma.astype(jnp.float32), (0, cout_p - Cout))
    beta_p = jnp.pad(beta.astype(jnp.float32), (0, cout_p - Cout))
    scale = gamma_p * jax.lax.rsqrt(var + eps)
    shift = beta_p - mean * scale
    scale = scale.reshape(1, cout_p)
    shift = shift.reshape(1, cout_p)

    # ---- pass 2: normalize + affine + ReLU ----
    out_flat = pl.pallas_call(
        _bn_relu_kernel,
        grid=(N, num_co),
        in_specs=[
            pl.BlockSpec((1, HoW, tco), lambda n, co: (n, 0, co)),
            pl.BlockSpec((1, tco), lambda n, co: (0, co)),
            pl.BlockSpec((1, tco), lambda n, co: (0, co)),
        ],
        out_specs=pl.BlockSpec((1, HoW, tco), lambda n, co: (n, 0, co)),
        out_shape=jax.ShapeDtypeStruct((N, HoW, cout_p), x_nchw.dtype),
        compiler_params=pltpu.CompilerParams(
            dimension_semantics=("parallel", "parallel"),
            vmem_limit_bytes=VMEM_LIMIT),
    )(y_flat, scale, shift)

    # strip the padded columns / channels, back to NCHW
    out = out_flat.reshape(N, Ho, W, cout_p)[:, :, :Wo, :Cout]
    return jnp.transpose(out, (0, 3, 1, 2))


def _reference(x_nchw, w_oihw, gamma, beta, eps=BN_EPS):
    """Pure-JAX reference reproducing the PyTorch forward (train-mode BN)."""
    y = jax.lax.conv_general_dilated(
        x_nchw, w_oihw, window_strides=(1, 1), padding="VALID",
        dimension_numbers=("NCHW", "OIHW", "NCHW"))
    mean = y.mean(axis=(0, 2, 3), keepdims=True)
    var = ((y - mean) ** 2).mean(axis=(0, 2, 3), keepdims=True)
    yn = (y - mean) * jax.lax.rsqrt(var + eps)
    yn = yn * gamma[None, :, None, None] + beta[None, :, None, None]
    return jnp.maximum(yn, 0.0)


if __name__ == "__main__":
    key = jax.random.PRNGKey(0)
    k1, k2, k3, k4 = jax.random.split(key, 4)

    N, Cin, H, W = 2, 4, 16, 16
    Cout, K = 8, 3

    x = jax.random.normal(k1, (N, Cin, H, W), jnp.float32)
    # Conv2d weight (bias=False): (Cout, Cin, K, K)
    w = 0.1 * jax.random.normal(k2, (Cout, Cin, K, K), jnp.float32)
    # BatchNorm2d affine params (Cout,) — deterministic, non-trivial values.
    gamma = 1.0 + 0.1 * jax.random.normal(k3, (Cout,), jnp.float32)
    beta = 0.1 * jax.random.normal(k4, (Cout,), jnp.float32)

    fwd = jax.jit(up_block_2d)
    out = fwd(x, w, gamma, beta)
    jax.block_until_ready(out)

    ref = _reference(x, w, gamma, beta)
    assert out.shape == (N, Cout, H - K + 1, W - K + 1), out.shape
    assert jnp.allclose(out, ref, atol=1e-4, rtol=1e-4), \
        float(jnp.max(jnp.abs(out - ref)))

    print("KERNEL_OK")
</pallas_src>

<mosaic_0001>
module attributes {stable_mosaic.version = 11 : i64} {
  func.func @_conv_stats_kernel(%arg0: i32, %arg1: i32, %arg2: i32, %arg3: memref<1x264x128xf32, #tpu.memory_space<vmem>>, %arg4: memref<3x3x128x128xf32, #tpu.memory_space<vmem>>, %arg5: memref<1x224x128xf32, #tpu.memory_space<vmem>>, %arg6: memref<1x128xf32, #tpu.memory_space<vmem>>, %arg7: memref<1x128xf32, #tpu.memory_space<vmem>>, %arg8: memref<224x128xf32, #tpu.memory_space<vmem>>) attributes {dimension_semantics = [#tpu.dimension_semantics<parallel>, #tpu.dimension_semantics<arbitrary>, #tpu.dimension_semantics<arbitrary>], iteration_bounds = array<i64: 1, 2, 1>, scalar_prefetch = 0 : i64, scratch_operands = 1 : i64, tpu.core_type = #tpu.core_type<tc>, window_params = [{transform_indices = @transform_0, window_bounds = array<i64: 1, 264, 128>}, {transform_indices = @transform_1, window_bounds = array<i64: 3, 3, 128, 128>}, {transform_indices = @transform_2, window_bounds = array<i64: 1, 224, 128>}, {transform_indices = @transform_3, window_bounds = array<i64: 1, 128>}, {transform_indices = @transform_4, window_bounds = array<i64: 1, 128>}]} {
    %c0_i32 = arith.constant 0 : i32
    %0 = arith.cmpi eq, %arg2, %c0_i32 : i32
    %1 = arith.extui %0 : i1 to i32
    %c0_i32_0 = arith.constant 0 : i32
    %2 = arith.cmpi ne, %1, %c0_i32_0 : i32
    scf.if %2 {
      %cst_104 = arith.constant 0.000000e+00 : f32
      %83 = vector.broadcast %cst_104 : f32 to vector<224x128xf32>
      %c0_105 = arith.constant 0 : index
      %c0_106 = arith.constant 0 : index
      %84 = vector.load %arg8[%c0_105, %c0_106] : memref<224x128xf32, #tpu.memory_space<vmem>>, vector<224x128xf32>
      tpu.vector_store %arg8[%c0_105, %c0_106], %83 {strides = array<i32>} : memref<224x128xf32, #tpu.memory_space<vmem>>, vector<224x128xf32>,
    } else {
    }
    %c0_i32_1 = arith.constant 0 : i32
    %3 = arith.cmpi eq, %arg1, %c0_i32_1 : i32
    %c0_i32_2 = arith.constant 0 : i32
    %4 = arith.cmpi eq, %arg2, %c0_i32_2 : i32
    %5 = arith.andi %3, %4 : i1
    %6 = arith.extui %5 : i1 to i32
    %c0_i32_3 = arith.constant 0 : i32
    %7 = arith.cmpi ne, %6, %c0_i32_3 : i32
    scf.if %7 {
      %cst_104 = arith.constant 0.000000e+00 : f32
      %83 = vector.broadcast %cst_104 : f32 to vector<1x128xf32>
      %c0_105 = arith.constant 0 : index
      %c0_106 = arith.constant 0 : index
      %84 = vector.load %arg6[%c0_105, %c0_106] : memref<1x128xf32, #tpu.memory_space<vmem>>, vector<1x128xf32>
      tpu.vector_store %arg6[%c0_105, %c0_106], %83 {strides = array<i32>} : memref<1x128xf32, #tpu.memory_space<vmem>>, vector<1x128xf32>,
      %cst_107 = arith.constant 0.000000e+00 : f32
      %85 = vector.broadcast %cst_107 : f32 to vector<1x128xf32>
      %c0_108 = arith.constant 0 : index
      %c0_109 = arith.constant 0 : index
      %86 = vector.load %arg7[%c0_108, %c0_109] : memref<1x128xf32, #tpu.memory_space<vmem>>, vector<1x128xf32>
      tpu.vector_store %arg7[%c0_108, %c0_109], %85 {strides = array<i32>} : memref<1x128xf32, #tpu.memory_space<vmem>>, vector<1x128xf32>,
    } else {
    }
    %c0 = arith.constant 0 : index
    %c0_4 = arith.constant 0 : index
    %c0_5 = arith.constant 0 : index
    %8 = vector.load %arg3[%c0, %c0_4, %c0_5] : memref<1x264x128xf32, #tpu.memory_space<vmem>>, vector<1x224x128xf32>
    %9 = vector.shape_cast %8 : vector<1x224x128xf32> to vector<224x128xf32>
    %c0_6 = arith.constant 0 : index
    %c0_7 = arith.constant 0 : index
    %10 = vector.load %arg8[%c0_6, %c0_7] : memref<224x128xf32, #tpu.memory_space<vmem>>, vector<224x128xf32>
    %c0_8 = arith.constant 0 : index
    %c0_9 = arith.constant 0 : index
    %c0_10 = arith.constant 0 : index
    %c0_11 = arith.constant 0 : index
    %11 = vector.load %arg4[%c0_8, %c0_9, %c0_10, %c0_11] : memref<3x3x128x128xf32, #tpu.memory_space<vmem>>, vector<1x1x128x128xf32>
    %12 = vector.shape_cast %11 : vector<1x1x128x128xf32> to vector<128x128xf32>
    %cst = arith.constant dense<0.000000e+00> : vector<224x128xf32>
    %13 = tpu.matmul %9, %12, %cst {dimension_numbers = #tpu.dot_dimension_numbers<[1], [0], [0], [1], [0, 0, 1, 1], [], []>} : vector<224x128xf32>, vector<128x128xf32>, vector<224x128xf32> -> vector<224x128xf32>
    %14 = arith.addf %10, %13 : vector<224x128xf32>
    %c0_12 = arith.constant 0 : index
    %c0_13 = arith.constant 0 : index
    %15 = vector.load %arg8[%c0_12, %c0_13] : memref<224x128xf32, #tpu.memory_space<vmem>>, vector<224x128xf32>
    tpu.vector_store %arg8[%c0_12, %c0_13], %14 {strides = array<i32>} : memref<224x128xf32, #tpu.memory_space<vmem>>, vector<224x128xf32>,
    %c0_14 = arith.constant 0 : index
    %c1 = arith.constant 1 : index
    %c0_15 = arith.constant 0 : index
    %16 = vector.load %arg3[%c0_14, %c1, %c0_15] : memref<1x264x128xf32, #tpu.memory_space<vmem>>, vector<1x224x128xf32>
    %17 = vector.shape_cast %16 : vector<1x224x128xf32> to vector<224x128xf32>
    %c0_16 = arith.constant 0 : index
    %c0_17 = arith.constant 0 : index
    %18 = vector.load %arg8[%c0_16, %c0_17] : memref<224x128xf32, #tpu.memory_space<vmem>>, vector<224x128xf32>
    %c0_18 = arith.constant 0 : index
    %c1_19 = arith.constant 1 : index
    %c0_20 = arith.constant 0 : index
    %c0_21 = arith.constant 0 : index
    %19 = vector.load %arg4[%c0_18, %c1_19, %c0_20, %c0_21] : memref<3x3x128x128xf32, #tpu.memory_space<vmem>>, vector<1x1x128x128xf32>
    %20 = vector.shape_cast %19 : vector<1x1x128x128xf32> to vector<128x128xf32>
    %cst_22 = arith.constant dense<0.000000e+00> : vector<224x128xf32>
    %21 = tpu.matmul %17, %20, %cst_22 {dimension_numbers = #tpu.dot_dimension_numbers<[1], [0], [0], [1], [0, 0, 1, 1], [], []>} : vector<224x128xf32>, vector<128x128xf32>, vector<224x128xf32> -> vector<224x128xf32>
    %22 = arith.addf %18, %21 : vector<224x128xf32>
    %c0_23 = arith.constant 0 : index
    %c0_24 = arith.constant 0 : index
    %23 = vector.load %arg8[%c0_23, %c0_24] : memref<224x128xf32, #tpu.memory_space<vmem>>, vector<224x128xf32>
    tpu.vector_store %arg8[%c0_23, %c0_24], %22 {strides = array<i32>} : memref<224x128xf32, #tpu.memory_space<vmem>>, vector<224x128xf32>,
    %c0_25 = arith.constant 0 : index
    %c2 = arith.constant 2 : index
    %c0_26 = arith.constant 0 : index
    %24 = vector.load %arg3[%c0_25, %c2, %c0_26] : memref<1x264x128xf32, #tpu.memory_space<vmem>>, vector<1x224x128xf32>
    %25 = vector.shape_cast %24 : vector<1x224x128xf32> to vector<224x128xf32>
    %c0_27 = arith.constant 0 : index
    %c0_28 = arith.constant 0 : index
    %26 = vector.load %arg8[%c0_27, %c0_28] : memref<224x128xf32, #tpu.memory_space<vmem>>, vector<224x128xf32>
    %c0_29 = arith.constant 0 : index
    %c2_30 = arith.constant 2 : index
    %c0_31 = arith.constant 0 : index
    %c0_32 = arith.constant 0 : index
    %27 = vector.load %arg4[%c0_29, %c2_30, %c0_31, %c0_32] : memref<3x3x128x128xf32, #tpu.memory_space<vmem>>, vector<1x1x128x128xf32>
    %28 = vector.shape_cast %27 : vector<1x1x128x128xf32> to vector<128x128xf32>
    %cst_33 = arith.constant dense<0.000000e+00> : vector<224x128xf32>
    %29 = tpu.matmul %25, %28, %cst_33 {dimension_numbers = #tpu.dot_dimension_numbers<[1], [0], [0], [1], [0, 0, 1, 1], [], []>} : vector<224x128xf32>, vector<128x128xf32>, vector<224x128xf32> -> vector<224x128xf32>
    %30 = arith.addf %26, %29 : vector<224x128xf32>
    %c0_34 = arith.constant 0 : index
    %c0_35 = arith.constant 0 : index
    %31 = vector.load %arg8[%c0_34, %c0_35] : memref<224x128xf32, #tpu.memory_space<vmem>>, vector<224x128xf32>
    tpu.vector_store %arg8[%c0_34, %c0_35], %30 {strides = array<i32>} : memref<224x128xf32, #tpu.memory_space<vmem>>, vector<224x128xf32>,
    %c0_36 = arith.constant 0 : index
    %c16 = arith.constant 16 : index
    %c0_37 = arith.constant 0 : index
    %32 = vector.load %arg3[%c0_36, %c16, %c0_37] : memref<1x264x128xf32, #tpu.memory_space<vmem>>, vector<1x224x128xf32>
    %33 = vector.shape_cast %32 : vector<1x224x128xf32> to vector<224x128xf32>
    %c0_38 = arith.constant 0 : index
    %c0_39 = arith.constant 0 : index
    %34 = vector.load %arg8[%c0_38, %c0_39] : memref<224x128xf32, #tpu.memory_space<vmem>>, vector<224x128xf32>
    %c1_40 = arith.constant 1 : index
    %c0_41 = arith.constant 0 : index
    %c0_42 = arith.constant 0 : index
    %c0_43 = arith.constant 0 : index
    %35 = vector.load %arg4[%c1_40, %c0_41, %c0_42, %c0_43] : memref<3x3x128x128xf32, #tpu.memory_space<vmem>>, vector<1x1x128x128xf32>
    %36 = vector.shape_cast %35 : vector<1x1x128x128xf32> to vector<128x128xf32>
    %cst_44 = arith.constant dense<0.000000e+00> : vector<224x128xf32>
    %37 = tpu.matmul %33, %36, %cst_44 {dimension_numbers = #tpu.dot_dimension_numbers<[1], [0], [0], [1], [0, 0, 1, 1], [], []>} : vector<224x128xf32>, vector<128x128xf32>, vector<224x128xf32> -> vector<224x128xf32>
    %38 = arith.addf %34, %37 : vector<224x128xf32>
    %c0_45 = arith.constant 0 : index
    %c0_46 = arith.constant 0 : index
    %39 = vector.load %arg8[%c0_45, %c0_46] : memref<224x128xf32, #tpu.memory_space<vmem>>, vector<224x128xf32>
    tpu.vector_store %arg8[%c0_45, %c0_46], %38 {strides = array<i32>} : memref<224x128xf32, #tpu.memory_space<vmem>>, vector<224x128xf32>,
    %c0_47 = arith.constant 0 : index
    %c17 = arith.constant 17 : index
    %c0_48 = arith.constant 0 : index
    %40 = vector.load %arg3[%c0_47, %c17, %c0_48] : memref<1x264x128xf32, #tpu.memory_space<vmem>>, vector<1x224x128xf32>
    %41 = vector.shape_cast %40 : vector<1x224x128xf32> to vector<224x128xf32>
    %c0_49 = arith.constant 0 : index
    %c0_50 = arith.constant 0 : index
    %42 = vector.load %arg8[%c0_49, %c0_50] : memref<224x128xf32, #tpu.memory_space<vmem>>, vector<224x128xf32>
    %c1_51 = arith.constant 1 : index
    %c1_52 = arith.constant 1 : index
    %c0_53 = arith.constant 0 : index
    %c0_54 = arith.constant 0 : index
    %43 = vector.load %arg4[%c1_51, %c1_52, %c0_53, %c0_54] : memref<3x3x128x128xf32, #tpu.memory_space<vmem>>, vector<1x1x128x128xf32>
    %44 = vector.shape_cast %43 : vector<1x1x128x128xf32> to vector<128x128xf32>
    %cst_55 = arith.constant dense<0.000000e+00> : vector<224x128xf32>
    %45 = tpu.matmul %41, %44, %cst_55 {dimension_numbers = #tpu.dot_dimension_numbers<[1], [0], [0], [1], [0, 0, 1, 1], [], []>} : vector<224x128xf32>, vector<128x128xf32>, vector<224x128xf32> -> vector<224x128xf32>
    %46 = arith.addf %42, %45 : vector<224x128xf32>
    %c0_56 = arith.constant 0 : index
    %c0_57 = arith.constant 0 : index
    %47 = vector.load %arg8[%c0_56, %c0_57] : memref<224x128xf32, #tpu.memory_space<vmem>>, vector<224x128xf32>
    tpu.vector_store %arg8[%c0_56, %c0_57], %46 {strides = array<i32>} : memref<224x128xf32, #tpu.memory_space<vmem>>, vector<224x128xf32>,
    %c0_58 = arith.constant 0 : index
    %c18 = arith.constant 18 : index
    %c0_59 = arith.constant 0 : index
    %48 = vector.load %arg3[%c0_58, %c18, %c0_59] : memref<1x264x128xf32, #tpu.memory_space<vmem>>, vector<1x224x128xf32>
    %49 = vector.shape_cast %48 : vector<1x224x128xf32> to vector<224x128xf32>
    %c0_60 = arith.constant 0 : index
    %c0_61 = arith.constant 0 : index
    %50 = vector.load %arg8[%c0_60, %c0_61] : memref<224x128xf32, #tpu.memory_space<vmem>>, vector<224x128xf32>
    %c1_62 = arith.constant 1 : index
    %c2_63 = arith.constant 2 : index
    %c0_64 = arith.constant 0 : index
    %c0_65 = arith.constant 0 : index
    %51 = vector.load %arg4[%c1_62, %c2_63, %c0_64, %c0_65] : memref<3x3x128x128xf32, #tpu.memory_space<vmem>>, vector<1x1x128x128xf32>
    %52 = vector.shape_cast %51 : vector<1x1x128x128xf32> to vector<128x128xf32>
    %cst_66 = arith.constant dense<0.000000e+00> : vector<224x128xf32>
    %53 = tpu.matmul %49, %52, %cst_66 {dimension_numbers = #tpu.dot_dimension_numbers<[1], [0], [0], [1], [0, 0, 1, 1], [], []>} : vector<224x128xf32>, vector<128x128xf32>, vector<224x128xf32> -> vector<224x128xf32>
    %54 = arith.addf %50, %53 : vector<224x128xf32>
    %c0_67 = arith.constant 0 : index
    %c0_68 = arith.constant 0 : index
    %55 = vector.load %arg8[%c0_67, %c0_68] : memref<224x128xf32, #tpu.memory_space<vmem>>, vector<224x128xf32>
    tpu.vector_store %arg8[%c0_67, %c0_68], %54 {strides = array<i32>} : memref<224x128xf32, #tpu.memory_space<vmem>>, vector<224x128xf32>,
    %c0_69 = arith.constant 0 : index
    %c32 = arith.constant 32 : index
    %c0_70 = arith.constant 0 : index
    %56 = vector.load %arg3[%c0_69, %c32, %c0_70] : memref<1x264x128xf32, #tpu.memory_space<vmem>>, vector<1x224x128xf32>
    %57 = vector.shape_cast %56 : vector<1x224x128xf32> to vector<224x128xf32>
    %c0_71 = arith.constant 0 : index
    %c0_72 = arith.constant 0 : index
    %58 = vector.load %arg8[%c0_71, %c0_72] : memref<224x128xf32, #tpu.memory_space<vmem>>, vector<224x128xf32>
    %c2_73 = arith.constant 2 : index
    %c0_74 = arith.constant 0 : index
    %c0_75 = arith.constant 0 : index
    %c0_76 = arith.constant 0 : index
    %59 = vector.load %arg4[%c2_73, %c0_74, %c0_75, %c0_76] : memref<3x3x128x128xf32, #tpu.memory_space<vmem>>, vector<1x1x128x128xf32>
    %60 = vector.shape_cast %59 : vector<1x1x128x128xf32> to vector<128x128xf32>
    %cst_77 = arith.constant dense<0.000000e+00> : vector<224x128xf32>
    %61 = tpu.matmul %57, %60, %cst_77 {dimension_numbers = #tpu.dot_dimension_numbers<[1], [0], [0], [1], [0, 0, 1, 1], [], []>} : vector<224x128xf32>, vector<128x128xf32>, vector<224x128xf32> -> vector<224x128xf32>
    %62 = arith.addf %58, %61 : vector<224x128xf32>
    %c0_78 = arith.constant 0 : index
    %c0_79 = arith.constant 0 : index
    %63 = vector.load %arg8[%c0_78, %c0_79] : memref<224x128xf32, #tpu.memory_space<vmem>>, vector<224x128xf32>
    tpu.vector_store %arg8[%c0_78, %c0_79], %62 {strides = array<i32>} : memref<224x128xf32, #tpu.memory_space<vmem>>, vector<224x128xf32>,
    %c0_80 = arith.constant 0 : index
    %c33 = arith.constant 33 : index
    %c0_81 = arith.constant 0 : index
    %64 = vector.load %arg3[%c0_80, %c33, %c0_81] : memref<1x264x128xf32, #tpu.memory_space<vmem>>, vector<1x224x128xf32>
    %65 = vector.shape_cast %64 : vector<1x224x128xf32> to vector<224x128xf32>
    %c0_82 = arith.constant 0 : index
    %c0_83 = arith.constant 0 : index
    %66 = vector.load %arg8[%c0_82, %c0_83] : memref<224x128xf32, #tpu.memory_space<vmem>>, vector<224x128xf32>
    %c2_84 = arith.constant 2 : index
    %c1_85 = arith.constant 1 : index
    %c0_86 = arith.constant 0 : index
    %c0_87 = arith.constant 0 : index
    %67 = vector.load %arg4[%c2_84, %c1_85, %c0_86, %c0_87] : memref<3x3x128x128xf32, #tpu.memory_space<vmem>>, vector<1x1x128x128xf32>
    %68 = vector.shape_cast %67 : vector<1x1x128x128xf32> to vector<128x128xf32>
    %cst_88 = arith.constant dense<0.000000e+00> : vector<224x128xf32>
    %69 = tpu.matmul %65, %68, %cst_88 {dimension_numbers = #tpu.dot_dimension_numbers<[1], [0], [0], [1], [0, 0, 1, 1], [], []>} : vector<224x128xf32>, vector<128x128xf32>, vector<224x128xf32> -> vector<224x128xf32>
    %70 = arith.addf %66, %69 : vector<224x128xf32>
    %c0_89 = arith.constant 0 : index
    %c0_90 = arith.constant 0 : index
    %71 = vector.load %arg8[%c0_89, %c0_90] : memref<224x128xf32, #tpu.memory_space<vmem>>, vector<224x128xf32>
    tpu.vector_store %arg8[%c0_89, %c0_90], %70 {strides = array<i32>} : memref<224x128xf32, #tpu.memory_space<vmem>>, vector<224x128xf32>,
    %c0_91 = arith.constant 0 : index
    %c34 = arith.constant 34 : index
    %c0_92 = arith.constant 0 : index
    %72 = vector.load %arg3[%c0_91, %c34, %c0_92] : memref<1x264x128xf32, #tpu.memory_space<vmem>>, vector<1x224x128xf32>
    %73 = vector.shape_cast %72 : vector<1x224x128xf32> to vector<224x128xf32>
    %c0_93 = arith.constant 0 : index
    %c0_94 = arith.constant 0 : index
    %74 = vector.load %arg8[%c0_93, %c0_94] : memref<224x128xf32, #tpu.memory_space<vmem>>, vector<224x128xf32>
    %c2_95 = arith.constant 2 : index
    %c2_96 = arith.constant 2 : index
    %c0_97 = arith.constant 0 : index
    %c0_98 = arith.constant 0 : index
    %75 = vector.load %arg4[%c2_95, %c2_96, %c0_97, %c0_98] : memref<3x3x128x128xf32, #tpu.memory_space<vmem>>, vector<1x1x128x128xf32>
    %76 = vector.shape_cast %75 : vector<1x1x128x128xf32> to vector<128x128xf32>
    %cst_99 = arith.constant dense<0.000000e+00> : vector<224x128xf32>
    %77 = tpu.matmul %73, %76, %cst_99 {dimension_numbers = #tpu.dot_dimension_numbers<[1], [0], [0], [1], [0, 0, 1, 1], [], []>} : vector<224x128xf32>, vector<128x128xf32>, vector<224x128xf32> -> vector<224x128xf32>
    %78 = arith.addf %74, %77 : vector<224x128xf32>
    %c0_100 = arith.constant 0 : index
    %c0_101 = arith.constant 0 : index
    %79 = vector.load %arg8[%c0_100, %c0_101] : memref<224x128xf32, #tpu.memory_space<vmem>>, vector<224x128xf32>
    tpu.vector_store %arg8[%c0_100, %c0_101], %78 {strides = array<i32>} : memref<224x128xf32, #tpu.memory_space<vmem>>, vector<224x128xf32>,
    %c0_i32_102 = arith.constant 0 : i32
    %80 = arith.cmpi eq, %arg2, %c0_i32_102 : i32
    %81 = arith.extui %80 : i1 to i32
    %c0_i32_103 = arith.constant 0 : i32
    %82 = arith.cmpi ne, %81, %c0_i32_103 : i32
    scf.if %82 {
      %c0_104 = arith.constant 0 : index
      %c0_105 = arith.constant 0 : index
      %83 = vector.load %arg8[%c0_104, %c0_105] : memref<224x128xf32, #tpu.memory_space<vmem>>, vector<224x128xf32>
      %84 = tpu.iota {dimensions = array<i32: 0>} : vector<224x1xi32>
      %c16_i32 = arith.constant 16 : i32
      %c0_i32_106 = arith.constant 0 : i32
      %85 = arith.cmpi eq, %c16_i32, %c0_i32_106 : i32
      %c1_i32 = arith.constant 1 : i32
      %86 = arith.select %85, %c1_i32, %c16_i32 : i32
      %87 = vector.broadcast %86 : i32 to vector<224x1xi32>
      %88 = arith.remsi %84, %87 : vector<224x1xi32>
      %c0_i32_107 = arith.constant 0 : i32
      %89 = vector.broadcast %c0_i32_107 : i32 to vector<224x1xi32>
      %90 = arith.cmpi ne, %88, %89 : vector<224x1xi32>
      %c0_i32_108 = arith.constant 0 : i32
      %91 = vector.broadcast %c0_i32_108 : i32 to vector<224x1xi32>
      %92 = arith.cmpi slt, %88, %91 : vector<224x1xi32>
      %c0_i32_109 = arith.constant 0 : i32
      %93 = arith.cmpi slt, %86, %c0_i32_109 : i32
      %94 = vector.broadcast %93 : i1 to vector<224x1xi1>
      %95 = vector.broadcast %94 : vector<224x1xi1> to vector<224x1xi1>
      %96 = arith.xori %92, %95 : vector<224x1xi1>
      %97 = arith.andi %96, %90 : vector<224x1xi1>
      %98 = vector.broadcast %86 : i32 to vector<224x1xi32>
      %99 = arith.addi %88, %98 : vector<224x1xi32>
      %100 = arith.select %97, %99, %88 : vector<224x1xi1>, vector<224x1xi32>
      %c14_i32 = arith.constant 14 : i32
      %101 = vector.broadcast %c14_i32 : i32 to vector<224x1xi32>
      %102 = arith.cmpi slt, %100, %101 : vector<224x1xi32>
      %cst_110 = arith.constant 0.000000e+00 : f32
      %103 = vector.shape_cast %102 : vector<224x1xi1> to vector<224x1xi1>
      %104 = vector.broadcast %103 : vector<224x1xi1> to vector<224x128xi1>
      %105 = vector.broadcast %cst_110 : f32 to vector<224x128xf32>
      %106 = arith.select %104, %83, %105 : vector<224x128xi1>, vector<224x128xf32>
      %c0_111 = arith.constant 0 : index
      %c0_112 = arith.constant 0 : index
      %107 = vector.load %arg6[%c0_111, %c0_112] : memref<1x128xf32, #tpu.memory_space<vmem>>, vector<1x128xf32>
      %cst_113 = arith.constant dense<0.000000e+00> : vector<128xf32>
      %108 = vector.multi_reduction <add>, %106, %cst_113 [0] : vector<224x128xf32> to vector<128xf32>
      %109 = vector.shape_cast %108 : vector<128xf32> to vector<1x128xf32>
      %110 = arith.addf %107, %109 : vector<1x128xf32>
      %c0_114 = arith.constant 0 : index
      %c0_115 = arith.constant 0 : index
      %111 = vector.load %arg6[%c0_114, %c0_115] : memref<1x128xf32, #tpu.memory_space<vmem>>, vector<1x128xf32>
      tpu.vector_store %arg6[%c0_114, %c0_115], %110 {strides = array<i32>} : memref<1x128xf32, #tpu.memory_space<vmem>>, vector<1x128xf32>,
      %c0_116 = arith.constant 0 : index
      %c0_117 = arith.constant 0 : index
      %112 = vector.load %arg7[%c0_116, %c0_117] : memref<1x128xf32, #tpu.memory_space<vmem>>, vector<1x128xf32>
      %113 = arith.mulf %106, %106 : vector<224x128xf32>
      %cst_118 = arith.constant dense<0.000000e+00> : vector<128xf32>
      %114 = vector.multi_reduction <add>, %113, %cst_118 [0] : vector<224x128xf32> to vector<128xf32>
      %115 = vector.shape_cast %114 : vector<128xf32> to vector<1x128xf32>
      %116 = arith.addf %112, %115 : vector<1x128xf32>
      %c0_119 = arith.constant 0 : index
      %c0_120 = arith.constant 0 : index
      %117 = vector.load %arg7[%c0_119, %c0_120] : memref<1x128xf32, #tpu.memory_space<vmem>>, vector<1x128xf32>
      tpu.vector_store %arg7[%c0_119, %c0_120], %116 {strides = array<i32>} : memref<1x128xf32, #tpu.memory_space<vmem>>, vector<1x128xf32>,
      %c0_121 = arith.constant 0 : index
      %c0_122 = arith.constant 0 : index
      %c0_123 = arith.constant 0 : index
      %118 = vector.load %arg5[%c0_121, %c0_122, %c0_123] : memref<1x224x128xf32, #tpu.memory_space<vmem>>, vector<1x224x128xf32>
      %119 = vector.shape_cast %118 : vector<1x224x128xf32> to vector<224x128xf32>
      %120 = vector.shape_cast %83 : vector<224x128xf32> to vector<1x224x128xf32>
      tpu.vector_store %arg5[%c0_121, %c0_122, %c0_123], %120 {strides = array<i32>} : memref<1x224x128xf32, #tpu.memory_space<vmem>>, vector<1x224x128xf32>,
    } else {
    }
    return
  }
  func.func @transform_0(%arg0: i32, %arg1: i32, %arg2: i32) -> (i32, i32, i32) {
    %c0_i32 = arith.constant 0 : i32
    %c0_i32_0 = arith.constant 0 : i32
    return %arg1, %c0_i32, %arg2 : i32, i32, i32
  }
  func.func @transform_1(%arg0: i32, %arg1: i32, %arg2: i32) -> (i32, i32, i32, i32) {
    %c0_i32 = arith.constant 0 : i32
    %c0_i32_0 = arith.constant 0 : i32
    %c0_i32_1 = arith.constant 0 : i32
    return %c0_i32, %c0_i32_0, %arg2, %arg0 : i32, i32, i32, i32
  }
  func.func @transform_2(%arg0: i32, %arg1: i32, %arg2: i32) -> (i32, i32, i32) {
    %c0_i32 = arith.constant 0 : i32
    %c0_i32_0 = arith.constant 0 : i32
    return %arg1, %c0_i32, %arg0 : i32, i32, i32
  }
  func.func @transform_3(%arg0: i32, %arg1: i32, %arg2: i32) -> (i32, i32) {
    %c0_i32 = arith.constant 0 : i32
    %c0_i32_0 = arith.constant 0 : i32
    return %c0_i32, %arg0 : i32, i32
  }
  func.func @transform_4(%arg0: i32, %arg1: i32, %arg2: i32) -> (i32, i32) {
    %c0_i32 = arith.constant 0 : i32
    %c0_i32_0 = arith.constant 0 : i32
    return %c0_i32, %arg0 : i32, i32
  }
}

module attributes {stable_mosaic.version = 11 : i64} {
  func.func @_bn_relu_kernel(%arg0: i32, %arg1: i32, %arg2: memref<1x224x128xf32, #tpu.memory_space<vmem>>, %arg3: memref<1x128xf32, #tpu.memory_space<vmem>>, %arg4: memref<1x128xf32, #tpu.memory_space<vmem>>, %arg5: memref<1x224x128xf32, #tpu.memory_space<vmem>>) attributes {dimension_semantics = [#tpu.dimension_semantics<parallel>, #tpu.dimension_semantics<parallel>], iteration_bounds = array<i64: 2, 1>, scalar_prefetch = 0 : i64, scratch_operands = 0 : i64, tpu.core_type = #tpu.core_type<tc>, window_params = [{transform_indices = @transform_0, window_bounds = array<i64: 1, 224, 128>}, {transform_indices = @transform_1, window_bounds = array<i64: 1, 128>}, {transform_indices = @transform_2, window_bounds = array<i64: 1, 128>}, {transform_indices = @transform_3, window_bounds = array<i64: 1, 224, 128>}]} {
    %c0 = arith.constant 0 : index
    %c0_0 = arith.constant 0 : index
    %c0_1 = arith.constant 0 : index
    %0 = vector.load %arg2[%c0, %c0_0, %c0_1] : memref<1x224x128xf32, #tpu.memory_space<vmem>>, vector<1x224x128xf32>
    %c0_2 = arith.constant 0 : index
    %c0_3 = arith.constant 0 : index
    %1 = vector.load %arg3[%c0_2, %c0_3] : memref<1x128xf32, #tpu.memory_space<vmem>>, vector<1x128xf32>
    %2 = vector.shape_cast %1 : vector<1x128xf32> to vector<1x1x128xf32>
    %3 = vector.broadcast %2 : vector<1x1x128xf32> to vector<1x224x128xf32>
    %4 = arith.mulf %0, %3 : vector<1x224x128xf32>
    %c0_4 = arith.constant 0 : index
    %c0_5 = arith.constant 0 : index
    %5 = vector.load %arg4[%c0_4, %c0_5] : memref<1x128xf32, #tpu.memory_space<vmem>>, vector<1x128xf32>
    %6 = vector.shape_cast %5 : vector<1x128xf32> to vector<1x1x128xf32>
    %7 = vector.broadcast %6 : vector<1x1x128xf32> to vector<1x224x128xf32>
    %8 = arith.addf %4, %7 : vector<1x224x128xf32>
    %cst = arith.constant 0.000000e+00 : f32
    %9 = vector.broadcast %cst : f32 to vector<1x224x128xf32>
    %10 = arith.maximumf %8, %9 : vector<1x224x128xf32>
    %c0_6 = arith.constant 0 : index
    %c0_7 = arith.constant 0 : index
    %c0_8 = arith.constant 0 : index
    %11 = vector.load %arg5[%c0_6, %c0_7, %c0_8] : memref<1x224x128xf32, #tpu.memory_space<vmem>>, vector<1x224x128xf32>
    tpu.vector_store %arg5[%c0_6, %c0_7, %c0_8], %10 {strides = array<i32>} : memref<1x224x128xf32, #tpu.memory_space<vmem>>, vector<1x224x128xf32>,
    return
  }
  func.func @transform_0(%arg0: i32, %arg1: i32) -> (i32, i32, i32) {
    %c0_i32 = arith.constant 0 : i32
    %c0_i32_0 = arith.constant 0 : i32
    return %arg0, %c0_i32, %arg1 : i32, i32, i32
  }
  func.func @transform_1(%arg0: i32, %arg1: i32) -> (i32, i32) {
    %c0_i32 = arith.constant 0 : i32
    %c0_i32_0 = arith.constant 0 : i32
    return %c0_i32, %arg1 : i32, i32
  }
  func.func @transform_2(%arg0: i32, %arg1: i32) -> (i32, i32) {
    %c0_i32 = arith.constant 0 : i32
    %c0_i32_0 = arith.constant 0 : i32
    return %c0_i32, %arg1 : i32, i32
  }
  func.func @transform_3(%arg0: i32, %arg1: i32) -> (i32, i32, i32) {
    %c0_i32 = arith.constant 0 : i32
    %c0_i32_0 = arith.constant 0 : i32
    return %arg0, %c0_i32, %arg1 : i32, i32, i32
  }
}

</mosaic_0001>

<llo_original>
// kernel: up_block_2d.3
$region0: #{up_block_2d.3}
  #allocation0 [shape = 'u32[]', space=smem, size = 0x4, offset = 0x4, fixed_abs, tag = 'smem constant byte address 0x4 - core index']
  #allocation1 [shape = 'u32[144,128]{1,0:T(1,128)}', space=vmem, size = 0x12000, scoped, tag = 'internal scratch']
  %s0 = inlined_call_operand.vmem [shape: f32[2,224,128], index: 0, kind: input, shape index: {}]
  %s1 = inlined_call_operand.vmem [shape: f32[1,128], index: 1, kind: input, shape index: {}]
  %s2 = inlined_call_operand.vmem [shape: f32[1,128], index: 2, kind: input, shape index: {}]
  %s3 = inlined_call_operand.vmem [shape: f32[2,224,128], index: 3, kind: output, shape index: {}]
  %s4 = sld [smem:[#allocation0]]
  $region45: #{up_block_2d.3} parent=0
    _
  %s6 = ssub.s32 1, %s4
  %s7 = scalar_select 0, %s6, %s4
  loop: start=0, step=1, limit=4
  $region2: #{up_block_2d.3} parent=0 // loop_pre_header
    _
  $region3: #{up_block_2d.3} parent=0 // loop_header
    %s9 = sphi 0, %s13
    %p10 = scmp.ge.s32.totalorder %s9, 4
    %s16 = sphi 0, %s28
    %s17 = sphi 0, %s24
    %s18 = sphi 0, %s16
    %s19 = sphi 0, %s17
    %s20 = sphi 0, %s18
    %s21 = sphi 0, %s19
    %s33 = sphi 0, %s35
    %s36 = sphi 0, %s33
    %s37 = sphi 0, %s36
    %s53 = sphi 0, %s37
    %s59 = sphi 0, %s61
    %s62 = sphi 0, %s59
    %s63 = sphi 0, %s62
    %s79 = sphi 0, %s63
    %s85 = sphi 0, %s87
    %s88 = sphi 0, %s85
    %s89 = sphi 0, %s88
    %s105 = sphi 0, %s89
    %s113 = sphi 0, %s115
    %s116 = sphi 0, %s113
    %s117 = sphi 0, %s116
    %s133 = sphi 0, %s117
  $region4: #{up_block_2d.3} parent=0 // loop_header_branch
    %12 = sbr.rel (%p10) target = $region8
  $region5: #{up_block_2d.3} parent=0 // loop_body
    %s14 = ssub.s32 %s9, 1
    %s15 = ssub.s32 %s9, 2
    %s22 = sadd.s32 1, %s17
    %p23 = scmp.ge.s32.totalorder %s22, 1
    %s24 = scalar_select %p23, 0, %s22
    %s25 = sadd.s32 1, %s16
    %s26 = scalar_select %p23, %s25, %s16
    %p27 = scmp.ge.s32.totalorder %s26, 2
    %s28 = scalar_select %p27, 0, %s26
    %s29 = ssub.s32 %s16, %s28
    %s30 = ssub.s32 %s17, %s24
    %s31 = sor.u32 %s29, %s30
    %p32 = scmp.eq.s32.totalorder %s31, 0
    %s34 = sadd.s32 %s33, 1
    %s35 = scalar_select %p32, %s33, %s34
    %p38 = pneg %p32
    %p39 = scmp.eq.s32.totalorder %s9, 1
    %p40 = por %p38, %p39
    %p41 = scmp.ne.s32.totalorder %s33, %s36
    %p42 = scmp.eq.s32.totalorder %s9, 0
    %p43 = por %p41, %p42
    %p44 = scmp.ne.s32.totalorder %s33, %s36
    %p45 = scmp.eq.s32.totalorder %s14, 1
    %p46 = por %p44, %p45
    %p47 = scmp.ne.s32.totalorder %s36, %s37
    %p48 = scmp.eq.s32.totalorder %s14, 0
    %p49 = por %p47, %p48
    %p50 = scmp.ne.s32.totalorder %s36, %s37
    %p51 = scmp.eq.s32.totalorder %s15, 1
    %p52 = por %p50, %p51
    %p54 = scmp.ne.s32.totalorder %s37, %s53
    %p55 = scmp.eq.s32.totalorder %s15, 0
    %p56 = por %p54, %p55
    %s57 = ssub.s32 %s17, %s24
    %p58 = scmp.eq.s32.totalorder %s57, 0
    %s60 = sadd.s32 %s59, 1
    %s61 = scalar_select %p58, %s59, %s60
    %p64 = pneg %p58
    %p65 = scmp.eq.s32.totalorder %s9, 1
    %p66 = por %p64, %p65
    %p67 = scmp.ne.s32.totalorder %s59, %s62
    %p68 = scmp.eq.s32.totalorder %s9, 0
    %p69 = por %p67, %p68
    %p70 = scmp.ne.s32.totalorder %s59, %s62
    %p71 = scmp.eq.s32.totalorder %s14, 1
    %p72 = por %p70, %p71
    %p73 = scmp.ne.s32.totalorder %s62, %s63
    %p74 = scmp.eq.s32.totalorder %s14, 0
    %p75 = por %p73, %p74
    %p76 = scmp.ne.s32.totalorder %s62, %s63
    %p77 = scmp.eq.s32.totalorder %s15, 1
    %p78 = por %p76, %p77
    %p80 = scmp.ne.s32.totalorder %s63, %s79
    %p81 = scmp.eq.s32.totalorder %s15, 0
    %p82 = por %p80, %p81
    %s83 = ssub.s32 %s17, %s24
    %p84 = scmp.eq.s32.totalorder %s83, 0
    %s86 = sadd.s32 %s85, 1
    %s87 = scalar_select %p84, %s85, %s86
    %p90 = pneg %p84
    %p91 = scmp.eq.s32.totalorder %s9, 1
    %p92 = por %p90, %p91
    %p93 = scmp.ne.s32.totalorder %s85, %s88
    %p94 = scmp.eq.s32.totalorder %s9, 0
    %p95 = por %p93, %p94
    %p96 = scmp.ne.s32.totalorder %s85, %s88
    %p97 = scmp.eq.s32.totalorder %s14, 1
    %p98 = por %p96, %p97
    %p99 = scmp.ne.s32.totalorder %s88, %s89
    %p100 = scmp.eq.s32.totalorder %s14, 0
    %p101 = por %p99, %p100
    %p102 = scmp.ne.s32.totalorder %s88, %s89
    %p103 = scmp.eq.s32.totalorder %s15, 1
    %p104 = por %p102, %p103
    %p106 = scmp.ne.s32.totalorder %s89, %s105
    %p107 = scmp.eq.s32.totalorder %s15, 0
    %p108 = por %p106, %p107
    %s109 = ssub.s32 %s16, %s28
    %s110 = ssub.s32 %s17, %s24
    %s111 = sor.u32 %s109, %s110
    %p112 = scmp.eq.s32.totalorder %s111, 0
    %s114 = sadd.s32 %s113, 1
    %s115 = scalar_select %p112, %s113, %s114
    %p118 = pneg %p112
    %p119 = scmp.eq.s32.totalorder %s9, 1
    %p120 = por %p118, %p119
    %p121 = scmp.ne.s32.totalorder %s113, %s116
    %p122 = scmp.eq.s32.totalorder %s9, 0
    %p123 = por %p121, %p122
    %p124 = scmp.ne.s32.totalorder %s113, %s116
    %p125 = scmp.eq.s32.totalorder %s14, 1
    %p126 = por %p124, %p125
    %p127 = scmp.ne.s32.totalorder %s116, %s117
    %p128 = scmp.eq.s32.totalorder %s14, 0
    %p129 = por %p127, %p128
    %p130 = scmp.ne.s32.totalorder %s116, %s117
    %p131 = scmp.eq.s32.totalorder %s15, 1
    %p132 = por %p130, %p131
    %p134 = scmp.ne.s32.totalorder %s117, %s133
    %p135 = scmp.eq.s32.totalorder %s15, 0
    %p136 = por %p134, %p135
    %p137 = scmp.le.s32.totalorder 1, %s9
    %p138 = scmp.lt.s32.totalorder %s9, 3
    %p139 = pnand %p137, %p138
    %p140 = pneg %p139
    // Predicated region
    $region9: #{up_block_2d.3} parent=5 // pred_check
      _
    $region10: #{up_block_2d.3} parent=5 // pred_check_branch
      %142 = sbr.rel (%p139) target = $region12
    $region11: #{up_block_2d.3} parent=5 // pred_region
      %s143 = ssub.s32 %s9, 1
      // Predicated region
      $region13: #{up_block_2d.3} parent=11 // pred_check
        %p144 = pneg %p75
      $region14: #{up_block_2d.3} parent=11 // pred_check_branch
        %146 = sbr.rel (%p144) target = $region16
      $region15: #{up_block_2d.3} parent=11 // pred_region
        %p147 = scmp.lt.s32.totalorder %s19, 0
        %s148 = scalar_select %p147, %s19, 0
        %s149 = scalar_lea.vmem %s1, %s148
      $region16: #{up_block_2d.3} parent=11 // pred_fallthru
        _
      // Predicated region
      $region17: #{up_block_2d.3} parent=11 // pred_check
        %p150 = pneg %p101
      $region18: #{up_block_2d.3} parent=11 // pred_check_branch
        %152 = sbr.rel (%p150) target = $region20
      $region19: #{up_block_2d.3} parent=11 // pred_region
        %p153 = scmp.lt.s32.totalorder %s19, 0
        %s154 = scalar_select %p153, %s19, 0
        %s155 = scalar_lea.vmem %s2, %s154
      $region20: #{up_block_2d.3} parent=11 // pred_fallthru
        _
    $region12: #{up_block_2d.3} parent=5 // pred_fallthru
      _
    %p156 = scmp.lt.s32.totalorder %s9, 2
    // Predicated region
    $region21: #{up_block_2d.3} parent=5 // pred_check
      %p157 = pneg %p156
    $region22: #{up_block_2d.3} parent=5 // pred_check_branch
      %159 = sbr.rel (%p157) target = $region24
    $region23: #{up_block_2d.3} parent=5 // pred_region
      // Predicated region
      $region25: #{up_block_2d.3} parent=23 // pred_check
        %p160 = pneg %p43
      $region26: #{up_block_2d.3} parent=23 // pred_check_branch
        %162 = sbr.rel (%p160) target = $region28
      $region27: #{up_block_2d.3} parent=23 // pred_region
        %p163 = scmp.lt.s32.totalorder %s16, 1
        %s164 = scalar_select %p163, %s16, 1
        %p165 = scmp.lt.s32.totalorder %s17, 0
        %s166 = scalar_select %p165, %s17, 0
        %s167 = smul.addr %s164, 28
        %s168 = sadd.s32 %s166, %s167
        %s169 = smul.addr %s168, 8
        %s170 = scalar_lea.vmem %s0, %s169
      $region28: #{up_block_2d.3} parent=23 // pred_fallthru
        _
    $region24: #{up_block_2d.3} parent=5 // pred_fallthru
      _
    %p171 = scmp.le.s32.totalorder 1, %s9
    %p172 = scmp.lt.s32.totalorder %s9, 3
    %p173 = pnand %p171, %p172
    %p174 = pneg %p173
    // Predicated region
    $region29: #{up_block_2d.3} parent=5 // pred_check
      _
    $region30: #{up_block_2d.3} parent=5 // pred_check_branch
      %176 = sbr.rel (%p173) target = $region32
    $region31: #{up_block_2d.3} parent=5 // pred_region
      %s177 = ssub.s32 %s9, 1
      %p178 = scmp.lt.s32.totalorder %s18, 1
      %s179 = scalar_select %p178, %s18, 1
      %p180 = scmp.lt.s32.totalorder %s19, 0
      %s181 = scalar_select %p180, %s19, 0
      %s182 = smul.addr %s179, 28
      %s183 = sadd.s32 %s181, %s182
      %s184 = smul.addr %s183, 8
      %s185 = scalar_lea.vmem %s0, %s184
      %p186 = pneg %p49
      %p187 = pneg %p46
      %p188 = scmp.lt.s32.totalorder %s19, 0
      %s189 = scalar_select %p188, %s19, 0
      %s190 = scalar_lea.vmem %s1, %s189
      %p191 = pneg %p75
      %p192 = pneg %p72
      %p193 = scmp.lt.s32.totalorder %s19, 0
      %s194 = scalar_select %p193, %s19, 0
      %s195 = scalar_lea.vmem %s2, %s194
      %p196 = pneg %p101
      %p197 = pneg %p98
      %p198 = pneg %p129
      %p199 = pneg %p126
      %p200 = scmp.lt.s32.totalorder %s18, 1
      %s201 = scalar_select %p200, %s18, 1
      %p202 = scmp.lt.s32.totalorder %s19, 0
      %s203 = scalar_select %p202, %s19, 0
      %s204 = smul.addr %s201, 28
      %s205 = sadd.s32 %s203, %s204
      %s206 = smul.addr %s205, 8
      %s207 = scalar_lea.vmem %s3, %s206
      %p208 = scmp.lt.s32.totalorder %s18, 1
      %s209 = scalar_select %p208, %s18, 1
      %p210 = scmp.lt.s32.totalorder %s19, 0
      %s211 = scalar_select %p210, %s19, 0
      %s212 = smul.addr %s209, 28
      %s213 = sadd.s32 %s211, %s212
      %s214 = smul.addr %s213, 8
      %s215 = scalar_lea.vmem %s0, %s214
      %p216 = scmp.lt.s32.totalorder %s19, 0
      %s217 = scalar_select %p216, %s19, 0
      %s218 = scalar_lea.vmem %s1, %s217
      %p219 = scmp.lt.s32.totalorder %s19, 0
      %s220 = scalar_select %p219, %s19, 0
      %s221 = scalar_lea.vmem %s2, %s220
      %p222 = scmp.lt.s32.totalorder %s18, 1
      %s223 = scalar_select %p222, %s18, 1
      %p224 = scmp.lt.s32.totalorder %s19, 0
      %s225 = scalar_select %p224, %s19, 0
      %s226 = smul.addr %s223, 28
      %s227 = sadd.s32 %s225, %s226
      %s228 = smul.addr %s227, 8
      %s229 = scalar_lea.vmem %s3, %s228
      %v230 = vld [vmem:[%s215] sm:$0xff]
      %v231 = vld [vmem:[%s215 + $0x8] sm:$0xff]
      %v232 = vld [vmem:[%s215 + $0x10] sm:$0xff]
      %v233 = vld [vmem:[%s215 + $0x18] sm:$0xff]
      %v234 = vld [vmem:[%s215 + $0x20] sm:$0xff]
      %v235 = vld [vmem:[%s215 + $0x28] sm:$0xff]
      %v236 = vld [vmem:[%s215 + $0x30] sm:$0xff]
      %v237 = vld [vmem:[%s215 + $0x38] sm:$0xff]
      %v238 = vld [vmem:[%s215 + $0x40] sm:$0xff]
      %v239 = vld [vmem:[%s215 + $0x48] sm:$0xff]
      %v240 = vld [vmem:[%s215 + $0x50] sm:$0xff]
      %v241 = vld [vmem:[%s215 + $0x58] sm:$0xff]
      %v242 = vld [vmem:[%s215 + $0x60] sm:$0xff]
      %v243 = vld [vmem:[%s215 + $0x68] sm:$0xff]
      %v244 = vld [vmem:[%s215 + $0x70] sm:$0xff]
      %v245 = vld [vmem:[%s215 + $0x78] sm:$0xff]
      %v246 = vld [vmem:[%s215 + $0x80] sm:$0xff]
      %v247 = vld [vmem:[%s215 + $0x88] sm:$0xff]
      %v248 = vld [vmem:[%s215 + $0x90] sm:$0xff]
      %v249 = vld [vmem:[%s215 + $0x98] sm:$0xff]
      %v250 = vld [vmem:[%s215 + $0xa0] sm:$0xff]
      %v251 = vld [vmem:[%s215 + $0xa8] sm:$0xff]
      %v252 = vld [vmem:[%s215 + $0xb0] sm:$0xff]
      %v253 = vld [vmem:[%s215 + $0xb8] sm:$0xff]
      %v254 = vld [vmem:[%s215 + $0xc0] sm:$0xff]
      %v255 = vld [vmem:[%s215 + $0xc8] sm:$0xff]
      %v256 = vld [vmem:[%s215 + $0xd0] sm:$0xff]
      %v257 = vld [vmem:[%s215 + $0xd8] sm:$0xff]
      %v258 = vld [vmem:[%s218] sm:$0x1]
      %v260 = vlaneseq
      %v261 = vshrl.u32 %v260, 7
      %v262 = vsub.s32 0, %v261
      %v263 = vrot.slane %v258, %v262
      %v265 = vmul.f32 %v230, %v263
      %v266 = vmul.f32 %v231, %v263
      %v267 = vmul.f32 %v232, %v263
      %v268 = vmul.f32 %v233, %v263
      %v269 = vmul.f32 %v234, %v263
      %v270 = vmul.f32 %v235, %v263
      %v271 = vmul.f32 %v236, %v263
      %v272 = vmul.f32 %v237, %v263
      %v273 = vmul.f32 %v238, %v263
      %v274 = vmul.f32 %v239, %v263
      %v275 = vmul.f32 %v240, %v263
      %v276 = vmul.f32 %v241, %v263
      %v277 = vmul.f32 %v242, %v263
      %v278 = vmul.f32 %v243, %v263
      %v279 = vmul.f32 %v244, %v263
      %v280 = vmul.f32 %v245, %v263
      %v281 = vmul.f32 %v246, %v263
      %v282 = vmul.f32 %v247, %v263
      %v283 = vmul.f32 %v248, %v263
      %v284 = vmul.f32 %v249, %v263
      %v285 = vmul.f32 %v250, %v263
      %v286 = vmul.f32 %v251, %v263
      %v287 = vmul.f32 %v252, %v263
      %v288 = vmul.f32 %v253, %v263
      %v289 = vmul.f32 %v254, %v263
      %v290 = vmul.f32 %v255, %v263
      %v291 = vmul.f32 %v256, %v263
      %v292 = vmul.f32 %v257, %v263
      %v293 = vld [vmem:[%s221] sm:$0x1]
      %v295 = vlaneseq
      %v296 = vshrl.u32 %v295, 7
      %v297 = vsub.s32 0, %v296
      %v298 = vrot.slane %v293, %v297
      %v300 = vadd.f32 %v265, %v298
      %v301 = vadd.f32 %v266, %v298
      %v302 = vadd.f32 %v267, %v298
      %v303 = vadd.f32 %v268, %v298
      %v304 = vadd.f32 %v269, %v298
      %v305 = vadd.f32 %v270, %v298
      %v306 = vadd.f32 %v271, %v298
      %v307 = vadd.f32 %v272, %v298
      %v308 = vadd.f32 %v273, %v298
      %v309 = vadd.f32 %v274, %v298
      %v310 = vadd.f32 %v275, %v298
      %v311 = vadd.f32 %v276, %v298
      %v312 = vadd.f32 %v277, %v298
      %v313 = vadd.f32 %v278, %v298
      %v314 = vadd.f32 %v279, %v298
      %v315 = vadd.f32 %v280, %v298
      %v316 = vadd.f32 %v281, %v298
      %v317 = vadd.f32 %v282, %v298
      %v318 = vadd.f32 %v283, %v298
      %v319 = vadd.f32 %v284, %v298
      %v320 = vadd.f32 %v285, %v298
      %v321 = vadd.f32 %v286, %v298
      %v322 = vadd.f32 %v287, %v298
      %v323 = vadd.f32 %v288, %v298
      %v324 = vadd.f32 %v289, %v298
      %v325 = vadd.f32 %v290, %v298
      %v326 = vadd.f32 %v291, %v298
      %v327 = vadd.f32 %v292, %v298
      %v328 = vmax.f32 %v300, 0.0
      %v329 = vmax.f32 %v301, 0.0
      %v330 = vmax.f32 %v302, 0.0
      %v331 = vmax.f32 %v303, 0.0
      %v332 = vmax.f32 %v304, 0.0
      %v333 = vmax.f32 %v305, 0.0
      %v334 = vmax.f32 %v306, 0.0
      %v335 = vmax.f32 %v307, 0.0
      %v336 = vmax.f32 %v308, 0.0
      %v337 = vmax.f32 %v309, 0.0
      %v338 = vmax.f32 %v310, 0.0
      %v339 = vmax.f32 %v311, 0.0
      %v340 = vmax.f32 %v312, 0.0
      %v341 = vmax.f32 %v313, 0.0
      %v342 = vmax.f32 %v314, 0.0
      %v343 = vmax.f32 %v315, 0.0
      %v344 = vmax.f32 %v316, 0.0
      %v345 = vmax.f32 %v317, 0.0
      %v346 = vmax.f32 %v318, 0.0
      %v347 = vmax.f32 %v319, 0.0
      %v348 = vmax.f32 %v320, 0.0
      %v349 = vmax.f32 %v321, 0.0
      %v350 = vmax.f32 %v322, 0.0
      %v351 = vmax.f32 %v323, 0.0
      %v352 = vmax.f32 %v324, 0.0
      %v353 = vmax.f32 %v325, 0.0
      %v354 = vmax.f32 %v326, 0.0
      %v355 = vmax.f32 %v327, 0.0
      %356 = vst [vmem:[%s229] sm:$0xff] %v328
      %357 = vst [vmem:[%s229 + $0x8] sm:$0xff] %v329
      %358 = vst [vmem:[%s229 + $0x10] sm:$0xff] %v330
      %359 = vst [vmem:[%s229 + $0x18] sm:$0xff] %v331
      %360 = vst [vmem:[%s229 + $0x20] sm:$0xff] %v332
      %361 = vst [vmem:[%s229 + $0x28] sm:$0xff] %v333
      %362 = vst [vmem:[%s229 + $0x30] sm:$0xff] %v334
      %363 = vst [vmem:[%s229 + $0x38] sm:$0xff] %v335
      %364 = vst [vmem:[%s229 + $0x40] sm:$0xff] %v336
      %365 = vst [vmem:[%s229 + $0x48] sm:$0xff] %v337
      %366 = vst [vmem:[%s229 + $0x50] sm:$0xff] %v338
      %367 = vst [vmem:[%s229 + $0x58] sm:$0xff] %v339
      %368 = vst [vmem:[%s229 + $0x60] sm:$0xff] %v340
      %369 = vst [vmem:[%s229 + $0x68] sm:$0xff] %v341
      %370 = vst [vmem:[%s229 + $0x70] sm:$0xff] %v342
      %371 = vst [vmem:[%s229 + $0x78] sm:$0xff] %v343
      %372 = vst [vmem:[%s229 + $0x80] sm:$0xff] %v344
      %373 = vst [vmem:[%s229 + $0x88] sm:$0xff] %v345
      %374 = vst [vmem:[%s229 + $0x90] sm:$0xff] %v346
      %375 = vst [vmem:[%s229 + $0x98] sm:$0xff] %v347
      %376 = vst [vmem:[%s229 + $0xa0] sm:$0xff] %v348
      %377 = vst [vmem:[%s229 + $0xa8] sm:$0xff] %v349
      %378 = vst [vmem:[%s229 + $0xb0] sm:$0xff] %v350
      %379 = vst [vmem:[%s229 + $0xb8] sm:$0xff] %v351
      %380 = vst [vmem:[%s229 + $0xc0] sm:$0xff] %v352
      %381 = vst [vmem:[%s229 + $0xc8] sm:$0xff] %v353
      %382 = vst [vmem:[%s229 + $0xd0] sm:$0xff] %v354
      %383 = vst [vmem:[%s229 + $0xd8] sm:$0xff] %v355
      %p384 = scmp.lt.s32.totalorder %s18, 1
      %s385 = scalar_select %p384, %s18, 1
      %p386 = scmp.lt.s32.totalorder %s19, 0
      %s387 = scalar_select %p386, %s19, 0
      %s388 = smul.addr %s385, 28
      %s389 = sadd.s32 %s387, %s388
      %s390 = smul.addr %s389, 8
      %s391 = scalar_lea.vmem %s3, %s390
      // Predicated region
      $region33: #{up_block_2d.3} parent=31 // pred_check
        %p392 = pneg %p126
      $region34: #{up_block_2d.3} parent=31 // pred_check_branch
        %394 = sbr.rel (%p392) target = $region36
      $region35: #{up_block_2d.3} parent=31 // pred_region
        _
      $region36: #{up_block_2d.3} parent=31 // pred_fallthru
        _
    $region32: #{up_block_2d.3} parent=5 // pred_fallthru
      _
    %p395 = scmp.le.s32.totalorder 2, %s9
    // Predicated region
    $region37: #{up_block_2d.3} parent=5 // pred_check
      %p396 = pneg %p395
    $region38: #{up_block_2d.3} parent=5 // pred_check_branch
      %398 = sbr.rel (%p396) target = $region40
    $region39: #{up_block_2d.3} parent=5 // pred_region
      %s399 = ssub.s32 %s9, 2
      // Predicated region
      $region41: #{up_block_2d.3} parent=39 // pred_check
        %p400 = pneg %p132
      $region42: #{up_block_2d.3} parent=39 // pred_check_branch
        %402 = sbr.rel (%p400) target = $region44
      $region43: #{up_block_2d.3} parent=39 // pred_region
        %p403 = scmp.lt.s32.totalorder %s20, 1
        %s404 = scalar_select %p403, %s20, 1
        %p405 = scmp.lt.s32.totalorder %s21, 0
        %s406 = scalar_select %p405, %s21, 0
        %s407 = smul.addr %s404, 28
        %s408 = sadd.s32 %s406, %s407
        %s409 = smul.addr %s408, 8
        %s410 = scalar_lea.vmem %s3, %s409
      $region44: #{up_block_2d.3} parent=39 // pred_fallthru
        _
    $region40: #{up_block_2d.3} parent=5 // pred_fallthru
      _
  $region6: #{up_block_2d.3} parent=0 // loop_footer
    %s13 = sadd.s32 1, %s9
  $region7: #{up_block_2d.3} parent=0 // loop_footer_branch
    %8 = sbr.rel target = $region3
  $region8: #{up_block_2d.3} parent=0 // loop_exit
    _

// kernel: up_block_2d.2
$region0: #{up_block_2d.2}
  #allocation0 [shape = 'u32[]', space=smem, size = 0x4, offset = 0x4, fixed_abs, tag = 'smem constant byte address 0x4 - core index']
  #allocation1 [shape = 'u32[144,128]{1,0:T(1,128)}', space=vmem, size = 0x12000, scoped, tag = 'internal scratch']
  #allocation2 [shape = 'f32[224,128]{1,0:T(8,128)}', space=vmem, size = 0x1c000, scoped, tag = 'scratch operand']
  %s0 = inlined_call_operand.vmem [shape: f32[2,264,128], index: 0, kind: input, shape index: {}]
  %s1 = inlined_call_operand.vmem [shape: f32[3,3,128,128], index: 1, kind: input, shape index: {}]
  %s2 = inlined_call_operand.vmem [shape: f32[2,224,128], index: 2, kind: output, shape index: {0}]
  %s3 = inlined_call_operand.vmem [shape: f32[1,128], index: 3, kind: output, shape index: {1}]
  %s4 = inlined_call_operand.vmem [shape: f32[1,128], index: 4, kind: output, shape index: {2}]
  %5 = xla_tuple %s2, %s3, %s4
  %s6 = sld [smem:[#allocation0]]
  $region69: #{up_block_2d.2} parent=0
    _
  %s8 = ssub.s32 1, %s6
  %s9 = scalar_select 0, %s8, %s6
  loop: start=0, step=1, limit=4
  $region2: #{up_block_2d.2} parent=0 // loop_pre_header
    _
  $region3: #{up_block_2d.2} parent=0 // loop_header
    %s11 = sphi 0, %s15
    %p12 = scmp.ge.s32.totalorder %s11, 4
    %s18 = sphi 0, %s37
    %s19 = sphi 0, %s33
    %s20 = sphi 0, %s29
    %s21 = sphi 0, %s18
    %s22 = sphi 0, %s19
    %s23 = sphi 0, %s20
    %s24 = sphi 0, %s21
    %s25 = sphi 0, %s22
    %s26 = sphi 0, %s23
    %s42 = sphi 0, %s44
    %s45 = sphi 0, %s42
    %s46 = sphi 0, %s45
    %s62 = sphi 0, %s46
    %s70 = sphi 0, %s72
    %s73 = sphi 0, %s70
    %s74 = sphi 0, %s73
    %s90 = sphi 0, %s74
    %s98 = sphi 0, %s100
    %s101 = sphi 0, %s98
    %s102 = sphi 0, %s101
    %s118 = sphi 0, %s102
    %s124 = sphi 0, %s126
    %s127 = sphi 0, %s124
    %s128 = sphi 0, %s127
    %s144 = sphi 0, %s128
    %s150 = sphi 0, %s152
    %s153 = sphi 0, %s150
    %s154 = sphi 0, %s153
    %s170 = sphi 0, %s154
  $region4: #{up_block_2d.2} parent=0 // loop_header_branch
    %14 = sbr.rel (%p12) target = $region8
  $region5: #{up_block_2d.2} parent=0 // loop_body
    %s16 = ssub.s32 %s11, 1
    %s17 = ssub.s32 %s11, 2
    %s27 = sadd.s32 1, %s20
    %p28 = scmp.ge.s32.totalorder %s27, 1
    %s29 = scalar_select %p28, 0, %s27
    %s30 = sadd.s32 1, %s19
    %s31 = scalar_select %p28, %s30, %s19
    %p32 = scmp.ge.s32.totalorder %s31, 2
    %s33 = scalar_select %p32, 0, %s31
    %s34 = sadd.s32 1, %s18
    %s35 = scalar_select %p32, %s34, %s18
    %p36 = scmp.ge.s32.totalorder %s35, 1
    %s37 = scalar_select %p36, 0, %s35
    %s38 = ssub.s32 %s19, %s33
    %s39 = ssub.s32 %s20, %s29
    %s40 = sor.u32 %s38, %s39
    %p41 = scmp.eq.s32.totalorder %s40, 0
    %s43 = sadd.s32 %s42, 1
    %s44 = scalar_select %p41, %s42, %s43
    %p47 = pneg %p41
    %p48 = scmp.eq.s32.totalorder %s11, 1
    %p49 = por %p47, %p48
    %p50 = scmp.ne.s32.totalorder %s42, %s45
    %p51 = scmp.eq.s32.totalorder %s11, 0
    %p52 = por %p50, %p51
    %p53 = scmp.ne.s32.totalorder %s42, %s45
    %p54 = scmp.eq.s32.totalorder %s16, 1
    %p55 = por %p53, %p54
    %p56 = scmp.ne.s32.totalorder %s45, %s46
    %p57 = scmp.eq.s32.totalorder %s16, 0
    %p58 = por %p56, %p57
    %p59 = scmp.ne.s32.totalorder %s45, %s46
    %p60 = scmp.eq.s32.totalorder %s17, 1
    %p61 = por %p59, %p60
    %p63 = scmp.ne.s32.totalorder %s46, %s62
    %p64 = scmp.eq.s32.totalorder %s17, 0
    %p65 = por %p63, %p64
    %s66 = ssub.s32 %s20, %s29
    %s67 = ssub.s32 %s18, %s37
    %s68 = sor.u32 %s66, %s67
    %p69 = scmp.eq.s32.totalorder %s68, 0
    %s71 = sadd.s32 %s70, 1
    %s72 = scalar_select %p69, %s70, %s71
    %p75 = pneg %p69
    %p76 = scmp.eq.s32.totalorder %s11, 1
    %p77 = por %p75, %p76
    %p78 = scmp.ne.s32.totalorder %s70, %s73
    %p79 = scmp.eq.s32.totalorder %s11, 0
    %p80 = por %p78, %p79
    %p81 = scmp.ne.s32.totalorder %s70, %s73
    %p82 = scmp.eq.s32.totalorder %s16, 1
    %p83 = por %p81, %p82
    %p84 = scmp.ne.s32.totalorder %s73, %s74
    %p85 = scmp.eq.s32.totalorder %s16, 0
    %p86 = por %p84, %p85
    %p87 = scmp.ne.s32.totalorder %s73, %s74
    %p88 = scmp.eq.s32.totalorder %s17, 1
    %p89 = por %p87, %p88
    %p91 = scmp.ne.s32.totalorder %s74, %s90
    %p92 = scmp.eq.s32.totalorder %s17, 0
    %p93 = por %p91, %p92
    %s94 = ssub.s32 %s19, %s33
    %s95 = ssub.s32 %s18, %s37
    %s96 = sor.u32 %s94, %s95
    %p97 = scmp.eq.s32.totalorder %s96, 0
    %s99 = sadd.s32 %s98, 1
    %s100 = scalar_select %p97, %s98, %s99
    %p103 = pneg %p97
    %p104 = scmp.eq.s32.totalorder %s11, 1
    %p105 = por %p103, %p104
    %p106 = scmp.ne.s32.totalorder %s98, %s101
    %p107 = scmp.eq.s32.totalorder %s11, 0
    %p108 = por %p106, %p107
    %p109 = scmp.ne.s32.totalorder %s98, %s101
    %p110 = scmp.eq.s32.totalorder %s16, 1
    %p111 = por %p109, %p110
    %p112 = scmp.ne.s32.totalorder %s101, %s102
    %p113 = scmp.eq.s32.totalorder %s16, 0
    %p114 = por %p112, %p113
    %p115 = scmp.ne.s32.totalorder %s101, %s102
    %p116 = scmp.eq.s32.totalorder %s17, 1
    %p117 = por %p115, %p116
    %p119 = scmp.ne.s32.totalorder %s102, %s118
    %p120 = scmp.eq.s32.totalorder %s17, 0
    %p121 = por %p119, %p120
    %s122 = ssub.s32 %s18, %s37
    %p123 = scmp.eq.s32.totalorder %s122, 0
    %s125 = sadd.s32 %s124, 1
    %s126 = scalar_select %p123, %s124, %s125
    %p129 = pneg %p123
    %p130 = scmp.eq.s32.totalorder %s11, 1
    %p131 = por %p129, %p130
    %p132 = scmp.ne.s32.totalorder %s124, %s127
    %p133 = scmp.eq.s32.totalorder %s11, 0
    %p134 = por %p132, %p133
    %p135 = scmp.ne.s32.totalorder %s124, %s127
    %p136 = scmp.eq.s32.totalorder %s16, 1
    %p137 = por %p135, %p136
    %p138 = scmp.ne.s32.totalorder %s127, %s128
    %p139 = scmp.eq.s32.totalorder %s16, 0
    %p140 = por %p138, %p139
    %p141 = scmp.ne.s32.totalorder %s127, %s128
    %p142 = scmp.eq.s32.totalorder %s17, 1
    %p143 = por %p141, %p142
    %p145 = scmp.ne.s32.totalorder %s128, %s144
    %p146 = scmp.eq.s32.totalorder %s17, 0
    %p147 = por %p145, %p146
    %s148 = ssub.s32 %s18, %s37
    %p149 = scmp.eq.s32.totalorder %s148, 0
    %s151 = sadd.s32 %s150, 1
    %s152 = scalar_select %p149, %s150, %s151
    %p155 = pneg %p149
    %p156 = scmp.eq.s32.totalorder %s11, 1
    %p157 = por %p155, %p156
    %p158 = scmp.ne.s32.totalorder %s150, %s153
    %p159 = scmp.eq.s32.totalorder %s11, 0
    %p160 = por %p158, %p159
    %p161 = scmp.ne.s32.totalorder %s150, %s153
    %p162 = scmp.eq.s32.totalorder %s16, 1
    %p163 = por %p161, %p162
    %p164 = scmp.ne.s32.totalorder %s153, %s154
    %p165 = scmp.eq.s32.totalorder %s16, 0
    %p166 = por %p164, %p165
    %p167 = scmp.ne.s32.totalorder %s153, %s154
    %p168 = scmp.eq.s32.totalorder %s17, 1
    %p169 = por %p167, %p168
    %p171 = scmp.ne.s32.totalorder %s154, %s170
    %p172 = scmp.eq.s32.totalorder %s17, 0
    %p173 = por %p171, %p172
    %p174 = scmp.le.s32.totalorder 1, %s11
    %p175 = scmp.lt.s32.totalorder %s11, 3
    %p176 = pnand %p174, %p175
    %p177 = pneg %p176
    // Predicated region
    $region9: #{up_block_2d.2} parent=5 // pred_check
      _
    $region10: #{up_block_2d.2} parent=5 // pred_check_branch
      %179 = sbr.rel (%p176) target = $region12
    $region11: #{up_block_2d.2} parent=5 // pred_region
      %s180 = ssub.s32 %s11, 1
      // Predicated region
      $region13: #{up_block_2d.2} parent=11 // pred_check
        %p181 = pneg %p86
      $region14: #{up_block_2d.2} parent=11 // pred_check_branch
        %183 = sbr.rel (%p181) target = $region16
      $region15: #{up_block_2d.2} parent=11 // pred_region
        %s184 = smul.u32 16, %s23
        %p185 = scmp.lt.s32.totalorder %s184, 15
        %s186 = scalar_select %p185, %s184, 15
        %p187 = scmp.lt.s32.totalorder %s21, 0
        %s188 = scalar_select %p187, %s21, 0
        %s189 = sadd.s32 %s188, %s186
        %s190 = smul.addr %s189, 8
        %s191 = scalar_lea.vmem %s1, %s190
        %s192 = smul.u32 16, %s23
      $region16: #{up_block_2d.2} parent=11 // pred_fallthru
        _
    $region12: #{up_block_2d.2} parent=5 // pred_fallthru
      _
    %p193 = scmp.lt.s32.totalorder %s11, 2
    // Predicated region
    $region17: #{up_block_2d.2} parent=5 // pred_check
      %p194 = pneg %p193
    $region18: #{up_block_2d.2} parent=5 // pred_check_branch
      %196 = sbr.rel (%p194) target = $region20
    $region19: #{up_block_2d.2} parent=5 // pred_region
      // Predicated region
      $region21: #{up_block_2d.2} parent=19 // pred_check
        %p197 = pneg %p52
      $region22: #{up_block_2d.2} parent=19 // pred_check_branch
        %199 = sbr.rel (%p197) target = $region24
      $region23: #{up_block_2d.2} parent=19 // pred_region
        %p200 = scmp.lt.s32.totalorder %s19, 1
        %s201 = scalar_select %p200, %s19, 1
        %p202 = scmp.lt.s32.totalorder %s20, 0
        %s203 = scalar_select %p202, %s20, 0
        %s204 = smul.addr %s201, 33
        %s205 = sadd.s32 %s203, %s204
        %s206 = smul.addr %s205, 8
        %s207 = scalar_lea.vmem %s0, %s206
      $region24: #{up_block_2d.2} parent=19 // pred_fallthru
        _
    $region20: #{up_block_2d.2} parent=5 // pred_fallthru
      _
    %p208 = scmp.le.s32.totalorder 1, %s11
    %p209 = scmp.lt.s32.totalorder %s11, 3
    %p210 = pnand %p208, %p209
    %p211 = pneg %p210
    // Predicated region
    $region25: #{up_block_2d.2} parent=5 // pred_check
      _
    $region26: #{up_block_2d.2} parent=5 // pred_check_branch
      %213 = sbr.rel (%p210) target = $region28
    $region27: #{up_block_2d.2} parent=5 // pred_region
      %s214 = ssub.s32 %s11, 1
      %p215 = scmp.lt.s32.totalorder %s22, 1
      %s216 = scalar_select %p215, %s22, 1
      %p217 = scmp.lt.s32.totalorder %s23, 0
      %s218 = scalar_select %p217, %s23, 0
      %s219 = smul.addr %s216, 33
      %s220 = sadd.s32 %s218, %s219
      %s221 = smul.addr %s220, 8
      %s222 = scalar_lea.vmem %s0, %s221
      %p223 = pneg %p58
      %p224 = pneg %p55
      %s225 = smul.u32 16, %s23
      %p226 = scmp.lt.s32.totalorder %s225, 15
      %s227 = scalar_select %p226, %s225, 15
      %p228 = scmp.lt.s32.totalorder %s21, 0
      %s229 = scalar_select %p228, %s21, 0
      %s230 = sadd.s32 %s229, %s227
      %s231 = smul.addr %s230, 8
      %s232 = scalar_lea.vmem %s1, %s231
      %p233 = pneg %p86
      %p234 = pneg %p83
      %p235 = pneg %p114
      %p236 = pneg %p111
      %p237 = scmp.lt.s32.totalorder %s22, 1
      %s238 = scalar_select %p237, %s22, 1
      %p239 = scmp.lt.s32.totalorder %s21, 0
      %s240 = scalar_select %p239, %s21, 0
      %s241 = smul.addr %s238, 28
      %s242 = sadd.s32 %s240, %s241
      %s243 = smul.addr %s242, 8
      %s244 = scalar_lea.vmem %s2, %s243
      %p245 = pneg %p140
      %p246 = pneg %p137
      %p247 = scmp.lt.s32.totalorder %s21, 0
      %s248 = scalar_select %p247, %s21, 0
      %s249 = scalar_lea.vmem %s3, %s248
      %p250 = pneg %p166
      %p251 = pneg %p163
      %p252 = scmp.lt.s32.totalorder %s21, 0
      %s253 = scalar_select %p252, %s21, 0
      %s254 = scalar_lea.vmem %s4, %s253
      %p255 = scmp.lt.s32.totalorder %s22, 1
      %s256 = scalar_select %p255, %s22, 1
      %p257 = scmp.lt.s32.totalorder %s23, 0
      %s258 = scalar_select %p257, %s23, 0
      %s259 = smul.addr %s256, 33
      %s260 = sadd.s32 %s258, %s259
      %s261 = smul.addr %s260, 8
      %s262 = scalar_lea.vmem %s0, %s261
      %s263 = smul.u32 16, %s23
      %p264 = scmp.lt.s32.totalorder %s263, 15
      %s265 = scalar_select %p264, %s263, 15
      %p266 = scmp.lt.s32.totalorder %s21, 0
      %s267 = scalar_select %p266, %s21, 0
      %s268 = sadd.s32 %s267, %s265
      %s269 = smul.addr %s268, 8
      %s270 = scalar_lea.vmem %s1, %s269
      %s271 = smul.u32 16, %s23
      %p272 = scmp.lt.s32.totalorder %s22, 1
      %s273 = scalar_select %p272, %s22, 1
      %p274 = scmp.lt.s32.totalorder %s21, 0
      %s275 = scalar_select %p274, %s21, 0
      %s276 = smul.addr %s273, 28
      %s277 = sadd.s32 %s275, %s276
      %s278 = smul.addr %s277, 8
      %s279 = scalar_lea.vmem %s2, %s278
      %p280 = scmp.lt.s32.totalorder %s21, 0
      %s281 = scalar_select %p280, %s21, 0
      %s282 = scalar_lea.vmem %s3, %s281
      %p283 = scmp.lt.s32.totalorder %s21, 0
      %s284 = scalar_select %p283, %s21, 0
      %s285 = scalar_lea.vmem %s4, %s284
      %p286 = scmp.eq.s32.totalorder %s23, 0
      // Predicated region
      $region29: #{up_block_2d.2} parent=27 // pred_check
        %p287 = pneg %p286
      $region30: #{up_block_2d.2} parent=27 // pred_check_branch
        %289 = sbr.rel (%p287) target = $region32
      $region31: #{up_block_2d.2} parent=27 // pred_region
        %290 = vst [vmem:[#allocation2] sm:$0xff] 0.0
        %291 = vst [vmem:[#allocation2 + $0x8] sm:$0xff] 0.0
        %292 = vst [vmem:[#allocation2 + $0x10] sm:$0xff] 0.0
        %293 = vst [vmem:[#allocation2 + $0x18] sm:$0xff] 0.0
        %294 = vst [vmem:[#allocation2 + $0x20] sm:$0xff] 0.0
        %295 = vst [vmem:[#allocation2 + $0x28] sm:$0xff] 0.0
        %296 = vst [vmem:[#allocation2 + $0x30] sm:$0xff] 0.0
        %297 = vst [vmem:[#allocation2 + $0x38] sm:$0xff] 0.0
        %298 = vst [vmem:[#allocation2 + $0x40] sm:$0xff] 0.0
        %299 = vst [vmem:[#allocation2 + $0x48] sm:$0xff] 0.0
        %300 = vst [vmem:[#allocation2 + $0x50] sm:$0xff] 0.0
        %301 = vst [vmem:[#allocation2 + $0x58] sm:$0xff] 0.0
        %302 = vst [vmem:[#allocation2 + $0x60] sm:$0xff] 0.0
        %303 = vst [vmem:[#allocation2 + $0x68] sm:$0xff] 0.0
        %304 = vst [vmem:[#allocation2 + $0x70] sm:$0xff] 0.0
        %305 = vst [vmem:[#allocation2 + $0x78] sm:$0xff] 0.0
        %306 = vst [vmem:[#allocation2 + $0x80] sm:$0xff] 0.0
        %307 = vst [vmem:[#allocation2 + $0x88] sm:$0xff] 0.0
        %308 = vst [vmem:[#allocation2 + $0x90] sm:$0xff] 0.0
        %309 = vst [vmem:[#allocation2 + $0x98] sm:$0xff] 0.0
        %310 = vst [vmem:[#allocation2 + $0xa0] sm:$0xff] 0.0
        %311 = vst [vmem:[#allocation2 + $0xa8] sm:$0xff] 0.0
        %312 = vst [vmem:[#allocation2 + $0xb0] sm:$0xff] 0.0
        %313 = vst [vmem:[#allocation2 + $0xb8] sm:$0xff] 0.0
        %314 = vst [vmem:[#allocation2 + $0xc0] sm:$0xff] 0.0
        %315 = vst [vmem:[#allocation2 + $0xc8] sm:$0xff] 0.0
        %316 = vst [vmem:[#allocation2 + $0xd0] sm:$0xff] 0.0
        %317 = vst [vmem:[#allocation2 + $0xd8] sm:$0xff] 0.0
      $region32: #{up_block_2d.2} parent=27 // pred_fallthru
        _
      %p318 = scmp.eq.s32.totalorder %s22, 0
      %p319 = pnand %p318, %p286
      %p320 = pneg %p319
      // Predicated region
      $region33: #{up_block_2d.2} parent=27 // pred_check
        _
      $region34: #{up_block_2d.2} parent=27 // pred_check_branch
        %322 = sbr.rel (%p319) target = $region36
      $region35: #{up_block_2d.2} parent=27 // pred_region
        %323 = vst [vmem:[%s282] sm:$0x1] 0.0
        %324 = vst [vmem:[%s285] sm:$0x1] 0.0
      $region36: #{up_block_2d.2} parent=27 // pred_fallthru
        _
      %v325 = vld [vmem:[%s262] sm:$0xff]
      %v326 = vld [vmem:[%s262 + $0x8] sm:$0xff]
      %v327 = vld [vmem:[%s262 + $0x10] sm:$0xff]
      %v328 = vld [vmem:[%s262 + $0x18] sm:$0xff]
      %v329 = vld [vmem:[%s262 + $0x20] sm:$0xff]
      %v330 = vld [vmem:[%s262 + $0x28] sm:$0xff]
      %v331 = vld [vmem:[%s262 + $0x30] sm:$0xff]
      %v332 = vld [vmem:[%s262 + $0x38] sm:$0xff]
      %v333 = vld [vmem:[%s262 + $0x40] sm:$0xff]
      %v334 = vld [vmem:[%s262 + $0x48] sm:$0xff]
      %v335 = vld [vmem:[%s262 + $0x50] sm:$0xff]
      %v336 = vld [vmem:[%s262 + $0x58] sm:$0xff]
      %v337 = vld [vmem:[%s262 + $0x60] sm:$0xff]
      %v338 = vld [vmem:[%s262 + $0x68] sm:$0xff]
      %v339 = vld [vmem:[%s262 + $0x70] sm:$0xff]
      %v340 = vld [vmem:[%s262 + $0x78] sm:$0xff]
      %v341 = vld [vmem:[%s262 + $0x80] sm:$0xff]
      %v342 = vld [vmem:[%s262 + $0x88] sm:$0xff]
      %v343 = vld [vmem:[%s262 + $0x90] sm:$0xff]
      %v344 = vld [vmem:[%s262 + $0x98] sm:$0xff]
      %v345 = vld [vmem:[%s262 + $0xa0] sm:$0xff]
      %v346 = vld [vmem:[%s262 + $0xa8] sm:$0xff]
      %v347 = vld [vmem:[%s262 + $0xb0] sm:$0xff]
      %v348 = vld [vmem:[%s262 + $0xb8] sm:$0xff]
      %v349 = vld [vmem:[%s262 + $0xc0] sm:$0xff]
      %v350 = vld [vmem:[%s262 + $0xc8] sm:$0xff]
      %v351 = vld [vmem:[%s262 + $0xd0] sm:$0xff]
      %v352 = vld [vmem:[%s262 + $0xd8] sm:$0xff]
      %v353 = vld [vmem:[#allocation2] sm:$0xff]
      %v354 = vld [vmem:[#allocation2 + $0x8] sm:$0xff]
      %v355 = vld [vmem:[#allocation2 + $0x10] sm:$0xff]
      %v356 = vld [vmem:[#allocation2 + $0x18] sm:$0xff]
      %v357 = vld [vmem:[#allocation2 + $0x20] sm:$0xff]
      %v358 = vld [vmem:[#allocation2 + $0x28] sm:$0xff]
      %v359 = vld [vmem:[#allocation2 + $0x30] sm:$0xff]
      %v360 = vld [vmem:[#allocation2 + $0x38] sm:$0xff]
      %v361 = vld [vmem:[#allocation2 + $0x40] sm:$0xff]
      %v362 = vld [vmem:[#allocation2 + $0x48] sm:$0xff]
      %v363 = vld [vmem:[#allocation2 + $0x50] sm:$0xff]
      %v364 = vld [vmem:[#allocation2 + $0x58] sm:$0xff]
      %v365 = vld [vmem:[#allocation2 + $0x60] sm:$0xff]
      %v366 = vld [vmem:[#allocation2 + $0x68] sm:$0xff]
      %v367 = vld [vmem:[#allocation2 + $0x70] sm:$0xff]
      %v368 = vld [vmem:[#allocation2 + $0x78] sm:$0xff]
      %v369 = vld [vmem:[#allocation2 + $0x80] sm:$0xff]
      %v370 = vld [vmem:[#allocation2 + $0x88] sm:$0xff]
      %v371 = vld [vmem:[#allocation2 + $0x90] sm:$0xff]
      %v372 = vld [vmem:[#allocation2 + $0x98] sm:$0xff]
      %v373 = vld [vmem:[#allocation2 + $0xa0] sm:$0xff]
      %v374 = vld [vmem:[#allocation2 + $0xa8] sm:$0xff]
      %v375 = vld [vmem:[#allocation2 + $0xb0] sm:$0xff]
      %v376 = vld [vmem:[#allocation2 + $0xb8] sm:$0xff]
      %v377 = vld [vmem:[#allocation2 + $0xc0] sm:$0xff]
      %v378 = vld [vmem:[#allocation2 + $0xc8] sm:$0xff]
      %v379 = vld [vmem:[#allocation2 + $0xd0] sm:$0xff]
      %v380 = vld [vmem:[#allocation2 + $0xd8] sm:$0xff]
      %v381 = vld [vmem:[%s270] sm:$0xff]
      %v382 = vld [vmem:[%s270 + $0x8] sm:$0xff]
      %v383 = vld [vmem:[%s270 + $0x10] sm:$0xff]
      %v384 = vld [vmem:[%s270 + $0x18] sm:$0xff]
      %v385 = vld [vmem:[%s270 + $0x20] sm:$0xff]
      %v386 = vld [vmem:[%s270 + $0x28] sm:$0xff]
      %v387 = vld [vmem:[%s270 + $0x30] sm:$0xff]
      %v388 = vld [vmem:[%s270 + $0x38] sm:$0xff]
      %v389 = vld [vmem:[%s270 + $0x40] sm:$0xff]
      %v390 = vld [vmem:[%s270 + $0x48] sm:$0xff]
      %v391 = vld [vmem:[%s270 + $0x50] sm:$0xff]
      %v392 = vld [vmem:[%s270 + $0x58] sm:$0xff]
      %v393 = vld [vmem:[%s270 + $0x60] sm:$0xff]
      %v394 = vld [vmem:[%s270 + $0x68] sm:$0xff]
      %v395 = vld [vmem:[%s270 + $0x70] sm:$0xff]
      %v396 = vld [vmem:[%s270 + $0x78] sm:$0xff]
      %397 = vmatprep.subr.mxu0 0.0
      %398 = vmatpush1.msra.mxu0 %v381
      %399 = vmatprep.subr.mxu0 0.0
      %400 = vmatpush1.msra.mxu0 %v382
      %401 = vmatprep.subr.mxu0 0.0
      %402 = vmatpush1.msra.mxu0 %v383
      %403 = vmatprep.subr.mxu0 0.0
      %404 = vmatpush1.msra.mxu0 %v384
      %405 = vmatprep.subr.mxu0 0.0
      %406 = vmatpush1.msra.mxu0 %v385
      %407 = vmatprep.subr.mxu0 0.0
      %408 = vmatpush1.msra.mxu0 %v386
      %409 = vmatprep.subr.mxu0 0.0
      %410 = vmatpush1.msra.mxu0 %v387
      %411 = vmatprep.subr.mxu0 0.0
      %412 = vmatpush1.msra.mxu0 %v388
      %413 = vmatprep.subr.mxu0 0.0
      %414 = vmatpush1.msra.mxu0 %v389
      %415 = vmatprep.subr.mxu0 0.0
      %416 = vmatpush1.msra.mxu0 %v390
      %417 = vmatprep.subr.mxu0 0.0
      %418 = vmatpush1.msra.mxu0 %v391
      %419 = vmatprep.subr.mxu0 0.0
      %420 = vmatpush1.msra.mxu0 %v392
      %421 = vmatprep.subr.mxu0 0.0
      %422 = vmatpush1.msra.mxu0 %v393
      %423 = vmatprep.subr.mxu0 0.0
      %424 = vmatpush1.msra.mxu0 %v394
      %425 = vmatprep.subr.mxu0 0.0
      %426 = vmatpush1.msra.mxu0 %v395
      %427 = vmatprep.subr.mxu0 0.0
      %428 = vmatpush1.msra.mxu0 %v396
      %429 = vmatprep.subr.mxu0 0.0
      %430 = vmatpush1.msra.mxu0 0.0
      %431 = vmatprep.subr.mxu0 0.0
      %432 = vmatpush1.msra.mxu0 0.0
      %433 = vmatprep.subr.mxu0 0.0
      %434 = vmatpush1.msra.mxu0 0.0
      %435 = vmatprep.subr.mxu0 0.0
      %436 = vmatpush1.msra.mxu0 0.0
      %437 = vmatprep.subr.mxu0 0.0
      %438 = vmatpush1.msra.mxu0 0.0
      %439 = vmatprep.subr.mxu0 0.0
      %440 = vmatpush1.msra.mxu0 0.0
      %441 = vmatprep.subr.mxu0 0.0
      %442 = vmatpush1.msra.mxu0 0.0
      %443 = vmatprep.subr.mxu0 0.0
      %444 = vmatpush1.msra.mxu0 0.0
      %445 = vmatprep.subr.mxu0 0.0
      %446 = vmatpush1.msra.mxu0 0.0
      %447 = vmatprep.subr.mxu0 0.0
      %448 = vmatpush1.msra.mxu0 0.0
      %449 = vmatprep.subr.mxu0 0.0
      %450 = vmatpush1.msra.mxu0 0.0
      %451 = vmatprep.subr.mxu0 0.0
      %452 = vmatpush1.msra.mxu0 0.0
      %453 = vmatprep.subr.mxu0 0.0
      %454 = vmatpush1.msra.mxu0 0.0
      %455 = vmatprep.subr.mxu0 0.0
      %456 = vmatpush1.msra.mxu0 0.0
      %457 = vmatprep.subr.mxu0 0.0
      %458 = vmatpush1.msra.mxu0 0.0
      %459 = vmatprep.subr.mxu0 0.0
      %460 = vmatpush1.msra.mxu0 0.0
      %461 = vmatprep.mubr.f32.mxu0 0.0
      %462 = vmatmul.mubr.f32.gmra.mrb[0].mxu0 %v325
      %v463 = vpop.f32.mrb[0].mxu0
      %v464 = vadd.f32 0.0, %v463
      %v465 = vpop.f32.mrb[0].mxu0
      %466 = vmatprep.mubr.f32.mxu0 0.0
      %467 = vmatmul.mubr.f32.gmra.mrb[0].mxu0 %v326
      %v468 = vpop.f32.mrb[0].mxu0
      %v469 = vadd.f32 0.0, %v468
      %v470 = vpop.f32.mrb[0].mxu0
      %471 = vmatprep.mubr.f32.mxu0 0.0
      %472 = vmatmul.mubr.f32.gmra.mrb[0].mxu0 %v327
      %v473 = vpop.f32.mrb[0].mxu0
      %v474 = vadd.f32 0.0, %v473
      %v475 = vpop.f32.mrb[0].mxu0
      %476 = vmatprep.mubr.f32.mxu0 0.0
      %477 = vmatmul.mubr.f32.gmra.mrb[0].mxu0 %v328
      %v478 = vpop.f32.mrb[0].mxu0
      %v479 = vadd.f32 0.0, %v478
      %v480 = vpop.f32.mrb[0].mxu0
      %481 = vmatprep.mubr.f32.mxu0 0.0
      %482 = vmatmul.mubr.f32.gmra.mrb[0].mxu0 %v329
      %v483 = vpop.f32.mrb[0].mxu0
      %v484 = vadd.f32 0.0, %v483
      %v485 = vpop.f32.mrb[0].mxu0
      %486 = vmatprep.mubr.f32.mxu0 0.0
      %487 = vmatmul.mubr.f32.gmra.mrb[0].mxu0 %v330
      %v488 = vpop.f32.mrb[0].mxu0
      %v489 = vadd.f32 0.0, %v488
      %v490 = vpop.f32.mrb[0].mxu0
      %491 = vmatprep.mubr.f32.mxu0 0.0
      %492 = vmatmul.mubr.f32.gmra.mrb[0].mxu0 %v331
      %v493 = vpop.f32.mrb[0].mxu0
      %v494 = vadd.f32 0.0, %v493
      %v495 = vpop.f32.mrb[0].mxu0
      %496 = vmatprep.mubr.f32.mxu0 0.0
      %497 = vmatmul.mubr.f32.gmra.mrb[0].mxu0 %v332
      %v498 = vpop.f32.mrb[0].mxu0
      %v499 = vadd.f32 0.0, %v498
      %v500 = vpop.f32.mrb[0].mxu0
      %501 = vmatprep.mubr.f32.mxu0 0.0
      %502 = vmatmul.mubr.f32.gmra.mrb[0].mxu0 %v333
      %v503 = vpop.f32.mrb[0].mxu0
      %v504 = vadd.f32 0.0, %v503
      %v505 = vpop.f32.mrb[0].mxu0
      %506 = vmatprep.mubr.f32.mxu0 0.0
      %507 = vmatmul.mubr.f32.gmra.mrb[0].mxu0 %v334
      %v508 = vpop.f32.mrb[0].mxu0
      %v509 = vadd.f32 0.0, %v508
      %v510 = vpop.f32.mrb[0].mxu0
      %511 = vmatprep.mubr.f32.mxu0 0.0
      %512 = vmatmul.mubr.f32.gmra.mrb[0].mxu0 %v335
      %v513 = vpop.f32.mrb[0].mxu0
      %v514 = vadd.f32 0.0, %v513
      %v515 = vpop.f32.mrb[0].mxu0
      %516 = vmatprep.mubr.f32.mxu0 0.0
      %517 = vmatmul.mubr.f32.gmra.mrb[0].mxu0 %v336
      %v518 = vpop.f32.mrb[0].mxu0
      %v519 = vadd.f32 0.0, %v518
      %v520 = vpop.f32.mrb[0].mxu0
      %521 = vmatprep.mubr.f32.mxu0 0.0
      %522 = vmatmul.mubr.f32.gmra.mrb[0].mxu0 %v337
      %v523 = vpop.f32.mrb[0].mxu0
      %v524 = vadd.f32 0.0, %v523
      %v525 = vpop.f32.mrb[0].mxu0
      %526 = vmatprep.mubr.f32.mxu0 0.0
      %527 = vmatmul.mubr.f32.gmra.mrb[0].mxu0 %v338
      %v528 = vpop.f32.mrb[0].mxu0
      %v529 = vadd.f32 0.0, %v528
      %v530 = vpop.f32.mrb[0].mxu0
      %531 = vmatprep.mubr.f32.mxu0 0.0
      %532 = vmatmul.mubr.f32.gmra.mrb[0].mxu0 %v339
      %v533 = vpop.f32.mrb[0].mxu0
      %v534 = vadd.f32 0.0, %v533
      %v535 = vpop.f32.mrb[0].mxu0
      %536 = vmatprep.mubr.f32.mxu0 0.0
      %537 = vmatmul.mubr.f32.gmra.mrb[0].mxu0 %v340
      %v538 = vpop.f32.mrb[0].mxu0
      %v539 = vadd.f32 0.0, %v538
      %v540 = vpop.f32.mrb[0].mxu0
      %541 = vmatprep.mubr.f32.mxu0 0.0
      %542 = vmatmul.mubr.f32.gmra.mrb[0].mxu0 %v341
      %v543 = vpop.f32.mrb[0].mxu0
      %v544 = vadd.f32 0.0, %v543
      %v545 = vpop.f32.mrb[0].mxu0
      %546 = vmatprep.mubr.f32.mxu0 0.0
      %547 = vmatmul.mubr.f32.gmra.mrb[0].mxu0 %v342
      %v548 = vpop.f32.mrb[0].mxu0
      %v549 = vadd.f32 0.0, %v548
      %v550 = vpop.f32.mrb[0].mxu0
      %551 = vmatprep.mubr.f32.mxu0 0.0
      %552 = vmatmul.mubr.f32.gmra.mrb[0].mxu0 %v343
      %v553 = vpop.f32.mrb[0].mxu0
      %v554 = vadd.f32 0.0, %v553
      %v555 = vpop.f32.mrb[0].mxu0
      %556 = vmatprep.mubr.f32.mxu0 0.0
      %557 = vmatmul.mubr.f32.gmra.mrb[0].mxu0 %v344
      %v558 = vpop.f32.mrb[0].mxu0
      %v559 = vadd.f32 0.0, %v558
      %v560 = vpop.f32.mrb[0].mxu0
      %561 = vmatprep.mubr.f32.mxu0 0.0
      %562 = vmatmul.mubr.f32.gmra.mrb[0].mxu0 %v345
      %v563 = vpop.f32.mrb[0].mxu0
      %v564 = vadd.f32 0.0, %v563
      %v565 = vpop.f32.mrb[0].mxu0
      %566 = vmatprep.mubr.f32.mxu0 0.0
      %567 = vmatmul.mubr.f32.gmra.mrb[0].mxu0 %v346
      %v568 = vpop.f32.mrb[0].mxu0
      %v569 = vadd.f32 0.0, %v568
      %v570 = vpop.f32.mrb[0].mxu0
      %571 = vmatprep.mubr.f32.mxu0 0.0
      %572 = vmatmul.mubr.f32.gmra.mrb[0].mxu0 %v347
      %v573 = vpop.f32.mrb[0].mxu0
      %v574 = vadd.f32 0.0, %v573
      %v575 = vpop.f32.mrb[0].mxu0
      %576 = vmatprep.mubr.f32.mxu0 0.0
      %577 = vmatmul.mubr.f32.gmra.mrb[0].mxu0 %v348
      %v578 = vpop.f32.mrb[0].mxu0
      %v579 = vadd.f32 0.0, %v578
      %v580 = vpop.f32.mrb[0].mxu0
      %581 = vmatprep.mubr.f32.mxu0 0.0
      %582 = vmatmul.mubr.f32.gmra.mrb[0].mxu0 %v349
      %v583 = vpop.f32.mrb[0].mxu0
      %v584 = vadd.f32 0.0, %v583
      %v585 = vpop.f32.mrb[0].mxu0
      %586 = vmatprep.mubr.f32.mxu0 0.0
      %587 = vmatmul.mubr.f32.gmra.mrb[0].mxu0 %v350
      %v588 = vpop.f32.mrb[0].mxu0
      %v589 = vadd.f32 0.0, %v588
      %v590 = vpop.f32.mrb[0].mxu0
      %591 = vmatprep.mubr.f32.mxu0 0.0
      %592 = vmatmul.mubr.f32.gmra.mrb[0].mxu0 %v351
      %v593 = vpop.f32.mrb[0].mxu0
      %v594 = vadd.f32 0.0, %v593
      %v595 = vpop.f32.mrb[0].mxu0
      %596 = vmatprep.mubr.f32.mxu0 0.0
      %597 = vmatmul.mubr.f32.gmra.mrb[0].mxu0 %v352
      %v598 = vpop.f32.mrb[0].mxu0
      %v599 = vadd.f32 0.0, %v598
      %v600 = vpop.f32.mrb[0].mxu0
      %601 = vdwg.mxu0
      %v602 = vadd.f32 %v353, %v464
      %v603 = vadd.f32 %v354, %v469
      %v604 = vadd.f32 %v355, %v474
      %v605 = vadd.f32 %v356, %v479
      %v606 = vadd.f32 %v357, %v484
      %v607 = vadd.f32 %v358, %v489
      %v608 = vadd.f32 %v359, %v494
      %v609 = vadd.f32 %v360, %v499
      %v610 = vadd.f32 %v361, %v504
      %v611 = vadd.f32 %v362, %v509
      %v612 = vadd.f32 %v363, %v514
      %v613 = vadd.f32 %v364, %v519
      %v614 = vadd.f32 %v365, %v524
      %v615 = vadd.f32 %v366, %v529
      %v616 = vadd.f32 %v367, %v534
      %v617 = vadd.f32 %v368, %v539
      %v618 = vadd.f32 %v369, %v544
      %v619 = vadd.f32 %v370, %v549
      %v620 = vadd.f32 %v371, %v554
      %v621 = vadd.f32 %v372, %v559
      %v622 = vadd.f32 %v373, %v564
      %v623 = vadd.f32 %v374, %v569
      %v624 = vadd.f32 %v375, %v574
      %v625 = vadd.f32 %v376, %v579
      %v626 = vadd.f32 %v377, %v584
      %v627 = vadd.f32 %v378, %v589
      %v628 = vadd.f32 %v379, %v594
      %v629 = vadd.f32 %v380, %v599
      %630 = vst [vmem:[#allocation2] sm:$0xff] %v602
      %631 = vst [vmem:[#allocation2 + $0x8] sm:$0xff] %v603
      %632 = vst [vmem:[#allocation2 + $0x10] sm:$0xff] %v604
      %633 = vst [vmem:[#allocation2 + $0x18] sm:$0xff] %v605
      %634 = vst [vmem:[#allocation2 + $0x20] sm:$0xff] %v606
      %635 = vst [vmem:[#allocation2 + $0x28] sm:$0xff] %v607
      %636 = vst [vmem:[#allocation2 + $0x30] sm:$0xff] %v608
      %637 = vst [vmem:[#allocation2 + $0x38] sm:$0xff] %v609
      %638 = vst [vmem:[#allocation2 + $0x40] sm:$0xff] %v610
      %639 = vst [vmem:[#allocation2 + $0x48] sm:$0xff] %v611
      %640 = vst [vmem:[#allocation2 + $0x50] sm:$0xff] %v612
      %641 = vst [vmem:[#allocation2 + $0x58] sm:$0xff] %v613
      %642 = vst [vmem:[#allocation2 + $0x60] sm:$0xff] %v614
      %643 = vst [vmem:[#allocation2 + $0x68] sm:$0xff] %v615
      %644 = vst [vmem:[#allocation2 + $0x70] sm:$0xff] %v616
      %645 = vst [vmem:[#allocation2 + $0x78] sm:$0xff] %v617
      %646 = vst [vmem:[#allocation2 + $0x80] sm:$0xff] %v618
      %647 = vst [vmem:[#allocation2 + $0x88] sm:$0xff] %v619
      %648 = vst [vmem:[#allocation2 + $0x90] sm:$0xff] %v620
      %649 = vst [vmem:[#allocation2 + $0x98] sm:$0xff] %v621
      %650 = vst [vmem:[#allocation2 + $0xa0] sm:$0xff] %v622
      %651 = vst [vmem:[#allocation2 + $0xa8] sm:$0xff] %v623
      %652 = vst [vmem:[#allocation2 + $0xb0] sm:$0xff] %v624
      %653 = vst [vmem:[#allocation2 + $0xb8] sm:$0xff] %v625
      %654 = vst [vmem:[#allocation2 + $0xc0] sm:$0xff] %v626
      %655 = vst [vmem:[#allocation2 + $0xc8] sm:$0xff] %v627
      %656 = vst [vmem:[#allocation2 + $0xd0] sm:$0xff] %v628
      %657 = vst [vmem:[#allocation2 + $0xd8] sm:$0xff] %v629
      %v658 = vld [vmem:[%s262 + $0x1] sm:$0xff]
      %v659 = vld [vmem:[%s262 + $0x9] sm:$0xff]
      %v660 = vld [vmem:[%s262 + $0x11] sm:$0xff]
      %v661 = vld [vmem:[%s262 + $0x19] sm:$0xff]
      %v662 = vld [vmem:[%s262 + $0x21] sm:$0xff]
      %v663 = vld [vmem:[%s262 + $0x29] sm:$0xff]
      %v664 = vld [vmem:[%s262 + $0x31] sm:$0xff]
      %v665 = vld [vmem:[%s262 + $0x39] sm:$0xff]
      %v666 = vld [vmem:[%s262 + $0x41] sm:$0xff]
      %v667 = vld [vmem:[%s262 + $0x49] sm:$0xff]
      %v668 = vld [vmem:[%s262 + $0x51] sm:$0xff]
      %v669 = vld [vmem:[%s262 + $0x59] sm:$0xff]
      %v670 = vld [vmem:[%s262 + $0x61] sm:$0xff]
      %v671 = vld [vmem:[%s262 + $0x69] sm:$0xff]
      %v672 = vld [vmem:[%s262 + $0x71] sm:$0xff]
      %v673 = vld [vmem:[%s262 + $0x79] sm:$0xff]
      %v674 = vld [vmem:[%s262 + $0x81] sm:$0xff]
      %v675 = vld [vmem:[%s262 + $0x89] sm:$0xff]
      %v676 = vld [vmem:[%s262 + $0x91] sm:$0xff]
      %v677 = vld [vmem:[%s262 + $0x99] sm:$0xff]
      %v678 = vld [vmem:[%s262 + $0xa1] sm:$0xff]
      %v679 = vld [vmem:[%s262 + $0xa9] sm:$0xff]
      %v680 = vld [vmem:[%s262 + $0xb1] sm:$0xff]
      %v681 = vld [vmem:[%s262 + $0xb9] sm:$0xff]
      %v682 = vld [vmem:[%s262 + $0xc1] sm:$0xff]
      %v683 = vld [vmem:[%s262 + $0xc9] sm:$0xff]
      %v684 = vld [vmem:[%s262 + $0xd1] sm:$0xff]
      %v685 = vld [vmem:[%s262 + $0xd9] sm:$0xff]
      %v686 = vld [vmem:[#allocation2] sm:$0xff]
      %v687 = vld [vmem:[#allocation2 + $0x8] sm:$0xff]
      %v688 = vld [vmem:[#allocation2 + $0x10] sm:$0xff]
      %v689 = vld [vmem:[#allocation2 + $0x18] sm:$0xff]
      %v690 = vld [vmem:[#allocation2 + $0x20] sm:$0xff]
      %v691 = vld [vmem:[#allocation2 + $0x28] sm:$0xff]
      %v692 = vld [vmem:[#allocation2 + $0x30] sm:$0xff]
      %v693 = vld [vmem:[#allocation2 + $0x38] sm:$0xff]
      %v694 = vld [vmem:[#allocation2 + $0x40] sm:$0xff]
      %v695 = vld [vmem:[#allocation2 + $0x48] sm:$0xff]
      %v696 = vld [vmem:[#allocation2 + $0x50] sm:$0xff]
      %v697 = vld [vmem:[#allocation2 + $0x58] sm:$0xff]
      %v698 = vld [vmem:[#allocation2 + $0x60] sm:$0xff]
      %v699 = vld [vmem:[#allocation2 + $0x68] sm:$0xff]
      %v700 = vld [vmem:[#allocation2 + $0x70] sm:$0xff]
      %v701 = vld [vmem:[#allocation2 + $0x78] sm:$0xff]
      %v702 = vld [vmem:[#allocation2 + $0x80] sm:$0xff]
      %v703 = vld [vmem:[#allocation2 + $0x88] sm:$0xff]
      %v704 = vld [vmem:[#allocation2 + $0x90] sm:$0xff]
      %v705 = vld [vmem:[#allocation2 + $0x98] sm:$0xff]
      %v706 = vld [vmem:[#allocation2 + $0xa0] sm:$0xff]
      %v707 = vld [vmem:[#allocation2 + $0xa8] sm:$0xff]
      %v708 = vld [vmem:[#allocation2 + $0xb0] sm:$0xff]
      %v709 = vld [vmem:[#allocation2 + $0xb8] sm:$0xff]
      %v710 = vld [vmem:[#allocation2 + $0xc0] sm:$0xff]
      %v711 = vld [vmem:[#allocation2 + $0xc8] sm:$0xff]
      %v712 = vld [vmem:[#allocation2 + $0xd0] sm:$0xff]
      %v713 = vld [vmem:[#allocation2 + $0xd8] sm:$0xff]
      %s714 = scalar_lea.vmem %s270, 128
      %v715 = vld [vmem:[%s714] sm:$0xff]
      %v716 = vld [vmem:[%s714 + $0x8] sm:$0xff]
      %v717 = vld [vmem:[%s714 + $0x10] sm:$0xff]
      %v718 = vld [vmem:[%s714 + $0x18] sm:$0xff]
      %v719 = vld [vmem:[%s714 + $0x20] sm:$0xff]
      %v720 = vld [vmem:[%s714 + $0x28] sm:$0xff]
      %v721 = vld [vmem:[%s714 + $0x30] sm:$0xff]
      %v722 = vld [vmem:[%s714 + $0x38] sm:$0xff]
      %v723 = vld [vmem:[%s714 + $0x40] sm:$0xff]
      %v724 = vld [vmem:[%s714 + $0x48] sm:$0xff]
      %v725 = vld [vmem:[%s714 + $0x50] sm:$0xff]
      %v726 = vld [vmem:[%s714 + $0x58] sm:$0xff]
      %v727 = vld [vmem:[%s714 + $0x60] sm:$0xff]
      %v728 = vld [vmem:[%s714 + $0x68] sm:$0xff]
      %v729 = vld [vmem:[%s714 + $0x70] sm:$0xff]
      %v730 = vld [vmem:[%s714 + $0x78] sm:$0xff]
      %731 = vmatprep.subr.mxu0 0.0
      %732 = vmatpush1.msra.mxu0 %v715
      %733 = vmatprep.subr.mxu0 0.0
      %734 = vmatpush1.msra.mxu0 %v716
      %735 = vmatprep.subr.mxu0 0.0
      %736 = vmatpush1.msra.mxu0 %v717
      %737 = vmatprep.subr.mxu0 0.0
      %738 = vmatpush1.msra.mxu0 %v718
      %739 = vmatprep.subr.mxu0 0.0
      %740 = vmatpush1.msra.mxu0 %v719
      %741 = vmatprep.subr.mxu0 0.0
      %742 = vmatpush1.msra.mxu0 %v720
      %743 = vmatprep.subr.mxu0 0.0
      %744 = vmatpush1.msra.mxu0 %v721
      %745 = vmatprep.subr.mxu0 0.0
      %746 = vmatpush1.msra.mxu0 %v722
      %747 = vmatprep.subr.mxu0 0.0
      %748 = vmatpush1.msra.mxu0 %v723
      %749 = vmatprep.subr.mxu0 0.0
      %750 = vmatpush1.msra.mxu0 %v724
      %751 = vmatprep.subr.mxu0 0.0
      %752 = vmatpush1.msra.mxu0 %v725
      %753 = vmatprep.subr.mxu0 0.0
      %754 = vmatpush1.msra.mxu0 %v726
      %755 = vmatprep.subr.mxu0 0.0
      %756 = vmatpush1.msra.mxu0 %v727
      %757 = vmatprep.subr.mxu0 0.0
      %758 = vmatpush1.msra.mxu0 %v728
      %759 = vmatprep.subr.mxu0 0.0
      %760 = vmatpush1.msra.mxu0 %v729
      %761 = vmatprep.subr.mxu0 0.0
      %762 = vmatpush1.msra.mxu0 %v730
      %763 = vmatprep.subr.mxu0 0.0
      %764 = vmatpush1.msra.mxu0 0.0
      %765 = vmatprep.subr.mxu0 0.0
      %766 = vmatpush1.msra.mxu0 0.0
      %767 = vmatprep.subr.mxu0 0.0
      %768 = vmatpush1.msra.mxu0 0.0
      %769 = vmatprep.subr.mxu0 0.0
      %770 = vmatpush1.msra.mxu0 0.0
      %771 = vmatprep.subr.mxu0 0.0
      %772 = vmatpush1.msra.mxu0 0.0
      %773 = vmatprep.subr.mxu0 0.0
      %774 = vmatpush1.msra.mxu0 0.0
      %775 = vmatprep.subr.mxu0 0.0
      %776 = vmatpush1.msra.mxu0 0.0
      %777 = vmatprep.subr.mxu0 0.0
      %778 = vmatpush1.msra.mxu0 0.0
      %779 = vmatprep.subr.mxu0 0.0
      %780 = vmatpush1.msra.mxu0 0.0
      %781 = vmatprep.subr.mxu0 0.0
      %782 = vmatpush1.msra.mxu0 0.0
      %783 = vmatprep.subr.mxu0 0.0
      %784 = vmatpush1.msra.mxu0 0.0
      %785 = vmatprep.subr.mxu0 0.0
      %786 = vmatpush1.msra.mxu0 0.0
      %787 = vmatprep.subr.mxu0 0.0
      %788 = vmatpush1.msra.mxu0 0.0
      %789 = vmatprep.subr.mxu0 0.0
      %790 = vmatpush1.msra.mxu0 0.0
      %791 = vmatprep.subr.mxu0 0.0
      %792 = vmatpush1.msra.mxu0 0.0
      %793 = vmatprep.subr.mxu0 0.0
      %794 = vmatpush1.msra.mxu0 0.0
      %795 = vmatprep.mubr.f32.mxu0 0.0
      %796 = vmatmul.mubr.f32.gmra.mrb[0].mxu0 %v658
      %v797 = vpop.f32.mrb[0].mxu0
      %v798 = vadd.f32 0.0, %v797
      %v799 = vpop.f32.mrb[0].mxu0
      %800 = vmatprep.mubr.f32.mxu0 0.0
      %801 = vmatmul.mubr.f32.gmra.mrb[0].mxu0 %v659
      %v802 = vpop.f32.mrb[0].mxu0
      %v803 = vadd.f32 0.0, %v802
      %v804 = vpop.f32.mrb[0].mxu0
      %805 = vmatprep.mubr.f32.mxu0 0.0
      %806 = vmatmul.mubr.f32.gmra.mrb[0].mxu0 %v660
      %v807 = vpop.f32.mrb[0].mxu0
      %v808 = vadd.f32 0.0, %v807
      %v809 = vpop.f32.mrb[0].mxu0
      %810 = vmatprep.mubr.f32.mxu0 0.0
      %811 = vmatmul.mubr.f32.gmra.mrb[0].mxu0 %v661
      %v812 = vpop.f32.mrb[0].mxu0
      %v813 = vadd.f32 0.0, %v812
      %v814 = vpop.f32.mrb[0].mxu0
      %815 = vmatprep.mubr.f32.mxu0 0.0
      %816 = vmatmul.mubr.f32.gmra.mrb[0].mxu0 %v662
      %v817 = vpop.f32.mrb[0].mxu0
      %v818 = vadd.f32 0.0, %v817
      %v819 = vpop.f32.mrb[0].mxu0
      %820 = vmatprep.mubr.f32.mxu0 0.0
      %821 = vmatmul.mubr.f32.gmra.mrb[0].mxu0 %v663
      %v822 = vpop.f32.mrb[0].mxu0
      %v823 = vadd.f32 0.0, %v822
      %v824 = vpop.f32.mrb[0].mxu0
      %825 = vmatprep.mubr.f32.mxu0 0.0
      %826 = vmatmul.mubr.f32.gmra.mrb[0].mxu0 %v664
      %v827 = vpop.f32.mrb[0].mxu0
      %v828 = vadd.f32 0.0, %v827
      %v829 = vpop.f32.mrb[0].mxu0
      %830 = vmatprep.mubr.f32.mxu0 0.0
      %831 = vmatmul.mubr.f32.gmra.mrb[0].mxu0 %v665
      %v832 = vpop.f32.mrb[0].mxu0
      %v833 = vadd.f32 0.0, %v832
      %v834 = vpop.f32.mrb[0].mxu0
      %835 = vmatprep.mubr.f32.mxu0 0.0
      %836 = vmatmul.mubr.f32.gmra.mrb[0].mxu0 %v666
      %v837 = vpop.f32.mrb[0].mxu0
      %v838 = vadd.f32 0.0, %v837
      %v839 = vpop.f32.mrb[0].mxu0
      %840 = vmatprep.mubr.f32.mxu0 0.0
      %841 = vmatmul.mubr.f32.gmra.mrb[0].mxu0 %v667
      %v842 = vpop.f32.mrb[0].mxu0
      %v843 = vadd.f32 0.0, %v842
      %v844 = vpop.f32.mrb[0].mxu0
      %845 = vmatprep.mubr.f32.mxu0 0.0
      %846 = vmatmul.mubr.f32.gmra.mrb[0].mxu0 %v668
      %v847 = vpop.f32.mrb[0].mxu0
      %v848 = vadd.f32 0.0, %v847
      %v849 = vpop.f32.mrb[0].mxu0
      %850 = vmatprep.mubr.f32.mxu0 0.0
      %851 = vmatmul.mubr.f32.gmra.mrb[0].mxu0 %v669
      %v852 = vpop.f32.mrb[0].mxu0
      %v853 = vadd.f32 0.0, %v852
      %v854 = vpop.f32.mrb[0].mxu0
      %855 = vmatprep.mubr.f32.mxu0 0.0
      %856 = vmatmul.mubr.f32.gmra.mrb[0].mxu0 %v670
      %v857 = vpop.f32.mrb[0].mxu0
      %v858 = vadd.f32 0.0, %v857
      %v859 = vpop.f32.mrb[0].mxu0
      %860 = vmatprep.mubr.f32.mxu0 0.0
      %861 = vmatmul.mubr.f32.gmra.mrb[0].mxu0 %v671
      %v862 = vpop.f32.mrb[0].mxu0
      %v863 = vadd.f32 0.0, %v862
      %v864 = vpop.f32.mrb[0].mxu0
      %865 = vmatprep.mubr.f32.mxu0 0.0
      %866 = vmatmul.mubr.f32.gmra.mrb[0].mxu0 %v672
      %v867 = vpop.f32.mrb[0].mxu0
      %v868 = vadd.f32 0.0, %v867
      %v869 = vpop.f32.mrb[0].mxu0
      %870 = vmatprep.mubr.f32.mxu0 0.0
      %871 = vmatmul.mubr.f32.gmra.mrb[0].mxu0 %v673
      %v872 = vpop.f32.mrb[0].mxu0
      %v873 = vadd.f32 0.0, %v872
      %v874 = vpop.f32.mrb[0].mxu0
      %875 = vmatprep.mubr.f32.mxu0 0.0
      %876 = vmatmul.mubr.f32.gmra.mrb[0].mxu0 %v674
      %v877 = vpop.f32.mrb[0].mxu0
      %v878 = vadd.f32 0.0, %v877
      %v879 = vpop.f32.mrb[0].mxu0
      %880 = vmatprep.mubr.f32.mxu0 0.0
      %881 = vmatmul.mubr.f32.gmra.mrb[0].mxu0 %v675
      %v882 = vpop.f32.mrb[0].mxu0
      %v883 = vadd.f32 0.0, %v882
      %v884 = vpop.f32.mrb[0].mxu0
      %885 = vmatprep.mubr.f32.mxu0 0.0
      %886 = vmatmul.mubr.f32.gmra.mrb[0].mxu0 %v676
      %v887 = vpop.f32.mrb[0].mxu0
      %v888 = vadd.f32 0.0, %v887
      %v889 = vpop.f32.mrb[0].mxu0
      %890 = vmatprep.mubr.f32.mxu0 0.0
      %891 = vmatmul.mubr.f32.gmra.mrb[0].mxu0 %v677
      %v892 = vpop.f32.mrb[0].mxu0
      %v893 = vadd.f32 0.0, %v892
      %v894 = vpop.f32.mrb[0].mxu0
      %895 = vmatprep.mubr.f32.mxu0 0.0
      %896 = vmatmul.mubr.f32.gmra.mrb[0].mxu0 %v678
      %v897 = vpop.f32.mrb[0].mxu0
      %v898 = vadd.f32 0.0, %v897
      %v899 = vpop.f32.mrb[0].mxu0
      %900 = vmatprep.mubr.f32.mxu0 0.0
      %901 = vmatmul.mubr.f32.gmra.mrb[0].mxu0 %v679
      %v902 = vpop.f32.mrb[0].mxu0
      %v903 = vadd.f32 0.0, %v902
      %v904 = vpop.f32.mrb[0].mxu0
      %905 = vmatprep.mubr.f32.mxu0 0.0
      %906 = vmatmul.mubr.f32.gmra.mrb[0].mxu0 %v680
      %v907 = vpop.f32.mrb[0].mxu0
      %v908 = vadd.f32 0.0, %v907
      %v909 = vpop.f32.mrb[0].mxu0
      %910 = vmatprep.mubr.f32.mxu0 0.0
      %911 = vmatmul.mubr.f32.gmra.mrb[0].mxu0 %v681
      %v912 = vpop.f32.mrb[0].mxu0
      %v913 = vadd.f32 0.0, %v912
      %v914 = vpop.f32.mrb[0].mxu0
      %915 = vmatprep.mubr.f32.mxu0 0.0
      %916 = vmatmul.mubr.f32.gmra.mrb[0].mxu0 %v682
      %v917 = vpop.f32.mrb[0].mxu0
      %v918 = vadd.f32 0.0, %v917
      %v919 = vpop.f32.mrb[0].mxu0
      %920 = vmatprep.mubr.f32.mxu0 0.0
      %921 = vmatmul.mubr.f32.gmra.mrb[0].mxu0 %v683
      %v922 = vpop.f32.mrb[0].mxu0
      %v923 = vadd.f32 0.0, %v922
      %v924 = vpop.f32.mrb[0].mxu0
      %925 = vmatprep.mubr.f32.mxu0 0.0
      %926 = vmatmul.mubr.f32.gmra.mrb[0].mxu0 %v684
      %v927 = vpop.f32.mrb[0].mxu0
      %v928 = vadd.f32 0.0, %v927
      %v929 = vpop.f32.mrb[0].mxu0
      %930 = vmatprep.mubr.f32.mxu0 0.0
      %931 = vmatmul.mubr.f32.gmra.mrb[0].mxu0 %v685
      %v932 = vpop.f32.mrb[0].mxu0
      %v933 = vadd.f32 0.0, %v932
      %v934 = vpop.f32.mrb[0].mxu0
      %935 = vdwg.mxu0
      %v936 = vadd.f32 %v686, %v798
      %v937 = vadd.f32 %v687, %v803
      %v938 = vadd.f32 %v688, %v808
      %v939 = vadd.f32 %v689, %v813
      %v940 = vadd.f32 %v690, %v818
      %v941 = vadd.f32 %v691, %v823
      %v942 = vadd.f32 %v692, %v828
      %v943 = vadd.f32 %v693, %v833
      %v944 = vadd.f32 %v694, %v838
      %v945 = vadd.f32 %v695, %v843
      %v946 = vadd.f32 %v696, %v848
      %v947 = vadd.f32 %v697, %v853
      %v948 = vadd.f32 %v698, %v858
      %v949 = vadd.f32 %v699, %v863
      %v950 = vadd.f32 %v700, %v868
      %v951 = vadd.f32 %v701, %v873
      %v952 = vadd.f32 %v702, %v878
      %v953 = vadd.f32 %v703, %v883
      %v954 = vadd.f32 %v704, %v888
      %v955 = vadd.f32 %v705, %v893
      %v956 = vadd.f32 %v706, %v898
      %v957 = vadd.f32 %v707, %v903
      %v958 = vadd.f32 %v708, %v908
      %v959 = vadd.f32 %v709, %v913
      %v960 = vadd.f32 %v710, %v918
      %v961 = vadd.f32 %v711, %v923
      %v962 = vadd.f32 %v712, %v928
      %v963 = vadd.f32 %v713, %v933
      %964 = vst [vmem:[#allocation2] sm:$0xff] %v936
      %965 = vst [vmem:[#allocation2 + $0x8] sm:$0xff] %v937
      %966 = vst [vmem:[#allocation2 + $0x10] sm:$0xff] %v938
      %967 = vst [vmem:[#allocation2 + $0x18] sm:$0xff] %v939
      %968 = vst [vmem:[#allocation2 + $0x20] sm:$0xff] %v940
      %969 = vst [vmem:[#allocation2 + $0x28] sm:$0xff] %v941
      %970 = vst [vmem:[#allocation2 + $0x30] sm:$0xff] %v942
      %971 = vst [vmem:[#allocation2 + $0x38] sm:$0xff] %v943
      %972 = vst [vmem:[#allocation2 + $0x40] sm:$0xff] %v944
      %973 = vst [vmem:[#allocation2 + $0x48] sm:$0xff] %v945
      %974 = vst [vmem:[#allocation2 + $0x50] sm:$0xff] %v946
      %975 = vst [vmem:[#allocation2 + $0x58] sm:$0xff] %v947
      %976 = vst [vmem:[#allocation2 + $0x60] sm:$0xff] %v948
      %977 = vst [vmem:[#allocation2 + $0x68] sm:$0xff] %v949
      %978 = vst [vmem:[#allocation2 + $0x70] sm:$0xff] %v950
      %979 = vst [vmem:[#allocation2 + $0x78] sm:$0xff] %v951
      %980 = vst [vmem:[#allocation2 + $0x80] sm:$0xff] %v952
      %981 = vst [vmem:[#allocation2 + $0x88] sm:$0xff] %v953
      %982 = vst [vmem:[#allocation2 + $0x90] sm:$0xff] %v954
      %983 = vst [vmem:[#allocation2 + $0x98] sm:$0xff] %v955
      %984 = vst [vmem:[#allocation2 + $0xa0] sm:$0xff] %v956
      %985 = vst [vmem:[#allocation2 + $0xa8] sm:$0xff] %v957
      %986 = vst [vmem:[#allocation2 + $0xb0] sm:$0xff] %v958
      %987 = vst [vmem:[#allocation2 + $0xb8] sm:$0xff] %v959
      %988 = vst [vmem:[#allocation2 + $0xc0] sm:$0xff] %v960
      %989 = vst [vmem:[#allocation2 + $0xc8] sm:$0xff] %v961
      %990 = vst [vmem:[#allocation2 + $0xd0] sm:$0xff] %v962
      %991 = vst [vmem:[#allocation2 + $0xd8] sm:$0xff] %v963
      %v992 = vld [vmem:[%s262 + $0x2] sm:$0xff]
      %v993 = vld [vmem:[%s262 + $0xa] sm:$0xff]
      %v994 = vld [vmem:[%s262 + $0x12] sm:$0xff]
      %v995 = vld [vmem:[%s262 + $0x1a] sm:$0xff]
      %v996 = vld [vmem:[%s262 + $0x22] sm:$0xff]
      %v997 = vld [vmem:[%s262 + $0x2a] sm:$0xff]
      %v998 = vld [vmem:[%s262 + $0x32] sm:$0xff]
      %v999 = vld [vmem:[%s262 + $0x3a] sm:$0xff]
      %v1000 = vld [vmem:[%s262 + $0x42] sm:$0xff]
      %v1001 = vld [vmem:[%s262 + $0x4a] sm:$0xff]
      %v1002 = vld [vmem:[%s262 + $0x52] sm:$0xff]
      %v1003 = vld [vmem:[%s262 + $0x5a] sm:$0xff]
      %v1004 = vld [vmem:[%s262 + $0x62] sm:$0xff]
      %v1005 = vld [vmem:[%s262 + $0x6a] sm:$0xff]
      %v1006 = vld [vmem:[%s262 + $0x72] sm:$0xff]
      %v1007 = vld [vmem:[%s262 + $0x7a] sm:$0xff]
      %v1008 = vld [vmem:[%s262 + $0x82] sm:$0xff]
      %v1009 = vld [vmem:[%s262 + $0x8a] sm:$0xff]
      %v1010 = vld [vmem:[%s262 + $0x92] sm:$0xff]
      %v1011 = vld [vmem:[%s262 + $0x9a] sm:$0xff]
      %v1012 = vld [vmem:[%s262 + $0xa2] sm:$0xff]
      %v1013 = vld [vmem:[%s262 + $0xaa] sm:$0xff]
      %v1014 = vld [vmem:[%s262 + $0xb2] sm:$0xff]
      %v1015 = vld [vmem:[%s262 + $0xba] sm:$0xff]
      %v1016 = vld [vmem:[%s262 + $0xc2] sm:$0xff]
      %v1017 = vld [vmem:[%s262 + $0xca] sm:$0xff]
      %v1018 = vld [vmem:[%s262 + $0xd2] sm:$0xff]
      %v1019 = vld [vmem:[%s262 + $0xda] sm:$0xff]
      %v1020 = vld [vmem:[#allocation2] sm:$0xff]
      %v1021 = vld [vmem:[#allocation2 + $0x8] sm:$0xff]
      %v1022 = vld [vmem:[#allocation2 + $0x10] sm:$0xff]
      %v1023 = vld [vmem:[#allocation2 + $0x18] sm:$0xff]
      %v1024 = vld [vmem:[#allocation2 + $0x20] sm:$0xff]
      %v1025 = vld [vmem:[#allocation2 + $0x28] sm:$0xff]
      %v1026 = vld [vmem:[#allocation2 + $0x30] sm:$0xff]
      %v1027 = vld [vmem:[#allocation2 + $0x38] sm:$0xff]
      %v1028 = vld [vmem:[#allocation2 + $0x40] sm:$0xff]
      %v1029 = vld [vmem:[#allocation2 + $0x48] sm:$0xff]
      %v1030 = vld [vmem:[#allocation2 + $0x50] sm:$0xff]
      %v1031 = vld [vmem:[#allocation2 + $0x58] sm:$0xff]
      %v1032 = vld [vmem:[#allocation2 + $0x60] sm:$0xff]
      %v1033 = vld [vmem:[#allocation2 + $0x68] sm:$0xff]
      %v1034 = vld [vmem:[#allocation2 + $0x70] sm:$0xff]
      %v1035 = vld [vmem:[#allocation2 + $0x78] sm:$0xff]
      %v1036 = vld [vmem:[#allocation2 + $0x80] sm:$0xff]
      %v1037 = vld [vmem:[#allocation2 + $0x88] sm:$0xff]
      %v1038 = vld [vmem:[#allocation2 + $0x90] sm:$0xff]
      %v1039 = vld [vmem:[#allocation2 + $0x98] sm:$0xff]
      %v1040 = vld [vmem:[#allocation2 + $0xa0] sm:$0xff]
      %v1041 = vld [vmem:[#allocation2 + $0xa8] sm:$0xff]
      %v1042 = vld [vmem:[#allocation2 + $0xb0] sm:$0xff]
      %v1043 = vld [vmem:[#allocation2 + $0xb8] sm:$0xff]
      %v1044 = vld [vmem:[#allocation2 + $0xc0] sm:$0xff]
      %v1045 = vld [vmem:[#allocation2 + $0xc8] sm:$0xff]
      %v1046 = vld [vmem:[#allocation2 + $0xd0] sm:$0xff]
      %v1047 = vld [vmem:[#allocation2 + $0xd8] sm:$0xff]
      %s1048 = scalar_lea.vmem %s270, 256
      %v1049 = vld [vmem:[%s1048] sm:$0xff]
      %v1050 = vld [vmem:[%s1048 + $0x8] sm:$0xff]
      %v1051 = vld [vmem:[%s1048 + $0x10] sm:$0xff]
      %v1052 = vld [vmem:[%s1048 + $0x18] sm:$0xff]
      %v1053 = vld [vmem:[%s1048 + $0x20] sm:$0xff]
      %v1054 = vld [vmem:[%s1048 + $0x28] sm:$0xff]
      %v1055 = vld [vmem:[%s1048 + $0x30] sm:$0xff]
      %v1056 = vld [vmem:[%s1048 + $0x38] sm:$0xff]
      %v1057 = vld [vmem:[%s1048 + $0x40] sm:$0xff]
      %v1058 = vld [vmem:[%s1048 + $0x48] sm:$0xff]
      %v1059 = vld [vmem:[%s1048 + $0x50] sm:$0xff]
      %v1060 = vld [vmem:[%s1048 + $0x58] sm:$0xff]
      %v1061 = vld [vmem:[%s1048 + $0x60] sm:$0xff]
      %v1062 = vld [vmem:[%s1048 + $0x68] sm:$0xff]
      %v1063 = vld [vmem:[%s1048 + $0x70] sm:$0xff]
      %v1064 = vld [vmem:[%s1048 + $0x78] sm:$0xff]
      %1065 = vmatprep.subr.mxu0 0.0
      %1066 = vmatpush1.msra.mxu0 %v1049
      %1067 = vmatprep.subr.mxu0 0.0
      %1068 = vmatpush1.msra.mxu0 %v1050
      %1069 = vmatprep.subr.mxu0 0.0
      %1070 = vmatpush1.msra.mxu0 %v1051
      %1071 = vmatprep.subr.mxu0 0.0
      %1072 = vmatpush1.msra.mxu0 %v1052
      %1073 = vmatprep.subr.mxu0 0.0
      %1074 = vmatpush1.msra.mxu0 %v1053
      %1075 = vmatprep.subr.mxu0 0.0
      %1076 = vmatpush1.msra.mxu0 %v1054
      %1077 = vmatprep.subr.mxu0 0.0
      %1078 = vmatpush1.msra.mxu0 %v1055
      %1079 = vmatprep.subr.mxu0 0.0
      %1080 = vmatpush1.msra.mxu0 %v1056
      %1081 = vmatprep.subr.mxu0 0.0
      %1082 = vmatpush1.msra.mxu0 %v1057
      %1083 = vmatprep.subr.mxu0 0.0
      %1084 = vmatpush1.msra.mxu0 %v1058
      %1085 = vmatprep.subr.mxu0 0.0
      %1086 = vmatpush1.msra.mxu0 %v1059
      %1087 = vmatprep.subr.mxu0 0.0
      %1088 = vmatpush1.msra.mxu0 %v1060
      %1089 = vmatprep.subr.mxu0 0.0
      %1090 = vmatpush1.msra.mxu0 %v1061
      %1091 = vmatprep.subr.mxu0 0.0
      %1092 = vmatpush1.msra.mxu0 %v1062
      %1093 = vmatprep.subr.mxu0 0.0
      %1094 = vmatpush1.msra.mxu0 %v1063
      %1095 = vmatprep.subr.mxu0 0.0
      %1096 = vmatpush1.msra.mxu0 %v1064
      %1097 = vmatprep.subr.mxu0 0.0
      %1098 = vmatpush1.msra.mxu0 0.0
      %1099 = vmatprep.subr.mxu0 0.0
      %1100 = vmatpush1.msra.mxu0 0.0
      %1101 = vmatprep.subr.mxu0 0.0
      %1102 = vmatpush1.msra.mxu0 0.0
      %1103 = vmatprep.subr.mxu0 0.0
      %1104 = vmatpush1.msra.mxu0 0.0
      %1105 = vmatprep.subr.mxu0 0.0
      %1106 = vmatpush1.msra.mxu0 0.0
      %1107 = vmatprep.subr.mxu0 0.0
      %1108 = vmatpush1.msra.mxu0 0.0
      %1109 = vmatprep.subr.mxu0 0.0
      %1110 = vmatpush1.msra.mxu0 0.0
      %1111 = vmatprep.subr.mxu0 0.0
      %1112 = vmatpush1.msra.mxu0 0.0
      %1113 = vmatprep.subr.mxu0 0.0
      %1114 = vmatpush1.msra.mxu0 0.0
      %1115 = vmatprep.subr.mxu0 0.0
      %1116 = vmatpush1.msra.mxu0 0.0
      %1117 = vmatprep.subr.mxu0 0.0
      %1118 = vmatpush1.msra.mxu0 0.0
      %1119 = vmatprep.subr.mxu0 0.0
      %1120 = vmatpush1.msra.mxu0 0.0
      %1121 = vmatprep.subr.mxu0 0.0
      %1122 = vmatpush1.msra.mxu0 0.0
      %1123 = vmatprep.subr.mxu0 0.0
      %1124 = vmatpush1.msra.mxu0 0.0
      %1125 = vmatprep.subr.mxu0 0.0
      %1126 = vmatpush1.msra.mxu0 0.0
      %1127 = vmatprep.subr.mxu0 0.0
      %1128 = vmatpush1.msra.mxu0 0.0
      %1129 = vmatprep.mubr.f32.mxu0 0.0
      %1130 = vmatmul.mubr.f32.gmra.mrb[0].mxu0 %v992
      %v1131 = vpop.f32.mrb[0].mxu0
      %v1132 = vadd.f32 0.0, %v1131
      %v1133 = vpop.f32.mrb[0].mxu0
      %1134 = vmatprep.mubr.f32.mxu0 0.0
      %1135 = vmatmul.mubr.f32.gmra.mrb[0].mxu0 %v993
      %v1136 = vpop.f32.mrb[0].mxu0
      %v1137 = vadd.f32 0.0, %v1136
      %v1138 = vpop.f32.mrb[0].mxu0
      %1139 = vmatprep.mubr.f32.mxu0 0.0
      %1140 = vmatmul.mubr.f32.gmra.mrb[0].mxu0 %v994
      %v1141 = vpop.f32.mrb[0].mxu0
      %v1142 = vadd.f32 0.0, %v1141
      %v1143 = vpop.f32.mrb[0].mxu0
      %1144 = vmatprep.mubr.f32.mxu0 0.0
      %1145 = vmatmul.mubr.f32.gmra.mrb[0].mxu0 %v995
      %v1146 = vpop.f32.mrb[0].mxu0
      %v1147 = vadd.f32 0.0, %v1146
      %v1148 = vpop.f32.mrb[0].mxu0
      %1149 = vmatprep.mubr.f32.mxu0 0.0
      %1150 = vmatmul.mubr.f32.gmra.mrb[0].mxu0 %v996
      %v1151 = vpop.f32.mrb[0].mxu0
      %v1152 = vadd.f32 0.0, %v1151
      %v1153 = vpop.f32.mrb[0].mxu0
      %1154 = vmatprep.mubr.f32.mxu0 0.0
      %1155 = vmatmul.mubr.f32.gmra.mrb[0].mxu0 %v997
      %v1156 = vpop.f32.mrb[0].mxu0
      %v1157 = vadd.f32 0.0, %v1156
      %v1158 = vpop.f32.mrb[0].mxu0
      %1159 = vmatprep.mubr.f32.mxu0 0.0
      %1160 = vmatmul.mubr.f32.gmra.mrb[0].mxu0 %v998
      %v1161 = vpop.f32.mrb[0].mxu0
      %v1162 = vadd.f32 0.0, %v1161
      %v1163 = vpop.f32.mrb[0].mxu0
      %1164 = vmatprep.mubr.f32.mxu0 0.0
      %1165 = vmatmul.mubr.f32.gmra.mrb[0].mxu0 %v999
      %v1166 = vpop.f32.mrb[0].mxu0
      %v1167 = vadd.f32 0.0, %v1166
      %v1168 = vpop.f32.mrb[0].mxu0
      %1169 = vmatprep.mubr.f32.mxu0 0.0
      %1170 = vmatmul.mubr.f32.gmra.mrb[0].mxu0 %v1000
      %v1171 = vpop.f32.mrb[0].mxu0
      %v1172 = vadd.f32 0.0, %v1171
      %v1173 = vpop.f32.mrb[0].mxu0
      %1174 = vmatprep.mubr.f32.mxu0 0.0
      %1175 = vmatmul.mubr.f32.gmra.mrb[0].mxu0 %v1001
      %v1176 = vpop.f32.mrb[0].mxu0
      %v1177 = vadd.f32 0.0, %v1176
      %v1178 = vpop.f32.mrb[0].mxu0
      %1179 = vmatprep.mubr.f32.mxu0 0.0
      %1180 = vmatmul.mubr.f32.gmra.mrb[0].mxu0 %v1002
      %v1181 = vpop.f32.mrb[0].mxu0
      %v1182 = vadd.f32 0.0, %v1181
      %v1183 = vpop.f32.mrb[0].mxu0
      %1184 = vmatprep.mubr.f32.mxu0 0.0
      %1185 = vmatmul.mubr.f32.gmra.mrb[0].mxu0 %v1003
      %v1186 = vpop.f32.mrb[0].mxu0
      %v1187 = vadd.f32 0.0, %v1186
      %v1188 = vpop.f32.mrb[0].mxu0
      %1189 = vmatprep.mubr.f32.mxu0 0.0
      %1190 = vmatmul.mubr.f32.gmra.mrb[0].mxu0 %v1004
      %v1191 = vpop.f32.mrb[0].mxu0
      %v1192 = vadd.f32 0.0, %v1191
      %v1193 = vpop.f32.mrb[0].mxu0
      %1194 = vmatprep.mubr.f32.mxu0 0.0
      %1195 = vmatmul.mubr.f32.gmra.mrb[0].mxu0 %v1005
      %v1196 = vpop.f32.mrb[0].mxu0
      %v1197 = vadd.f32 0.0, %v1196
      %v1198 = vpop.f32.mrb[0].mxu0
      %1199 = vmatprep.mubr.f32.mxu0 0.0
      %1200 = vmatmul.mubr.f32.gmra.mrb[0].mxu0 %v1006
      %v1201 = vpop.f32.mrb[0].mxu0
      %v1202 = vadd.f32 0.0, %v1201
      %v1203 = vpop.f32.mrb[0].mxu0
      %1204 = vmatprep.mubr.f32.mxu0 0.0
      %1205 = vmatmul.mubr.f32.gmra.mrb[0].mxu0 %v1007
      %v1206 = vpop.f32.mrb[0].mxu0
      %v1207 = vadd.f32 0.0, %v1206
      %v1208 = vpop.f32.mrb[0].mxu0
      %1209 = vmatprep.mubr.f32.mxu0 0.0
      %1210 = vmatmul.mubr.f32.gmra.mrb[0].mxu0 %v1008
      %v1211 = vpop.f32.mrb[0].mxu0
      %v1212 = vadd.f32 0.0, %v1211
      %v1213 = vpop.f32.mrb[0].mxu0
      %1214 = vmatprep.mubr.f32.mxu0 0.0
      %1215 = vmatmul.mubr.f32.gmra.mrb[0].mxu0 %v1009
      %v1216 = vpop.f32.mrb[0].mxu0
      %v1217 = vadd.f32 0.0, %v1216
      %v1218 = vpop.f32.mrb[0].mxu0
      %1219 = vmatprep.mubr.f32.mxu0 0.0
      %1220 = vmatmul.mubr.f32.gmra.mrb[0].mxu0 %v1010
      %v1221 = vpop.f32.mrb[0].mxu0
      %v1222 = vadd.f32 0.0, %v1221
      %v1223 = vpop.f32.mrb[0].mxu0
      %1224 = vmatprep.mubr.f32.mxu0 0.0
      %1225 = vmatmul.mubr.f32.gmra.mrb[0].mxu0 %v1011
      %v1226 = vpop.f32.mrb[0].mxu0
      %v1227 = vadd.f32 0.0, %v1226
      %v1228 = vpop.f32.mrb[0].mxu0
      %1229 = vmatprep.mubr.f32.mxu0 0.0
      %1230 = vmatmul.mubr.f32.gmra.mrb[0].mxu0 %v1012
      %v1231 = vpop.f32.mrb[0].mxu0
      %v1232 = vadd.f32 0.0, %v1231
      %v1233 = vpop.f32.mrb[0].mxu0
      %1234 = vmatprep.mubr.f32.mxu0 0.0
      %1235 = vmatmul.mubr.f32.gmra.mrb[0].mxu0 %v1013
      %v1236 = vpop.f32.mrb[0].mxu0
      %v1237 = vadd.f32 0.0, %v1236
      %v1238 = vpop.f32.mrb[0].mxu0
      %1239 = vmatprep.mubr.f32.mxu0 0.0
      %1240 = vmatmul.mubr.f32.gmra.mrb[0].mxu0 %v1014
      %v1241 = vpop.f32.mrb[0].mxu0
      %v1242 = vadd.f32 0.0, %v1241
      %v1243 = vpop.f32.mrb[0].mxu0
      %1244 = vmatprep.mubr.f32.mxu0 0.0
      %1245 = vmatmul.mubr.f32.gmra.mrb[0].mxu0 %v1015
      %v1246 = vpop.f32.mrb[0].mxu0
      %v1247 = vadd.f32 0.0, %v1246
      %v1248 = vpop.f32.mrb[0].mxu0
      %1249 = vmatprep.mubr.f32.mxu0 0.0
      %1250 = vmatmul.mubr.f32.gmra.mrb[0].mxu0 %v1016
      %v1251 = vpop.f32.mrb[0].mxu0
      %v1252 = vadd.f32 0.0, %v1251
      %v1253 = vpop.f32.mrb[0].mxu0
      %1254 = vmatprep.mubr.f32.mxu0 0.0
      %1255 = vmatmul.mubr.f32.gmra.mrb[0].mxu0 %v1017
      %v1256 = vpop.f32.mrb[0].mxu0
      %v1257 = vadd.f32 0.0, %v1256
      %v1258 = vpop.f32.mrb[0].mxu0
      %1259 = vmatprep.mubr.f32.mxu0 0.0
      %1260 = vmatmul.mubr.f32.gmra.mrb[0].mxu0 %v1018
      %v1261 = vpop.f32.mrb[0].mxu0
      %v1262 = vadd.f32 0.0, %v1261
      %v1263 = vpop.f32.mrb[0].mxu0
      %1264 = vmatprep.mubr.f32.mxu0 0.0
      %1265 = vmatmul.mubr.f32.gmra.mrb[0].mxu0 %v1019
      %v1266 = vpop.f32.mrb[0].mxu0
      %v1267 = vadd.f32 0.0, %v1266
      %v1268 = vpop.f32.mrb[0].mxu0
      %1269 = vdwg.mxu0
      %v1270 = vadd.f32 %v1020, %v1132
      %v1271 = vadd.f32 %v1021, %v1137
      %v1272 = vadd.f32 %v1022, %v1142
      %v1273 = vadd.f32 %v1023, %v1147
      %v1274 = vadd.f32 %v1024, %v1152
      %v1275 = vadd.f32 %v1025, %v1157
      %v1276 = vadd.f32 %v1026, %v1162
      %v1277 = vadd.f32 %v1027, %v1167
      %v1278 = vadd.f32 %v1028, %v1172
      %v1279 = vadd.f32 %v1029, %v1177
      %v1280 = vadd.f32 %v1030, %v1182
      %v1281 = vadd.f32 %v1031, %v1187
      %v1282 = vadd.f32 %v1032, %v1192
      %v1283 = vadd.f32 %v1033, %v1197
      %v1284 = vadd.f32 %v1034, %v1202
      %v1285 = vadd.f32 %v1035, %v1207
      %v1286 = vadd.f32 %v1036, %v1212
      %v1287 = vadd.f32 %v1037, %v1217
      %v1288 = vadd.f32 %v1038, %v1222
      %v1289 = vadd.f32 %v1039, %v1227
      %v1290 = vadd.f32 %v1040, %v1232
      %v1291 = vadd.f32 %v1041, %v1237
      %v1292 = vadd.f32 %v1042, %v1242
      %v1293 = vadd.f32 %v1043, %v1247
      %v1294 = vadd.f32 %v1044, %v1252
      %v1295 = vadd.f32 %v1045, %v1257
      %v1296 = vadd.f32 %v1046, %v1262
      %v1297 = vadd.f32 %v1047, %v1267
      %1298 = vst [vmem:[#allocation2] sm:$0xff] %v1270
      %1299 = vst [vmem:[#allocation2 + $0x8] sm:$0xff] %v1271
      %1300 = vst [vmem:[#allocation2 + $0x10] sm:$0xff] %v1272
      %1301 = vst [vmem:[#allocation2 + $0x18] sm:$0xff] %v1273
      %1302 = vst [vmem:[#allocation2 + $0x20] sm:$0xff] %v1274
      %1303 = vst [vmem:[#allocation2 + $0x28] sm:$0xff] %v1275
      %1304 = vst [vmem:[#allocation2 + $0x30] sm:$0xff] %v1276
      %1305 = vst [vmem:[#allocation2 + $0x38] sm:$0xff] %v1277
      %1306 = vst [vmem:[#allocation2 + $0x40] sm:$0xff] %v1278
      %1307 = vst [vmem:[#allocation2 + $0x48] sm:$0xff] %v1279
      %1308 = vst [vmem:[#allocation2 + $0x50] sm:$0xff] %v1280
      %1309 = vst [vmem:[#allocation2 + $0x58] sm:$0xff] %v1281
      %1310 = vst [vmem:[#allocation2 + $0x60] sm:$0xff] %v1282
      %1311 = vst [vmem:[#allocation2 + $0x68] sm:$0xff] %v1283
      %1312 = vst [vmem:[#allocation2 + $0x70] sm:$0xff] %v1284
      %1313 = vst [vmem:[#allocation2 + $0x78] sm:$0xff] %v1285
      %1314 = vst [vmem:[#allocation2 + $0x80] sm:$0xff] %v1286
      %1315 = vst [vmem:[#allocation2 + $0x88] sm:$0xff] %v1287
      %1316 = vst [vmem:[#allocation2 + $0x90] sm:$0xff] %v1288
      %1317 = vst [vmem:[#allocation2 + $0x98] sm:$0xff] %v1289
      %1318 = vst [vmem:[#allocation2 + $0xa0] sm:$0xff] %v1290
      %1319 = vst [vmem:[#allocation2 + $0xa8] sm:$0xff] %v1291
      %1320 = vst [vmem:[#allocation2 + $0xb0] sm:$0xff] %v1292
      %1321 = vst [vmem:[#allocation2 + $0xb8] sm:$0xff] %v1293
      %1322 = vst [vmem:[#allocation2 + $0xc0] sm:$0xff] %v1294
      %1323 = vst [vmem:[#allocation2 + $0xc8] sm:$0xff] %v1295
      %1324 = vst [vmem:[#allocation2 + $0xd0] sm:$0xff] %v1296
      %1325 = vst [vmem:[#allocation2 + $0xd8] sm:$0xff] %v1297
      %v1326 = vld [vmem:[%s262 + $0x10] sm:$0xff]
      %v1327 = vld [vmem:[%s262 + $0x18] sm:$0xff]
      %v1328 = vld [vmem:[%s262 + $0x20] sm:$0xff]
      %v1329 = vld [vmem:[%s262 + $0x28] sm:$0xff]
      %v1330 = vld [vmem:[%s262 + $0x30] sm:$0xff]
      %v1331 = vld [vmem:[%s262 + $0x38] sm:$0xff]
      %v1332 = vld [vmem:[%s262 + $0x40] sm:$0xff]
      %v1333 = vld [vmem:[%s262 + $0x48] sm:$0xff]
      %v1334 = vld [vmem:[%s262 + $0x50] sm:$0xff]
      %v1335 = vld [vmem:[%s262 + $0x58] sm:$0xff]
      %v1336 = vld [vmem:[%s262 + $0x60] sm:$0xff]
      %v1337 = vld [vmem:[%s262 + $0x68] sm:$0xff]
      %v1338 = vld [vmem:[%s262 + $0x70] sm:$0xff]
      %v1339 = vld [vmem:[%s262 + $0x78] sm:$0xff]
      %v1340 = vld [vmem:[%s262 + $0x80] sm:$0xff]
      %v1341 = vld [vmem:[%s262 + $0x88] sm:$0xff]
      %v1342 = vld [vmem:[%s262 + $0x90] sm:$0xff]
      %v1343 = vld [vmem:[%s262 + $0x98] sm:$0xff]
      %v1344 = vld [vmem:[%s262 + $0xa0] sm:$0xff]
      %v1345 = vld [vmem:[%s262 + $0xa8] sm:$0xff]
      %v1346 = vld [vmem:[%s262 + $0xb0] sm:$0xff]
      %v1347 = vld [vmem:[%s262 + $0xb8] sm:$0xff]
      %v1348 = vld [vmem:[%s262 + $0xc0] sm:$0xff]
      %v1349 = vld [vmem:[%s262 + $0xc8] sm:$0xff]
      %v1350 = vld [vmem:[%s262 + $0xd0] sm:$0xff]
      %v1351 = vld [vmem:[%s262 + $0xd8] sm:$0xff]
      %v1352 = vld [vmem:[%s262 + $0xe0] sm:$0xff]
      %v1353 = vld [vmem:[%s262 + $0xe8] sm:$0xff]
      %v1354 = vld [vmem:[#allocation2] sm:$0xff]
      %v1355 = vld [vmem:[#allocation2 + $0x8] sm:$0xff]
      %v1356 = vld [vmem:[#allocation2 + $0x10] sm:$0xff]
      %v1357 = vld [vmem:[#allocation2 + $0x18] sm:$0xff]
      %v1358 = vld [vmem:[#allocation2 + $0x20] sm:$0xff]
      %v1359 = vld [vmem:[#allocation2 + $0x28] sm:$0xff]
      %v1360 = vld [vmem:[#allocation2 + $0x30] sm:$0xff]
      %v1361 = vld [vmem:[#allocation2 + $0x38] sm:$0xff]
      %v1362 = vld [vmem:[#allocation2 + $0x40] sm:$0xff]
      %v1363 = vld [vmem:[#allocation2 + $0x48] sm:$0xff]
      %v1364 = vld [vmem:[#allocation2 + $0x50] sm:$0xff]
      %v1365 = vld [vmem:[#allocation2 + $0x58] sm:$0xff]
      %v1366 = vld [vmem:[#allocation2 + $0x60] sm:$0xff]
      %v1367 = vld [vmem:[#allocation2 + $0x68] sm:$0xff]
      %v1368 = vld [vmem:[#allocation2 + $0x70] sm:$0xff]
      %v1369 = vld [vmem:[#allocation2 + $0x78] sm:$0xff]
      %v1370 = vld [vmem:[#allocation2 + $0x80] sm:$0xff]
      %v1371 = vld [vmem:[#allocation2 + $0x88] sm:$0xff]
      %v1372 = vld [vmem:[#allocation2 + $0x90] sm:$0xff]
      %v1373 = vld [vmem:[#allocation2 + $0x98] sm:$0xff]
      %v1374 = vld [vmem:[#allocation2 + $0xa0] sm:$0xff]
      %v1375 = vld [vmem:[#allocation2 + $0xa8] sm:$0xff]
      %v1376 = vld [vmem:[#allocation2 + $0xb0] sm:$0xff]
      %v1377 = vld [vmem:[#allocation2 + $0xb8] sm:$0xff]
      %v1378 = vld [vmem:[#allocation2 + $0xc0] sm:$0xff]
      %v1379 = vld [vmem:[#allocation2 + $0xc8] sm:$0xff]
      %v1380 = vld [vmem:[#allocation2 + $0xd0] sm:$0xff]
      %v1381 = vld [vmem:[#allocation2 + $0xd8] sm:$0xff]
      %s1382 = scalar_lea.vmem %s270, 384
      %v1383 = vld [vmem:[%s1382] sm:$0xff]
      %v1384 = vld [vmem:[%s1382 + $0x8] sm:$0xff]
      %v1385 = vld [vmem:[%s1382 + $0x10] sm:$0xff]
      %v1386 = vld [vmem:[%s1382 + $0x18] sm:$0xff]
      %v1387 = vld [vmem:[%s1382 + $0x20] sm:$0xff]
      %v1388 = vld [vmem:[%s1382 + $0x28] sm:$0xff]
      %v1389 = vld [vmem:[%s1382 + $0x30] sm:$0xff]
      %v1390 = vld [vmem:[%s1382 + $0x38] sm:$0xff]
      %v1391 = vld [vmem:[%s1382 + $0x40] sm:$0xff]
      %v1392 = vld [vmem:[%s1382 + $0x48] sm:$0xff]
      %v1393 = vld [vmem:[%s1382 + $0x50] sm:$0xff]
      %v1394 = vld [vmem:[%s1382 + $0x58] sm:$0xff]
      %v1395 = vld [vmem:[%s1382 + $0x60] sm:$0xff]
      %v1396 = vld [vmem:[%s1382 + $0x68] sm:$0xff]
      %v1397 = vld [vmem:[%s1382 + $0x70] sm:$0xff]
      %v1398 = vld [vmem:[%s1382 + $0x78] sm:$0xff]
      %1399 = vmatprep.subr.mxu0 0.0
      %1400 = vmatpush1.msra.mxu0 %v1383
      %1401 = vmatprep.subr.mxu0 0.0
      %1402 = vmatpush1.msra.mxu0 %v1384
      %1403 = vmatprep.subr.mxu0 0.0
      %1404 = vmatpush1.msra.mxu0 %v1385
      %1405 = vmatprep.subr.mxu0 0.0
      %1406 = vmatpush1.msra.mxu0 %v1386
      %1407 = vmatprep.subr.mxu0 0.0
      %1408 = vmatpush1.msra.mxu0 %v1387
      %1409 = vmatprep.subr.mxu0 0.0
      %1410 = vmatpush1.msra.mxu0 %v1388
      %1411 = vmatprep.subr.mxu0 0.0
      %1412 = vmatpush1.msra.mxu0 %v1389
      %1413 = vmatprep.subr.mxu0 0.0
      %1414 = vmatpush1.msra.mxu0 %v1390
      %1415 = vmatprep.subr.mxu0 0.0
      %1416 = vmatpush1.msra.mxu0 %v1391
      %1417 = vmatprep.subr.mxu0 0.0
      %1418 = vmatpush1.msra.mxu0 %v1392
      %1419 = vmatprep.subr.mxu0 0.0
      %1420 = vmatpush1.msra.mxu0 %v1393
      %1421 = vmatprep.subr.mxu0 0.0
      %1422 = vmatpush1.msra.mxu0 %v1394
      %1423 = vmatprep.subr.mxu0 0.0
      %1424 = vmatpush1.msra.mxu0 %v1395
      %1425 = vmatprep.subr.mxu0 0.0
      %1426 = vmatpush1.msra.mxu0 %v1396
      %1427 = vmatprep.subr.mxu0 0.0
      %1428 = vmatpush1.msra.mxu0 %v1397
      %1429 = vmatprep.subr.mxu0 0.0
      %1430 = vmatpush1.msra.mxu0 %v1398
      %1431 = vmatprep.subr.mxu0 0.0
      %1432 = vmatpush1.msra.mxu0 0.0
      %1433 = vmatprep.subr.mxu0 0.0
      %1434 = vmatpush1.msra.mxu0 0.0
      %1435 = vmatprep.subr.mxu0 0.0
      %1436 = vmatpush1.msra.mxu0 0.0
      %1437 = vmatprep.subr.mxu0 0.0
      %1438 = vmatpush1.msra.mxu0 0.0
      %1439 = vmatprep.subr.mxu0 0.0
      %1440 = vmatpush1.msra.mxu0 0.0
      %1441 = vmatprep.subr.mxu0 0.0
      %1442 = vmatpush1.msra.mxu0 0.0
      %1443 = vmatprep.subr.mxu0 0.0
      %1444 = vmatpush1.msra.mxu0 0.0
      %1445 = vmatprep.subr.mxu0 0.0
      %1446 = vmatpush1.msra.mxu0 0.0
      %1447 = vmatprep.subr.mxu0 0.0
      %1448 = vmatpush1.msra.mxu0 0.0
      %1449 = vmatprep.subr.mxu0 0.0
      %1450 = vmatpush1.msra.mxu0 0.0
      %1451 = vmatprep.subr.mxu0 0.0
      %1452 = vmatpush1.msra.mxu0 0.0
      %1453 = vmatprep.subr.mxu0 0.0
      %1454 = vmatpush1.msra.mxu0 0.0
      %1455 = vmatprep.subr.mxu0 0.0
      %1456 = vmatpush1.msra.mxu0 0.0
      %1457 = vmatprep.subr.mxu0 0.0
      %1458 = vmatpush1.msra.mxu0 0.0
      %1459 = vmatprep.subr.mxu0 0.0
      %1460 = vmatpush1.msra.mxu0 0.0
      %1461 = vmatprep.subr.mxu0 0.0
      %1462 = vmatpush1.msra.mxu0 0.0
      %1463 = vmatprep.mubr.f32.mxu0 0.0
      %1464 = vmatmul.mubr.f32.gmra.mrb[0].mxu0 %v1326
      %v1465 = vpop.f32.mrb[0].mxu0
      %v1466 = vadd.f32 0.0, %v1465
      %v1467 = vpop.f32.mrb[0].mxu0
      %1468 = vmatprep.mubr.f32.mxu0 0.0
      %1469 = vmatmul.mubr.f32.gmra.mrb[0].mxu0 %v1327
      %v1470 = vpop.f32.mrb[0].mxu0
      %v1471 = vadd.f32 0.0, %v1470
      %v1472 = vpop.f32.mrb[0].mxu0
      %1473 = vmatprep.mubr.f32.mxu0 0.0
      %1474 = vmatmul.mubr.f32.gmra.mrb[0].mxu0 %v1328
      %v1475 = vpop.f32.mrb[0].mxu0
      %v1476 = vadd.f32 0.0, %v1475
      %v1477 = vpop.f32.mrb[0].mxu0
      %1478 = vmatprep.mubr.f32.mxu0 0.0
      %1479 = vmatmul.mubr.f32.gmra.mrb[0].mxu0 %v1329
      %v1480 = vpop.f32.mrb[0].mxu0
      %v1481 = vadd.f32 0.0, %v1480
      %v1482 = vpop.f32.mrb[0].mxu0
      %1483 = vmatprep.mubr.f32.mxu0 0.0
      %1484 = vmatmul.mubr.f32.gmra.mrb[0].mxu0 %v1330
      %v1485 = vpop.f32.mrb[0].mxu0
      %v1486 = vadd.f32 0.0, %v1485
      %v1487 = vpop.f32.mrb[0].mxu0
      %1488 = vmatprep.mubr.f32.mxu0 0.0
      %1489 = vmatmul.mubr.f32.gmra.mrb[0].mxu0 %v1331
      %v1490 = vpop.f32.mrb[0].mxu0
      %v1491 = vadd.f32 0.0, %v1490
      %v1492 = vpop.f32.mrb[0].mxu0
      %1493 = vmatprep.mubr.f32.mxu0 0.0
      %1494 = vmatmul.mubr.f32.gmra.mrb[0].mxu0 %v1332
      %v1495 = vpop.f32.mrb[0].mxu0
      %v1496 = vadd.f32 0.0, %v1495
      %v1497 = vpop.f32.mrb[0].mxu0
      %1498 = vmatprep.mubr.f32.mxu0 0.0
      %1499 = vmatmul.mubr.f32.gmra.mrb[0].mxu0 %v1333
      %v1500 = vpop.f32.mrb[0].mxu0
      %v1501 = vadd.f32 0.0, %v1500
      %v1502 = vpop.f32.mrb[0].mxu0
      %1503 = vmatprep.mubr.f32.mxu0 0.0
      %1504 = vmatmul.mubr.f32.gmra.mrb[0].mxu0 %v1334
      %v1505 = vpop.f32.mrb[0].mxu0
      %v1506 = vadd.f32 0.0, %v1505
      %v1507 = vpop.f32.mrb[0].mxu0
      %1508 = vmatprep.mubr.f32.mxu0 0.0
      %1509 = vmatmul.mubr.f32.gmra.mrb[0].mxu0 %v1335
      %v1510 = vpop.f32.mrb[0].mxu0
      %v1511 = vadd.f32 0.0, %v1510
      %v1512 = vpop.f32.mrb[0].mxu0
      %1513 = vmatprep.mubr.f32.mxu0 0.0
      %1514 = vmatmul.mubr.f32.gmra.mrb[0].mxu0 %v1336
      %v1515 = vpop.f32.mrb[0].mxu0
      %v1516 = vadd.f32 0.0, %v1515
      %v1517 = vpop.f32.mrb[0].mxu0
      %1518 = vmatprep.mubr.f32.mxu0 0.0
      %1519 = vmatmul.mubr.f32.gmra.mrb[0].mxu0 %v1337
      %v1520 = vpop.f32.mrb[0].mxu0
      %v1521 = vadd.f32 0.0, %v1520
      %v1522 = vpop.f32.mrb[0].mxu0
      %1523 = vmatprep.mubr.f32.mxu0 0.0
      %1524 = vmatmul.mubr.f32.gmra.mrb[0].mxu0 %v1338
      %v1525 = vpop.f32.mrb[0].mxu0
      %v1526 = vadd.f32 0.0, %v1525
      %v1527 = vpop.f32.mrb[0].mxu0
      %1528 = vmatprep.mubr.f32.mxu0 0.0
      %1529 = vmatmul.mubr.f32.gmra.mrb[0].mxu0 %v1339
      %v1530 = vpop.f32.mrb[0].mxu0
      %v1531 = vadd.f32 0.0, %v1530
      %v1532 = vpop.f32.mrb[0].mxu0
      %1533 = vmatprep.mubr.f32.mxu0 0.0
      %1534 = vmatmul.mubr.f32.gmra.mrb[0].mxu0 %v1340
      %v1535 = vpop.f32.mrb[0].mxu0
      %v1536 = vadd.f32 0.0, %v1535
      %v1537 = vpop.f32.mrb[0].mxu0
      %1538 = vmatprep.mubr.f32.mxu0 0.0
      %1539 = vmatmul.mubr.f32.gmra.mrb[0].mxu0 %v1341
      %v1540 = vpop.f32.mrb[0].mxu0
      %v1541 = vadd.f32 0.0, %v1540
      %v1542 = vpop.f32.mrb[0].mxu0
      %1543 = vmatprep.mubr.f32.mxu0 0.0
      %1544 = vmatmul.mubr.f32.gmra.mrb[0].mxu0 %v1342
      %v1545 = vpop.f32.mrb[0].mxu0
      %v1546 = vadd.f32 0.0, %v1545
      %v1547 = vpop.f32.mrb[0].mxu0
      %1548 = vmatprep.mubr.f32.mxu0 0.0
      %1549 = vmatmul.mubr.f32.gmra.mrb[0].mxu0 %v1343
      %v1550 = vpop.f32.mrb[0].mxu0
      %v1551 = vadd.f32 0.0, %v1550
      %v1552 = vpop.f32.mrb[0].mxu0
      %1553 = vmatprep.mubr.f32.mxu0 0.0
      %1554 = vmatmul.mubr.f32.gmra.mrb[0].mxu0 %v1344
      %v1555 = vpop.f32.mrb[0].mxu0
      %v1556 = vadd.f32 0.0, %v1555
      %v1557 = vpop.f32.mrb[0].mxu0
      %1558 = vmatprep.mubr.f32.mxu0 0.0
      %1559 = vmatmul.mubr.f32.gmra.mrb[0].mxu0 %v1345
      %v1560 = vpop.f32.mrb[0].mxu0
      %v1561 = vadd.f32 0.0, %v1560
      %v1562 = vpop.f32.mrb[0].mxu0
      %1563 = vmatprep.mubr.f32.mxu0 0.0
      %1564 = vmatmul.mubr.f32.gmra.mrb[0].mxu0 %v1346
      %v1565 = vpop.f32.mrb[0].mxu0
      %v1566 = vadd.f32 0.0, %v1565
      %v1567 = vpop.f32.mrb[0].mxu0
      %1568 = vmatprep.mubr.f32.mxu0 0.0
      %1569 = vmatmul.mubr.f32.gmra.mrb[0].mxu0 %v1347
      %v1570 = vpop.f32.mrb[0].mxu0
      %v1571 = vadd.f32 0.0, %v1570
      %v1572 = vpop.f32.mrb[0].mxu0
      %1573 = vmatprep.mubr.f32.mxu0 0.0
      %1574 = vmatmul.mubr.f32.gmra.mrb[0].mxu0 %v1348
      %v1575 = vpop.f32.mrb[0].mxu0
      %v1576 = vadd.f32 0.0, %v1575
      %v1577 = vpop.f32.mrb[0].mxu0
      %1578 = vmatprep.mubr.f32.mxu0 0.0
      %1579 = vmatmul.mubr.f32.gmra.mrb[0].mxu0 %v1349
      %v1580 = vpop.f32.mrb[0].mxu0
      %v1581 = vadd.f32 0.0, %v1580
      %v1582 = vpop.f32.mrb[0].mxu0
      %1583 = vmatprep.mubr.f32.mxu0 0.0
      %1584 = vmatmul.mubr.f32.gmra.mrb[0].mxu0 %v1350
      %v1585 = vpop.f32.mrb[0].mxu0
      %v1586 = vadd.f32 0.0, %v1585
      %v1587 = vpop.f32.mrb[0].mxu0
      %1588 = vmatprep.mubr.f32.mxu0 0.0
      %1589 = vmatmul.mubr.f32.gmra.mrb[0].mxu0 %v1351
      %v1590 = vpop.f32.mrb[0].mxu0
      %v1591 = vadd.f32 0.0, %v1590
      %v1592 = vpop.f32.mrb[0].mxu0
      %1593 = vmatprep.mubr.f32.mxu0 0.0
      %1594 = vmatmul.mubr.f32.gmra.mrb[0].mxu0 %v1352
      %v1595 = vpop.f32.mrb[0].mxu0
      %v1596 = vadd.f32 0.0, %v1595
      %v1597 = vpop.f32.mrb[0].mxu0
      %1598 = vmatprep.mubr.f32.mxu0 0.0
      %1599 = vmatmul.mubr.f32.gmra.mrb[0].mxu0 %v1353
      %v1600 = vpop.f32.mrb[0].mxu0
      %v1601 = vadd.f32 0.0, %v1600
      %v1602 = vpop.f32.mrb[0].mxu0
      %1603 = vdwg.mxu0
      %v1604 = vadd.f32 %v1354, %v1466
      %v1605 = vadd.f32 %v1355, %v1471
      %v1606 = vadd.f32 %v1356, %v1476
      %v1607 = vadd.f32 %v1357, %v1481
      %v1608 = vadd.f32 %v1358, %v1486
      %v1609 = vadd.f32 %v1359, %v1491
      %v1610 = vadd.f32 %v1360, %v1496
      %v1611 = vadd.f32 %v1361, %v1501
      %v1612 = vadd.f32 %v1362, %v1506
      %v1613 = vadd.f32 %v1363, %v1511
      %v1614 = vadd.f32 %v1364, %v1516
      %v1615 = vadd.f32 %v1365, %v1521
      %v1616 = vadd.f32 %v1366, %v1526
      %v1617 = vadd.f32 %v1367, %v1531
      %v1618 = vadd.f32 %v1368, %v1536
      %v1619 = vadd.f32 %v1369, %v1541
      %v1620 = vadd.f32 %v1370, %v1546
      %v1621 = vadd.f32 %v1371, %v1551
      %v1622 = vadd.f32 %v1372, %v1556
      %v1623 = vadd.f32 %v1373, %v1561
      %v1624 = vadd.f32 %v1374, %v1566
      %v1625 = vadd.f32 %v1375, %v1571
      %v1626 = vadd.f32 %v1376, %v1576
      %v1627 = vadd.f32 %v1377, %v1581
      %v1628 = vadd.f32 %v1378, %v1586
      %v1629 = vadd.f32 %v1379, %v1591
      %v1630 = vadd.f32 %v1380, %v1596
      %v1631 = vadd.f32 %v1381, %v1601
      %1632 = vst [vmem:[#allocation2] sm:$0xff] %v1604
      %1633 = vst [vmem:[#allocation2 + $0x8] sm:$0xff] %v1605
      %1634 = vst [vmem:[#allocation2 + $0x10] sm:$0xff] %v1606
      %1635 = vst [vmem:[#allocation2 + $0x18] sm:$0xff] %v1607
      %1636 = vst [vmem:[#allocation2 + $0x20] sm:$0xff] %v1608
      %1637 = vst [vmem:[#allocation2 + $0x28] sm:$0xff] %v1609
      %1638 = vst [vmem:[#allocation2 + $0x30] sm:$0xff] %v1610
      %1639 = vst [vmem:[#allocation2 + $0x38] sm:$0xff] %v1611
      %1640 = vst [vmem:[#allocation2 + $0x40] sm:$0xff] %v1612
      %1641 = vst [vmem:[#allocation2 + $0x48] sm:$0xff] %v1613
      %1642 = vst [vmem:[#allocation2 + $0x50] sm:$0xff] %v1614
      %1643 = vst [vmem:[#allocation2 + $0x58] sm:$0xff] %v1615
      %1644 = vst [vmem:[#allocation2 + $0x60] sm:$0xff] %v1616
      %1645 = vst [vmem:[#allocation2 + $0x68] sm:$0xff] %v1617
      %1646 = vst [vmem:[#allocation2 + $0x70] sm:$0xff] %v1618
      %1647 = vst [vmem:[#allocation2 + $0x78] sm:$0xff] %v1619
      %1648 = vst [vmem:[#allocation2 + $0x80] sm:$0xff] %v1620
      %1649 = vst [vmem:[#allocation2 + $0x88] sm:$0xff] %v1621
      %1650 = vst [vmem:[#allocation2 + $0x90] sm:$0xff] %v1622
      %1651 = vst [vmem:[#allocation2 + $0x98] sm:$0xff] %v1623
      %1652 = vst [vmem:[#allocation2 + $0xa0] sm:$0xff] %v1624
      %1653 = vst [vmem:[#allocation2 + $0xa8] sm:$0xff] %v1625
      %1654 = vst [vmem:[#allocation2 + $0xb0] sm:$0xff] %v1626
      %1655 = vst [vmem:[#allocation2 + $0xb8] sm:$0xff] %v1627
      %1656 = vst [vmem:[#allocation2 + $0xc0] sm:$0xff] %v1628
      %1657 = vst [vmem:[#allocation2 + $0xc8] sm:$0xff] %v1629
      %1658 = vst [vmem:[#allocation2 + $0xd0] sm:$0xff] %v1630
      %1659 = vst [vmem:[#allocation2 + $0xd8] sm:$0xff] %v1631
      %v1660 = vld [vmem:[%s262 + $0x11] sm:$0xff]
      %v1661 = vld [vmem:[%s262 + $0x19] sm:$0xff]
      %v1662 = vld [vmem:[%s262 + $0x21] sm:$0xff]
      %v1663 = vld [vmem:[%s262 + $0x29] sm:$0xff]
      %v1664 = vld [vmem:[%s262 + $0x31] sm:$0xff]
      %v1665 = vld [vmem:[%s262 + $0x39] sm:$0xff]
      %v1666 = vld [vmem:[%s262 + $0x41] sm:$0xff]
      %v1667 = vld [vmem:[%s262 + $0x49] sm:$0xff]
      %v1668 = vld [vmem:[%s262 + $0x51] sm:$0xff]
      %v1669 = vld [vmem:[%s262 + $0x59] sm:$0xff]
      %v1670 = vld [vmem:[%s262 + $0x61] sm:$0xff]
      %v1671 = vld [vmem:[%s262 + $0x69] sm:$0xff]
      %v1672 = vld [vmem:[%s262 + $0x71] sm:$0xff]
      %v1673 = vld [vmem:[%s262 + $0x79] sm:$0xff]
      %v1674 = vld [vmem:[%s262 + $0x81] sm:$0xff]
      %v1675 = vld [vmem:[%s262 + $0x89] sm:$0xff]
      %v1676 = vld [vmem:[%s262 + $0x91] sm:$0xff]
      %v1677 = vld [vmem:[%s262 + $0x99] sm:$0xff]
      %v1678 = vld [vmem:[%s262 + $0xa1] sm:$0xff]
      %v1679 = vld [vmem:[%s262 + $0xa9] sm:$0xff]
      %v1680 = vld [vmem:[%s262 + $0xb1] sm:$0xff]
      %v1681 = vld [vmem:[%s262 + $0xb9] sm:$0xff]
      %v1682 = vld [vmem:[%s262 + $0xc1] sm:$0xff]
      %v1683 = vld [vmem:[%s262 + $0xc9] sm:$0xff]
      %v1684 = vld [vmem:[%s262 + $0xd1] sm:$0xff]
      %v1685 = vld [vmem:[%s262 + $0xd9] sm:$0xff]
      %v1686 = vld [vmem:[%s262 + $0xe1] sm:$0xff]
      %v1687 = vld [vmem:[%s262 + $0xe9] sm:$0xff]
      %v1688 = vld [vmem:[#allocation2] sm:$0xff]
      %v1689 = vld [vmem:[#allocation2 + $0x8] sm:$0xff]
      %v1690 = vld [vmem:[#allocation2 + $0x10] sm:$0xff]
      %v1691 = vld [vmem:[#allocation2 + $0x18] sm:$0xff]
      %v1692 = vld [vmem:[#allocation2 + $0x20] sm:$0xff]
      %v1693 = vld [vmem:[#allocation2 + $0x28] sm:$0xff]
      %v1694 = vld [vmem:[#allocation2 + $0x30] sm:$0xff]
      %v1695 = vld [vmem:[#allocation2 + $0x38] sm:$0xff]
      %v1696 = vld [vmem:[#allocation2 + $0x40] sm:$0xff]
      %v1697 = vld [vmem:[#allocation2 + $0x48] sm:$0xff]
      %v1698 = vld [vmem:[#allocation2 + $0x50] sm:$0xff]
      %v1699 = vld [vmem:[#allocation2 + $0x58] sm:$0xff]
      %v1700 = vld [vmem:[#allocation2 + $0x60] sm:$0xff]
      %v1701 = vld [vmem:[#allocation2 + $0x68] sm:$0xff]
      %v1702 = vld [vmem:[#allocation2 + $0x70] sm:$0xff]
      %v1703 = vld [vmem:[#allocation2 + $0x78] sm:$0xff]
      %v1704 = vld [vmem:[#allocation2 + $0x80] sm:$0xff]
      %v1705 = vld [vmem:[#allocation2 + $0x88] sm:$0xff]
      %v1706 = vld [vmem:[#allocation2 + $0x90] sm:$0xff]
      %v1707 = vld [vmem:[#allocation2 + $0x98] sm:$0xff]
      %v1708 = vld [vmem:[#allocation2 + $0xa0] sm:$0xff]
      %v1709 = vld [vmem:[#allocation2 + $0xa8] sm:$0xff]
      %v1710 = vld [vmem:[#allocation2 + $0xb0] sm:$0xff]
      %v1711 = vld [vmem:[#allocation2 + $0xb8] sm:$0xff]
      %v1712 = vld [vmem:[#allocation2 + $0xc0] sm:$0xff]
      %v1713 = vld [vmem:[#allocation2 + $0xc8] sm:$0xff]
      %v1714 = vld [vmem:[#allocation2 + $0xd0] sm:$0xff]
      %v1715 = vld [vmem:[#allocation2 + $0xd8] sm:$0xff]
      %s1716 = scalar_lea.vmem %s270, 512
      %v1717 = vld [vmem:[%s1716] sm:$0xff]
      %v1718 = vld [vmem:[%s1716 + $0x8] sm:$0xff]
      %v1719 = vld [vmem:[%s1716 + $0x10] sm:$0xff]
      %v1720 = vld [vmem:[%s1716 + $0x18] sm:$0xff]
      %v1721 = vld [vmem:[%s1716 + $0x20] sm:$0xff]
      %v1722 = vld [vmem:[%s1716 + $0x28] sm:$0xff]
      %v1723 = vld [vmem:[%s1716 + $0x30] sm:$0xff]
      %v1724 = vld [vmem:[%s1716 + $0x38] sm:$0xff]
      %v1725 = vld [vmem:[%s1716 + $0x40] sm:$0xff]
      %v1726 = vld [vmem:[%s1716 + $0x48] sm:$0xff]
      %v1727 = vld [vmem:[%s1716 + $0x50] sm:$0xff]
      %v1728 = vld [vmem:[%s1716 + $0x58] sm:$0xff]
      %v1729 = vld [vmem:[%s1716 + $0x60] sm:$0xff]
      %v1730 = vld [vmem:[%s1716 + $0x68] sm:$0xff]
      %v1731 = vld [vmem:[%s1716 + $0x70] sm:$0xff]
      %v1732 = vld [vmem:[%s1716 + $0x78] sm:$0xff]
      %1733 = vmatprep.subr.mxu0 0.0
      %1734 = vmatpush1.msra.mxu0 %v1717
      %1735 = vmatprep.subr.mxu0 0.0
      %1736 = vmatpush1.msra.mxu0 %v1718
      %1737 = vmatprep.subr.mxu0 0.0
      %1738 = vmatpush1.msra.mxu0 %v1719
      %1739 = vmatprep.subr.mxu0 0.0
      %1740 = vmatpush1.msra.mxu0 %v1720
      %1741 = vmatprep.subr.mxu0 0.0
      %1742 = vmatpush1.msra.mxu0 %v1721
      %1743 = vmatprep.subr.mxu0 0.0
      %1744 = vmatpush1.msra.mxu0 %v1722
      %1745 = vmatprep.subr.mxu0 0.0
      %1746 = vmatpush1.msra.mxu0 %v1723
      %1747 = vmatprep.subr.mxu0 0.0
      %1748 = vmatpush1.msra.mxu0 %v1724
      %1749 = vmatprep.subr.mxu0 0.0
      %1750 = vmatpush1.msra.mxu0 %v1725
      %1751 = vmatprep.subr.mxu0 0.0
      %1752 = vmatpush1.msra.mxu0 %v1726
      %1753 = vmatprep.subr.mxu0 0.0
      %1754 = vmatpush1.msra.mxu0 %v1727
      %1755 = vmatprep.subr.mxu0 0.0
      %1756 = vmatpush1.msra.mxu0 %v1728
      %1757 = vmatprep.subr.mxu0 0.0
      %1758 = vmatpush1.msra.mxu0 %v1729
      %1759 = vmatprep.subr.mxu0 0.0
      %1760 = vmatpush1.msra.mxu0 %v1730
      %1761 = vmatprep.subr.mxu0 0.0
      %1762 = vmatpush1.msra.mxu0 %v1731
      %1763 = vmatprep.subr.mxu0 0.0
      %1764 = vmatpush1.msra.mxu0 %v1732
      %1765 = vmatprep.subr.mxu0 0.0
      %1766 = vmatpush1.msra.mxu0 0.0
      %1767 = vmatprep.subr.mxu0 0.0
      %1768 = vmatpush1.msra.mxu0 0.0
      %1769 = vmatprep.subr.mxu0 0.0
      %1770 = vmatpush1.msra.mxu0 0.0
      %1771 = vmatprep.subr.mxu0 0.0
      %1772 = vmatpush1.msra.mxu0 0.0
      %1773 = vmatprep.subr.mxu0 0.0
      %1774 = vmatpush1.msra.mxu0 0.0
      %1775 = vmatprep.subr.mxu0 0.0
      %1776 = vmatpush1.msra.mxu0 0.0
      %1777 = vmatprep.subr.mxu0 0.0
      %1778 = vmatpush1.msra.mxu0 0.0
      %1779 = vmatprep.subr.mxu0 0.0
      %1780 = vmatpush1.msra.mxu0 0.0
      %1781 = vmatprep.subr.mxu0 0.0
      %1782 = vmatpush1.msra.mxu0 0.0
      %1783 = vmatprep.subr.mxu0 0.0
      %1784 = vmatpush1.msra.mxu0 0.0
      %1785 = vmatprep.subr.mxu0 0.0
      %1786 = vmatpush1.msra.mxu0 0.0
      %1787 = vmatprep.subr.mxu0 0.0
      %1788 = vmatpush1.msra.mxu0 0.0
      %1789 = vmatprep.subr.mxu0 0.0
      %1790 = vmatpush1.msra.mxu0 0.0
      %1791 = vmatprep.subr.mxu0 0.0
      %1792 = vmatpush1.msra.mxu0 0.0
      %1793 = vmatprep.subr.mxu0 0.0
      %1794 = vmatpush1.msra.mxu0 0.0
      %1795 = vmatprep.subr.mxu0 0.0
      %1796 = vmatpush1.msra.mxu0 0.0
      %1797 = vmatprep.mubr.f32.mxu0 0.0
      %1798 = vmatmul.mubr.f32.gmra.mrb[0].mxu0 %v1660
      %v1799 = vpop.f32.mrb[0].mxu0
      %v1800 = vadd.f32 0.0, %v1799
      %v1801 = vpop.f32.mrb[0].mxu0
      %1802 = vmatprep.mubr.f32.mxu0 0.0
      %1803 = vmatmul.mubr.f32.gmra.mrb[0].mxu0 %v1661
      %v1804 = vpop.f32.mrb[0].mxu0
      %v1805 = vadd.f32 0.0, %v1804
      %v1806 = vpop.f32.mrb[0].mxu0
      %1807 = vmatprep.mubr.f32.mxu0 0.0
      %1808 = vmatmul.mubr.f32.gmra.mrb[0].mxu0 %v1662
      %v1809 = vpop.f32.mrb[0].mxu0
      %v1810 = vadd.f32 0.0, %v1809
      %v1811 = vpop.f32.mrb[0].mxu0
      %1812 = vmatprep.mubr.f32.mxu0 0.0
      %1813 = vmatmul.mubr.f32.gmra.mrb[0].mxu0 %v1663
      %v1814 = vpop.f32.mrb[0].mxu0
      %v1815 = vadd.f32 0.0, %v1814
      %v1816 = vpop.f32.mrb[0].mxu0
      %1817 = vmatprep.mubr.f32.mxu0 0.0
      %1818 = vmatmul.mubr.f32.gmra.mrb[0].mxu0 %v1664
      %v1819 = vpop.f32.mrb[0].mxu0
      %v1820 = vadd.f32 0.0, %v1819
      %v1821 = vpop.f32.mrb[0].mxu0
      %1822 = vmatprep.mubr.f32.mxu0 0.0
      %1823 = vmatmul.mubr.f32.gmra.mrb[0].mxu0 %v1665
      %v1824 = vpop.f32.mrb[0].mxu0
      %v1825 = vadd.f32 0.0, %v1824
      %v1826 = vpop.f32.mrb[0].mxu0
      %1827 = vmatprep.mubr.f32.mxu0 0.0
      %1828 = vmatmul.mubr.f32.gmra.mrb[0].mxu0 %v1666
      %v1829 = vpop.f32.mrb[0].mxu0
      %v1830 = vadd.f32 0.0, %v1829
      %v1831 = vpop.f32.mrb[0].mxu0
      %1832 = vmatprep.mubr.f32.mxu0 0.0
      %1833 = vmatmul.mubr.f32.gmra.mrb[0].mxu0 %v1667
      %v1834 = vpop.f32.mrb[0].mxu0
      %v1835 = vadd.f32 0.0, %v1834
      %v1836 = vpop.f32.mrb[0].mxu0
      %1837 = vmatprep.mubr.f32.mxu0 0.0
      %1838 = vmatmul.mubr.f32.gmra.mrb[0].mxu0 %v1668
      %v1839 = vpop.f32.mrb[0].mxu0
      %v1840 = vadd.f32 0.0, %v1839
      %v1841 = vpop.f32.mrb[0].mxu0
      %1842 = vmatprep.mubr.f32.mxu0 0.0
      %1843 = vmatmul.mubr.f32.gmra.mrb[0].mxu0 %v1669
      %v1844 = vpop.f32.mrb[0].mxu0
      %v1845 = vadd.f32 0.0, %v1844
      %v1846 = vpop.f32.mrb[0].mxu0
      %1847 = vmatprep.mubr.f32.mxu0 0.0
      %1848 = vmatmul.mubr.f32.gmra.mrb[0].mxu0 %v1670
      %v1849 = vpop.f32.mrb[0].mxu0
      %v1850 = vadd.f32 0.0, %v1849
      %v1851 = vpop.f32.mrb[0].mxu0
      %1852 = vmatprep.mubr.f32.mxu0 0.0
      %1853 = vmatmul.mubr.f32.gmra.mrb[0].mxu0 %v1671
      %v1854 = vpop.f32.mrb[0].mxu0
      %v1855 = vadd.f32 0.0, %v1854
      %v1856 = vpop.f32.mrb[0].mxu0
      %1857 = vmatprep.mubr.f32.mxu0 0.0
      %1858 = vmatmul.mubr.f32.gmra.mrb[0].mxu0 %v1672
      %v1859 = vpop.f32.mrb[0].mxu0
      %v1860 = vadd.f32 0.0, %v1859
      %v1861 = vpop.f32.mrb[0].mxu0
      %1862 = vmatprep.mubr.f32.mxu0 0.0
      %1863 = vmatmul.mubr.f32.gmra.mrb[0].mxu0 %v1673
      %v1864 = vpop.f32.mrb[0].mxu0
      %v1865 = vadd.f32 0.0, %v1864
      %v1866 = vpop.f32.mrb[0].mxu0
      %1867 = vmatprep.mubr.f32.mxu0 0.0
      %1868 = vmatmul.mubr.f32.gmra.mrb[0].mxu0 %v1674
      %v1869 = vpop.f32.mrb[0].mxu0
      %v1870 = vadd.f32 0.0, %v1869
      %v1871 = vpop.f32.mrb[0].mxu0
      %1872 = vmatprep.mubr.f32.mxu0 0.0
      %1873 = vmatmul.mubr.f32.gmra.mrb[0].mxu0 %v1675
      %v1874 = vpop.f32.mrb[0].mxu0
      %v1875 = vadd.f32 0.0, %v1874
      %v1876 = vpop.f32.mrb[0].mxu0
      %1877 = vmatprep.mubr.f32.mxu0 0.0
      %1878 = vmatmul.mubr.f32.gmra.mrb[0].mxu0 %v1676
      %v1879 = vpop.f32.mrb[0].mxu0
      %v1880 = vadd.f32 0.0, %v1879
      %v1881 = vpop.f32.mrb[0].mxu0
      %1882 = vmatprep.mubr.f32.mxu0 0.0
      %1883 = vmatmul.mubr.f32.gmra.mrb[0].mxu0 %v1677
      %v1884 = vpop.f32.mrb[0].mxu0
      %v1885 = vadd.f32 0.0, %v1884
      %v1886 = vpop.f32.mrb[0].mxu0
      %1887 = vmatprep.mubr.f32.mxu0 0.0
      %1888 = vmatmul.mubr.f32.gmra.mrb[0].mxu0 %v1678
      %v1889 = vpop.f32.mrb[0].mxu0
      %v1890 = vadd.f32 0.0, %v1889
      %v1891 = vpop.f32.mrb[0].mxu0
      %1892 = vmatprep.mubr.f32.mxu0 0.0
      %1893 = vmatmul.mubr.f32.gmra.mrb[0].mxu0 %v1679
      %v1894 = vpop.f32.mrb[0].mxu0
      %v1895 = vadd.f32 0.0, %v1894
      %v1896 = vpop.f32.mrb[0].mxu0
      %1897 = vmatprep.mubr.f32.mxu0 0.0
      %1898 = vmatmul.mubr.f32.gmra.mrb[0].mxu0 %v1680
      %v1899 = vpop.f32.mrb[0].mxu0
      %v1900 = vadd.f32 0.0, %v1899
      %v1901 = vpop.f32.mrb[0].mxu0
      %1902 = vmatprep.mubr.f32.mxu0 0.0
      %1903 = vmatmul.mubr.f32.gmra.mrb[0].mxu0 %v1681
      %v1904 = vpop.f32.mrb[0].mxu0
      %v1905 = vadd.f32 0.0, %v1904
      %v1906 = vpop.f32.mrb[0].mxu0
      %1907 = vmatprep.mubr.f32.mxu0 0.0
      %1908 = vmatmul.mubr.f32.gmra.mrb[0].mxu0 %v1682
      %v1909 = vpop.f32.mrb[0].mxu0
      %v1910 = vadd.f32 0.0, %v1909
      %v1911 = vpop.f32.mrb[0].mxu0
      %1912 = vmatprep.mubr.f32.mxu0 0.0
      %1913 = vmatmul.mubr.f32.gmra.mrb[0].mxu0 %v1683
      %v1914 = vpop.f32.mrb[0].mxu0
      %v1915 = vadd.f32 0.0, %v1914
      %v1916 = vpop.f32.mrb[0].mxu0
      %1917 = vmatprep.mubr.f32.mxu0 0.0
      %1918 = vmatmul.mubr.f32.gmra.mrb[0].mxu0 %v1684
      %v1919 = vpop.f32.mrb[0].mxu0
      %v1920 = vadd.f32 0.0, %v1919
      %v1921 = vpop.f32.mrb[0].mxu0
      %1922 = vmatprep.mubr.f32.mxu0 0.0
      %1923 = vmatmul.mubr.f32.gmra.mrb[0].mxu0 %v1685
      %v1924 = vpop.f32.mrb[0].mxu0
      %v1925 = vadd.f32 0.0, %v1924
      %v1926 = vpop.f32.mrb[0].mxu0
      %1927 = vmatprep.mubr.f32.mxu0 0.0
      %1928 = vmatmul.mubr.f32.gmra.mrb[0].mxu0 %v1686
      %v1929 = vpop.f32.mrb[0].mxu0
      %v1930 = vadd.f32 0.0, %v1929
      %v1931 = vpop.f32.mrb[0].mxu0
      %1932 = vmatprep.mubr.f32.mxu0 0.0
      %1933 = vmatmul.mubr.f32.gmra.mrb[0].mxu0 %v1687
      %v1934 = vpop.f32.mrb[0].mxu0
      %v1935 = vadd.f32 0.0, %v1934
      %v1936 = vpop.f32.mrb[0].mxu0
      %1937 = vdwg.mxu0
      %v1938 = vadd.f32 %v1688, %v1800
      %v1939 = vadd.f32 %v1689, %v1805
      %v1940 = vadd.f32 %v1690, %v1810
      %v1941 = vadd.f32 %v1691, %v1815
      %v1942 = vadd.f32 %v1692, %v1820
      %v1943 = vadd.f32 %v1693, %v1825
      %v1944 = vadd.f32 %v1694, %v1830
      %v1945 = vadd.f32 %v1695, %v1835
      %v1946 = vadd.f32 %v1696, %v1840
      %v1947 = vadd.f32 %v1697, %v1845
      %v1948 = vadd.f32 %v1698, %v1850
      %v1949 = vadd.f32 %v1699, %v1855
      %v1950 = vadd.f32 %v1700, %v1860
      %v1951 = vadd.f32 %v1701, %v1865
      %v1952 = vadd.f32 %v1702, %v1870
      %v1953 = vadd.f32 %v1703, %v1875
      %v1954 = vadd.f32 %v1704, %v1880
      %v1955 = vadd.f32 %v1705, %v1885
      %v1956 = vadd.f32 %v1706, %v1890
      %v1957 = vadd.f32 %v1707, %v1895
      %v1958 = vadd.f32 %v1708, %v1900
      %v1959 = vadd.f32 %v1709, %v1905
      %v1960 = vadd.f32 %v1710, %v1910
      %v1961 = vadd.f32 %v1711, %v1915
      %v1962 = vadd.f32 %v1712, %v1920
      %v1963 = vadd.f32 %v1713, %v1925
      %v1964 = vadd.f32 %v1714, %v1930
      %v1965 = vadd.f32 %v1715, %v1935
      %1966 = vst [vmem:[#allocation2] sm:$0xff] %v1938
      %1967 = vst [vmem:[#allocation2 + $0x8] sm:$0xff] %v1939
      %1968 = vst [vmem:[#allocation2 + $0x10] sm:$0xff] %v1940
      %1969 = vst [vmem:[#allocation2 + $0x18] sm:$0xff] %v1941
      %1970 = vst [vmem:[#allocation2 + $0x20] sm:$0xff] %v1942
      %1971 = vst [vmem:[#allocation2 + $0x28] sm:$0xff] %v1943
      %1972 = vst [vmem:[#allocation2 + $0x30] sm:$0xff] %v1944
      %1973 = vst [vmem:[#allocation2 + $0x38] sm:$0xff] %v1945
      %1974 = vst [vmem:[#allocation2 + $0x40] sm:$0xff] %v1946
      %1975 = vst [vmem:[#allocation2 + $0x48] sm:$0xff] %v1947
      %1976 = vst [vmem:[#allocation2 + $0x50] sm:$0xff] %v1948
      %1977 = vst [vmem:[#allocation2 + $0x58] sm:$0xff] %v1949
      %1978 = vst [vmem:[#allocation2 + $0x60] sm:$0xff] %v1950
      %1979 = vst [vmem:[#allocation2 + $0x68] sm:$0xff] %v1951
      %1980 = vst [vmem:[#allocation2 + $0x70] sm:$0xff] %v1952
      %1981 = vst [vmem:[#allocation2 + $0x78] sm:$0xff] %v1953
      %1982 = vst [vmem:[#allocation2 + $0x80] sm:$0xff] %v1954
      %1983 = vst [vmem:[#allocation2 + $0x88] sm:$0xff] %v1955
      %1984 = vst [vmem:[#allocation2 + $0x90] sm:$0xff] %v1956
      %1985 = vst [vmem:[#allocation2 + $0x98] sm:$0xff] %v1957
      %1986 = vst [vmem:[#allocation2 + $0xa0] sm:$0xff] %v1958
      %1987 = vst [vmem:[#allocation2 + $0xa8] sm:$0xff] %v1959
      %1988 = vst [vmem:[#allocation2 + $0xb0] sm:$0xff] %v1960
      %1989 = vst [vmem:[#allocation2 + $0xb8] sm:$0xff] %v1961
      %1990 = vst [vmem:[#allocation2 + $0xc0] sm:$0xff] %v1962
      %1991 = vst [vmem:[#allocation2 + $0xc8] sm:$0xff] %v1963
      %1992 = vst [vmem:[#allocation2 + $0xd0] sm:$0xff] %v1964
      %1993 = vst [vmem:[#allocation2 + $0xd8] sm:$0xff] %v1965
      %v1994 = vld [vmem:[%s262 + $0x12] sm:$0xff]
      %v1995 = vld [vmem:[%s262 + $0x1a] sm:$0xff]
      %v1996 = vld [vmem:[%s262 + $0x22] sm:$0xff]
      %v1997 = vld [vmem:[%s262 + $0x2a] sm:$0xff]
      %v1998 = vld [vmem:[%s262 + $0x32] sm:$0xff]
      %v1999 = vld [vmem:[%s262 + $0x3a] sm:$0xff]
      %v2000 = vld [vmem:[%s262 + $0x42] sm:$0xff]
      %v2001 = vld [vmem:[%s262 + $0x4a] sm:$0xff]
      %v2002 = vld [vmem:[%s262 + $0x52] sm:$0xff]
      %v2003 = vld [vmem:[%s262 + $0x5a] sm:$0xff]
      %v2004 = vld [vmem:[%s262 + $0x62] sm:$0xff]
      %v2005 = vld [vmem:[%s262 + $0x6a] sm:$0xff]
      %v2006 = vld [vmem:[%s262 + $0x72] sm:$0xff]
      %v2007 = vld [vmem:[%s262 + $0x7a] sm:$0xff]
      %v2008 = vld [vmem:[%s262 + $0x82] sm:$0xff]
      %v2009 = vld [vmem:[%s262 + $0x8a] sm:$0xff]
      %v2010 = vld [vmem:[%s262 + $0x92] sm:$0xff]
      %v2011 = vld [vmem:[%s262 + $0x9a] sm:$0xff]
      %v2012 = vld [vmem:[%s262 + $0xa2] sm:$0xff]
      %v2013 = vld [vmem:[%s262 + $0xaa] sm:$0xff]
      %v2014 = vld [vmem:[%s262 + $0xb2] sm:$0xff]
      %v2015 = vld [vmem:[%s262 + $0xba] sm:$0xff]
      %v2016 = vld [vmem:[%s262 + $0xc2] sm:$0xff]
      %v2017 = vld [vmem:[%s262 + $0xca] sm:$0xff]
      %v2018 = vld [vmem:[%s262 + $0xd2] sm:$0xff]
      %v2019 = vld [vmem:[%s262 + $0xda] sm:$0xff]
      %v2020 = vld [vmem:[%s262 + $0xe2] sm:$0xff]
      %v2021 = vld [vmem:[%s262 + $0xea] sm:$0xff]
      %v2022 = vld [vmem:[#allocation2] sm:$0xff]
      %v2023 = vld [vmem:[#allocation2 + $0x8] sm:$0xff]
      %v2024 = vld [vmem:[#allocation2 + $0x10] sm:$0xff]
      %v2025 = vld [vmem:[#allocation2 + $0x18] sm:$0xff]
      %v2026 = vld [vmem:[#allocation2 + $0x20] sm:$0xff]
      %v2027 = vld [vmem:[#allocation2 + $0x28] sm:$0xff]
      %v2028 = vld [vmem:[#allocation2 + $0x30] sm:$0xff]
      %v2029 = vld [vmem:[#allocation2 + $0x38] sm:$0xff]
      %v2030 = vld [vmem:[#allocation2 + $0x40] sm:$0xff]
      %v2031 = vld [vmem:[#allocation2 + $0x48] sm:$0xff]
      %v2032 = vld [vmem:[#allocation2 + $0x50] sm:$0xff]
      %v2033 = vld [vmem:[#allocation2 + $0x58] sm:$0xff]
      %v2034 = vld [vmem:[#allocation2 + $0x60] sm:$0xff]
      %v2035 = vld [vmem:[#allocation2 + $0x68] sm:$0xff]
      %v2036 = vld [vmem:[#allocation2 + $0x70] sm:$0xff]
      %v2037 = vld [vmem:[#allocation2 + $0x78] sm:$0xff]
      %v2038 = vld [vmem:[#allocation2 + $0x80] sm:$0xff]
      %v2039 = vld [vmem:[#allocation2 + $0x88] sm:$0xff]
      %v2040 = vld [vmem:[#allocation2 + $0x90] sm:$0xff]
      %v2041 = vld [vmem:[#allocation2 + $0x98] sm:$0xff]
      %v2042 = vld [vmem:[#allocation2 + $0xa0] sm:$0xff]
      %v2043 = vld [vmem:[#allocation2 + $0xa8] sm:$0xff]
      %v2044 = vld [vmem:[#allocation2 + $0xb0] sm:$0xff]
      %v2045 = vld [vmem:[#allocation2 + $0xb8] sm:$0xff]
      %v2046 = vld [vmem:[#allocation2 + $0xc0] sm:$0xff]
      %v2047 = vld [vmem:[#allocation2 + $0xc8] sm:$0xff]
      %v2048 = vld [vmem:[#allocation2 + $0xd0] sm:$0xff]
      %v2049 = vld [vmem:[#allocation2 + $0xd8] sm:$0xff]
      %s2050 = scalar_lea.vmem %s270, 640
      %v2051 = vld [vmem:[%s2050] sm:$0xff]
      %v2052 = vld [vmem:[%s2050 + $0x8] sm:$0xff]
      %v2053 = vld [vmem:[%s2050 + $0x10] sm:$0xff]
      %v2054 = vld [vmem:[%s2050 + $0x18] sm:$0xff]
      %v2055 = vld [vmem:[%s2050 + $0x20] sm:$0xff]
      %v2056 = vld [vmem:[%s2050 + $0x28] sm:$0xff]
      %v2057 = vld [vmem:[%s2050 + $0x30] sm:$0xff]
      %v2058 = vld [vmem:[%s2050 + $0x38] sm:$0xff]
      %v2059 = vld [vmem:[%s2050 + $0x40] sm:$0xff]
      %v2060 = vld [vmem:[%s2050 + $0x48] sm:$0xff]
      %v2061 = vld [vmem:[%s2050 + $0x50] sm:$0xff]
      %v2062 = vld [vmem:[%s2050 + $0x58] sm:$0xff]
      %v2063 = vld [vmem:[%s2050 + $0x60] sm:$0xff]
      %v2064 = vld [vmem:[%s2050 + $0x68] sm:$0xff]
      %v2065 = vld [vmem:[%s2050 + $0x70] sm:$0xff]
      %v2066 = vld [vmem:[%s2050 + $0x78] sm:$0xff]
      %2067 = vmatprep.subr.mxu0 0.0
      %2068 = vmatpush1.msra.mxu0 %v2051
      %2069 = vmatprep.subr.mxu0 0.0
      %2070 = vmatpush1.msra.mxu0 %v2052
      %2071 = vmatprep.subr.mxu0 0.0
      %2072 = vmatpush1.msra.mxu0 %v2053
      %2073 = vmatprep.subr.mxu0 0.0
      %2074 = vmatpush1.msra.mxu0 %v2054
      %2075 = vmatprep.subr.mxu0 0.0
      %2076 = vmatpush1.msra.mxu0 %v2055
      %2077 = vmatprep.subr.mxu0 0.0
      %2078 = vmatpush1.msra.mxu0 %v2056
      %2079 = vmatprep.subr.mxu0 0.0
      %2080 = vmatpush1.msra.mxu0 %v2057
      %2081 = vmatprep.subr.mxu0 0.0
      %2082 = vmatpush1.msra.mxu0 %v2058
      %2083 = vmatprep.subr.mxu0 0.0
      %2084 = vmatpush1.msra.mxu0 %v2059
      %2085 = vmatprep.subr.mxu0 0.0
      %2086 = vmatpush1.msra.mxu0 %v2060
      %2087 = vmatprep.subr.mxu0 0.0
      %2088 = vmatpush1.msra.mxu0 %v2061
      %2089 = vmatprep.subr.mxu0 0.0
      %2090 = vmatpush1.msra.mxu0 %v2062
      %2091 = vmatprep.subr.mxu0 0.0
      %2092 = vmatpush1.msra.mxu0 %v2063
      %2093 = vmatprep.subr.mxu0 0.0
      %2094 = vmatpush1.msra.mxu0 %v2064
      %2095 = vmatprep.subr.mxu0 0.0
      %2096 = vmatpush1.msra.mxu0 %v2065
      %2097 = vmatprep.subr.mxu0 0.0
      %2098 = vmatpush1.msra.mxu0 %v2066
      %2099 = vmatprep.subr.mxu0 0.0
      %2100 = vmatpush1.msra.mxu0 0.0
      %2101 = vmatprep.subr.mxu0 0.0
      %2102 = vmatpush1.msra.mxu0 0.0
      %2103 = vmatprep.subr.mxu0 0.0
      %2104 = vmatpush1.msra.mxu0 0.0
      %2105 = vmatprep.subr.mxu0 0.0
      %2106 = vmatpush1.msra.mxu0 0.0
      %2107 = vmatprep.subr.mxu0 0.0
      %2108 = vmatpush1.msra.mxu0 0.0
      %2109 = vmatprep.subr.mxu0 0.0
      %2110 = vmatpush1.msra.mxu0 0.0
      %2111 = vmatprep.subr.mxu0 0.0
      %2112 = vmatpush1.msra.mxu0 0.0
      %2113 = vmatprep.subr.mxu0 0.0
      %2114 = vmatpush1.msra.mxu0 0.0
      %2115 = vmatprep.subr.mxu0 0.0
      %2116 = vmatpush1.msra.mxu0 0.0
      %2117 = vmatprep.subr.mxu0 0.0
      %2118 = vmatpush1.msra.mxu0 0.0
      %2119 = vmatprep.subr.mxu0 0.0
      %2120 = vmatpush1.msra.mxu0 0.0
      %2121 = vmatprep.subr.mxu0 0.0
      %2122 = vmatpush1.msra.mxu0 0.0
      %2123 = vmatprep.subr.mxu0 0.0
      %2124 = vmatpush1.msra.mxu0 0.0
      %2125 = vmatprep.subr.mxu0 0.0
      %2126 = vmatpush1.msra.mxu0 0.0
      %2127 = vmatprep.subr.mxu0 0.0
      %2128 = vmatpush1.msra.mxu0 0.0
      %2129 = vmatprep.subr.mxu0 0.0
      %2130 = vmatpush1.msra.mxu0 0.0
      %2131 = vmatprep.mubr.f32.mxu0 0.0
      %2132 = vmatmul.mubr.f32.gmra.mrb[0].mxu0 %v1994
      %v2133 = vpop.f32.mrb[0].mxu0
      %v2134 = vadd.f32 0.0, %v2133
      %v2135 = vpop.f32.mrb[0].mxu0
      %2136 = vmatprep.mubr.f32.mxu0 0.0
      %2137 = vmatmul.mubr.f32.gmra.mrb[0].mxu0 %v1995
      %v2138 = vpop.f32.mrb[0].mxu0
      %v2139 = vadd.f32 0.0, %v2138
      %v2140 = vpop.f32.mrb[0].mxu0
      %2141 = vmatprep.mubr.f32.mxu0 0.0
      %2142 = vmatmul.mubr.f32.gmra.mrb[0].mxu0 %v1996
      %v2143 = vpop.f32.mrb[0].mxu0
      %v2144 = vadd.f32 0.0, %v2143
      %v2145 = vpop.f32.mrb[0].mxu0
      %2146 = vmatprep.mubr.f32.mxu0 0.0
      %2147 = vmatmul.mubr.f32.gmra.mrb[0].mxu0 %v1997
      %v2148 = vpop.f32.mrb[0].mxu0
      %v2149 = vadd.f32 0.0, %v2148
      %v2150 = vpop.f32.mrb[0].mxu0
      %2151 = vmatprep.mubr.f32.mxu0 0.0
      %2152 = vmatmul.mubr.f32.gmra.mrb[0].mxu0 %v1998
      %v2153 = vpop.f32.mrb[0].mxu0
      %v2154 = vadd.f32 0.0, %v2153
      %v2155 = vpop.f32.mrb[0].mxu0
      %2156 = vmatprep.mubr.f32.mxu0 0.0
      %2157 = vmatmul.mubr.f32.gmra.mrb[0].mxu0 %v1999
      %v2158 = vpop.f32.mrb[0].mxu0
      %v2159 = vadd.f32 0.0, %v2158
      %v2160 = vpop.f32.mrb[0].mxu0
      %2161 = vmatprep.mubr.f32.mxu0 0.0
      %2162 = vmatmul.mubr.f32.gmra.mrb[0].mxu0 %v2000
      %v2163 = vpop.f32.mrb[0].mxu0
      %v2164 = vadd.f32 0.0, %v2163
      %v2165 = vpop.f32.mrb[0].mxu0
      %2166 = vmatprep.mubr.f32.mxu0 0.0
      %2167 = vmatmul.mubr.f32.gmra.mrb[0].mxu0 %v2001
      %v2168 = vpop.f32.mrb[0].mxu0
      %v2169 = vadd.f32 0.0, %v2168
      %v2170 = vpop.f32.mrb[0].mxu0
      %2171 = vmatprep.mubr.f32.mxu0 0.0
      %2172 = vmatmul.mubr.f32.gmra.mrb[0].mxu0 %v2002
      %v2173 = vpop.f32.mrb[0].mxu0
      %v2174 = vadd.f32 0.0, %v2173
      %v2175 = vpop.f32.mrb[0].mxu0
      %2176 = vmatprep.mubr.f32.mxu0 0.0
      %2177 = vmatmul.mubr.f32.gmra.mrb[0].mxu0 %v2003
      %v2178 = vpop.f32.mrb[0].mxu0
      %v2179 = vadd.f32 0.0, %v2178
      %v2180 = vpop.f32.mrb[0].mxu0
      %2181 = vmatprep.mubr.f32.mxu0 0.0
      %2182 = vmatmul.mubr.f32.gmra.mrb[0].mxu0 %v2004
      %v2183 = vpop.f32.mrb[0].mxu0
      %v2184 = vadd.f32 0.0, %v2183
      %v2185 = vpop.f32.mrb[0].mxu0
      %2186 = vmatprep.mubr.f32.mxu0 0.0
      %2187 = vmatmul.mubr.f32.gmra.mrb[0].mxu0 %v2005
      %v2188 = vpop.f32.mrb[0].mxu0
      %v2189 = vadd.f32 0.0, %v2188
      %v2190 = vpop.f32.mrb[0].mxu0
      %2191 = vmatprep.mubr.f32.mxu0 0.0
      %2192 = vmatmul.mubr.f32.gmra.mrb[0].mxu0 %v2006
      %v2193 = vpop.f32.mrb[0].mxu0
      %v2194 = vadd.f32 0.0, %v2193
      %v2195 = vpop.f32.mrb[0].mxu0
      %2196 = vmatprep.mubr.f32.mxu0 0.0
      %2197 = vmatmul.mubr.f32.gmra.mrb[0].mxu0 %v2007
      %v2198 = vpop.f32.mrb[0].mxu0
      %v2199 = vadd.f32 0.0, %v2198
      %v2200 = vpop.f32.mrb[0].mxu0
      %2201 = vmatprep.mubr.f32.mxu0 0.0
      %2202 = vmatmul.mubr.f32.gmra.mrb[0].mxu0 %v2008
      %v2203 = vpop.f32.mrb[0].mxu0
      %v2204 = vadd.f32 0.0, %v2203
      %v2205 = vpop.f32.mrb[0].mxu0
      %2206 = vmatprep.mubr.f32.mxu0 0.0
      %2207 = vmatmul.mubr.f32.gmra.mrb[0].mxu0 %v2009
      %v2208 = vpop.f32.mrb[0].mxu0
      %v2209 = vadd.f32 0.0, %v2208
      %v2210 = vpop.f32.mrb[0].mxu0
      %2211 = vmatprep.mubr.f32.mxu0 0.0
      %2212 = vmatmul.mubr.f32.gmra.mrb[0].mxu0 %v2010
      %v2213 = vpop.f32.mrb[0].mxu0
      %v2214 = vadd.f32 0.0, %v2213
      %v2215 = vpop.f32.mrb[0].mxu0
      %2216 = vmatprep.mubr.f32.mxu0 0.0
      %2217 = vmatmul.mubr.f32.gmra.mrb[0].mxu0 %v2011
      %v2218 = vpop.f32.mrb[0].mxu0
      %v2219 = vadd.f32 0.0, %v2218
      %v2220 = vpop.f32.mrb[0].mxu0
      %2221 = vmatprep.mubr.f32.mxu0 0.0
      %2222 = vmatmul.mubr.f32.gmra.mrb[0].mxu0 %v2012
      %v2223 = vpop.f32.mrb[0].mxu0
      %v2224 = vadd.f32 0.0, %v2223
      %v2225 = vpop.f32.mrb[0].mxu0
      %2226 = vmatprep.mubr.f32.mxu0 0.0
      %2227 = vmatmul.mubr.f32.gmra.mrb[0].mxu0 %v2013
      %v2228 = vpop.f32.mrb[0].mxu0
      %v2229 = vadd.f32 0.0, %v2228
      %v2230 = vpop.f32.mrb[0].mxu0
      %2231 = vmatprep.mubr.f32.mxu0 0.0
      %2232 = vmatmul.mubr.f32.gmra.mrb[0].mxu0 %v2014
      %v2233 = vpop.f32.mrb[0].mxu0
      %v2234 = vadd.f32 0.0, %v2233
      %v2235 = vpop.f32.mrb[0].mxu0
      %2236 = vmatprep.mubr.f32.mxu0 0.0
      %2237 = vmatmul.mubr.f32.gmra.mrb[0].mxu0 %v2015
      %v2238 = vpop.f32.mrb[0].mxu0
      %v2239 = vadd.f32 0.0, %v2238
      %v2240 = vpop.f32.mrb[0].mxu0
      %2241 = vmatprep.mubr.f32.mxu0 0.0
      %2242 = vmatmul.mubr.f32.gmra.mrb[0].mxu0 %v2016
      %v2243 = vpop.f32.mrb[0].mxu0
      %v2244 = vadd.f32 0.0, %v2243
      %v2245 = vpop.f32.mrb[0].mxu0
      %2246 = vmatprep.mubr.f32.mxu0 0.0
      %2247 = vmatmul.mubr.f32.gmra.mrb[0].mxu0 %v2017
      %v2248 = vpop.f32.mrb[0].mxu0
      %v2249 = vadd.f32 0.0, %v2248
      %v2250 = vpop.f32.mrb[0].mxu0
      %2251 = vmatprep.mubr.f32.mxu0 0.0
      %2252 = vmatmul.mubr.f32.gmra.mrb[0].mxu0 %v2018
      %v2253 = vpop.f32.mrb[0].mxu0
      %v2254 = vadd.f32 0.0, %v2253
      %v2255 = vpop.f32.mrb[0].mxu0
      %2256 = vmatprep.mubr.f32.mxu0 0.0
      %2257 = vmatmul.mubr.f32.gmra.mrb[0].mxu0 %v2019
      %v2258 = vpop.f32.mrb[0].mxu0
      %v2259 = vadd.f32 0.0, %v2258
      %v2260 = vpop.f32.mrb[0].mxu0
      %2261 = vmatprep.mubr.f32.mxu0 0.0
      %2262 = vmatmul.mubr.f32.gmra.mrb[0].mxu0 %v2020
      %v2263 = vpop.f32.mrb[0].mxu0
      %v2264 = vadd.f32 0.0, %v2263
      %v2265 = vpop.f32.mrb[0].mxu0
      %2266 = vmatprep.mubr.f32.mxu0 0.0
      %2267 = vmatmul.mubr.f32.gmra.mrb[0].mxu0 %v2021
      %v2268 = vpop.f32.mrb[0].mxu0
      %v2269 = vadd.f32 0.0, %v2268
      %v2270 = vpop.f32.mrb[0].mxu0
      %2271 = vdwg.mxu0
      %v2272 = vadd.f32 %v2022, %v2134
      %v2273 = vadd.f32 %v2023, %v2139
      %v2274 = vadd.f32 %v2024, %v2144
      %v2275 = vadd.f32 %v2025, %v2149
      %v2276 = vadd.f32 %v2026, %v2154
      %v2277 = vadd.f32 %v2027, %v2159
      %v2278 = vadd.f32 %v2028, %v2164
      %v2279 = vadd.f32 %v2029, %v2169
      %v2280 = vadd.f32 %v2030, %v2174
      %v2281 = vadd.f32 %v2031, %v2179
      %v2282 = vadd.f32 %v2032, %v2184
      %v2283 = vadd.f32 %v2033, %v2189
      %v2284 = vadd.f32 %v2034, %v2194
      %v2285 = vadd.f32 %v2035, %v2199
      %v2286 = vadd.f32 %v2036, %v2204
      %v2287 = vadd.f32 %v2037, %v2209
      %v2288 = vadd.f32 %v2038, %v2214
      %v2289 = vadd.f32 %v2039, %v2219
      %v2290 = vadd.f32 %v2040, %v2224
      %v2291 = vadd.f32 %v2041, %v2229
      %v2292 = vadd.f32 %v2042, %v2234
      %v2293 = vadd.f32 %v2043, %v2239
      %v2294 = vadd.f32 %v2044, %v2244
      %v2295 = vadd.f32 %v2045, %v2249
      %v2296 = vadd.f32 %v2046, %v2254
      %v2297 = vadd.f32 %v2047, %v2259
      %v2298 = vadd.f32 %v2048, %v2264
      %v2299 = vadd.f32 %v2049, %v2269
      %2300 = vst [vmem:[#allocation2] sm:$0xff] %v2272
      %2301 = vst [vmem:[#allocation2 + $0x8] sm:$0xff] %v2273
      %2302 = vst [vmem:[#allocation2 + $0x10] sm:$0xff] %v2274
      %2303 = vst [vmem:[#allocation2 + $0x18] sm:$0xff] %v2275
      %2304 = vst [vmem:[#allocation2 + $0x20] sm:$0xff] %v2276
      %2305 = vst [vmem:[#allocation2 + $0x28] sm:$0xff] %v2277
      %2306 = vst [vmem:[#allocation2 + $0x30] sm:$0xff] %v2278
      %2307 = vst [vmem:[#allocation2 + $0x38] sm:$0xff] %v2279
      %2308 = vst [vmem:[#allocation2 + $0x40] sm:$0xff] %v2280
      %2309 = vst [vmem:[#allocation2 + $0x48] sm:$0xff] %v2281
      %2310 = vst [vmem:[#allocation2 + $0x50] sm:$0xff] %v2282
      %2311 = vst [vmem:[#allocation2 + $0x58] sm:$0xff] %v2283
      %2312 = vst [vmem:[#allocation2 + $0x60] sm:$0xff] %v2284
      %2313 = vst [vmem:[#allocation2 + $0x68] sm:$0xff] %v2285
      %2314 = vst [vmem:[#allocation2 + $0x70] sm:$0xff] %v2286
      %2315 = vst [vmem:[#allocation2 + $0x78] sm:$0xff] %v2287
      %2316 = vst [vmem:[#allocation2 + $0x80] sm:$0xff] %v2288
      %2317 = vst [vmem:[#allocation2 + $0x88] sm:$0xff] %v2289
      %2318 = vst [vmem:[#allocation2 + $0x90] sm:$0xff] %v2290
      %2319 = vst [vmem:[#allocation2 + $0x98] sm:$0xff] %v2291
      %2320 = vst [vmem:[#allocation2 + $0xa0] sm:$0xff] %v2292
      %2321 = vst [vmem:[#allocation2 + $0xa8] sm:$0xff] %v2293
      %2322 = vst [vmem:[#allocation2 + $0xb0] sm:$0xff] %v2294
      %2323 = vst [vmem:[#allocation2 + $0xb8] sm:$0xff] %v2295
      %2324 = vst [vmem:[#allocation2 + $0xc0] sm:$0xff] %v2296
      %2325 = vst [vmem:[#allocation2 + $0xc8] sm:$0xff] %v2297
      %2326 = vst [vmem:[#allocation2 + $0xd0] sm:$0xff] %v2298
      %2327 = vst [vmem:[#allocation2 + $0xd8] sm:$0xff] %v2299
      %v2328 = vld [vmem:[%s262 + $0x20] sm:$0xff]
      %v2329 = vld [vmem:[%s262 + $0x28] sm:$0xff]
      %v2330 = vld [vmem:[%s262 + $0x30] sm:$0xff]
      %v2331 = vld [vmem:[%s262 + $0x38] sm:$0xff]
      %v2332 = vld [vmem:[%s262 + $0x40] sm:$0xff]
      %v2333 = vld [vmem:[%s262 + $0x48] sm:$0xff]
      %v2334 = vld [vmem:[%s262 + $0x50] sm:$0xff]
      %v2335 = vld [vmem:[%s262 + $0x58] sm:$0xff]
      %v2336 = vld [vmem:[%s262 + $0x60] sm:$0xff]
      %v2337 = vld [vmem:[%s262 + $0x68] sm:$0xff]
      %v2338 = vld [vmem:[%s262 + $0x70] sm:$0xff]
      %v2339 = vld [vmem:[%s262 + $0x78] sm:$0xff]
      %v2340 = vld [vmem:[%s262 + $0x80] sm:$0xff]
      %v2341 = vld [vmem:[%s262 + $0x88] sm:$0xff]
      %v2342 = vld [vmem:[%s262 + $0x90] sm:$0xff]
      %v2343 = vld [vmem:[%s262 + $0x98] sm:$0xff]
      %v2344 = vld [vmem:[%s262 + $0xa0] sm:$0xff]
      %v2345 = vld [vmem:[%s262 + $0xa8] sm:$0xff]
      %v2346 = vld [vmem:[%s262 + $0xb0] sm:$0xff]
      %v2347 = vld [vmem:[%s262 + $0xb8] sm:$0xff]
      %v2348 = vld [vmem:[%s262 + $0xc0] sm:$0xff]
      %v2349 = vld [vmem:[%s262 + $0xc8] sm:$0xff]
      %v2350 = vld [vmem:[%s262 + $0xd0] sm:$0xff]
      %v2351 = vld [vmem:[%s262 + $0xd8] sm:$0xff]
      %v2352 = vld [vmem:[%s262 + $0xe0] sm:$0xff]
      %v2353 = vld [vmem:[%s262 + $0xe8] sm:$0xff]
      %v2354 = vld [vmem:[%s262 + $0xf0] sm:$0xff]
      %v2355 = vld [vmem:[%s262 + $0xf8] sm:$0xff]
      %v2356 = vld [vmem:[#allocation2] sm:$0xff]
      %v2357 = vld [vmem:[#allocation2 + $0x8] sm:$0xff]
      %v2358 = vld [vmem:[#allocation2 + $0x10] sm:$0xff]
      %v2359 = vld [vmem:[#allocation2 + $0x18] sm:$0xff]
      %v2360 = vld [vmem:[#allocation2 + $0x20] sm:$0xff]
      %v2361 = vld [vmem:[#allocation2 + $0x28] sm:$0xff]
      %v2362 = vld [vmem:[#allocation2 + $0x30] sm:$0xff]
      %v2363 = vld [vmem:[#allocation2 + $0x38] sm:$0xff]
      %v2364 = vld [vmem:[#allocation2 + $0x40] sm:$0xff]
      %v2365 = vld [vmem:[#allocation2 + $0x48] sm:$0xff]
      %v2366 = vld [vmem:[#allocation2 + $0x50] sm:$0xff]
      %v2367 = vld [vmem:[#allocation2 + $0x58] sm:$0xff]
      %v2368 = vld [vmem:[#allocation2 + $0x60] sm:$0xff]
      %v2369 = vld [vmem:[#allocation2 + $0x68] sm:$0xff]
      %v2370 = vld [vmem:[#allocation2 + $0x70] sm:$0xff]
      %v2371 = vld [vmem:[#allocation2 + $0x78] sm:$0xff]
      %v2372 = vld [vmem:[#allocation2 + $0x80] sm:$0xff]
      %v2373 = vld [vmem:[#allocation2 + $0x88] sm:$0xff]
      %v2374 = vld [vmem:[#allocation2 + $0x90] sm:$0xff]
      %v2375 = vld [vmem:[#allocation2 + $0x98] sm:$0xff]
      %v2376 = vld [vmem:[#allocation2 + $0xa0] sm:$0xff]
      %v2377 = vld [vmem:[#allocation2 + $0xa8] sm:$0xff]
      %v2378 = vld [vmem:[#allocation2 + $0xb0] sm:$0xff]
      %v2379 = vld [vmem:[#allocation2 + $0xb8] sm:$0xff]
      %v2380 = vld [vmem:[#allocation2 + $0xc0] sm:$0xff]
      %v2381 = vld [vmem:[#allocation2 + $0xc8] sm:$0xff]
      %v2382 = vld [vmem:[#allocation2 + $0xd0] sm:$0xff]
      %v2383 = vld [vmem:[#allocation2 + $0xd8] sm:$0xff]
      %s2384 = scalar_lea.vmem %s270, 768
      %v2385 = vld [vmem:[%s2384] sm:$0xff]
      %v2386 = vld [vmem:[%s2384 + $0x8] sm:$0xff]
      %v2387 = vld [vmem:[%s2384 + $0x10] sm:$0xff]
      %v2388 = vld [vmem:[%s2384 + $0x18] sm:$0xff]
      %v2389 = vld [vmem:[%s2384 + $0x20] sm:$0xff]
      %v2390 = vld [vmem:[%s2384 + $0x28] sm:$0xff]
      %v2391 = vld [vmem:[%s2384 + $0x30] sm:$0xff]
      %v2392 = vld [vmem:[%s2384 + $0x38] sm:$0xff]
      %v2393 = vld [vmem:[%s2384 + $0x40] sm:$0xff]
      %v2394 = vld [vmem:[%s2384 + $0x48] sm:$0xff]
      %v2395 = vld [vmem:[%s2384 + $0x50] sm:$0xff]
      %v2396 = vld [vmem:[%s2384 + $0x58] sm:$0xff]
      %v2397 = vld [vmem:[%s2384 + $0x60] sm:$0xff]
      %v2398 = vld [vmem:[%s2384 + $0x68] sm:$0xff]
      %v2399 = vld [vmem:[%s2384 + $0x70] sm:$0xff]
      %v2400 = vld [vmem:[%s2384 + $0x78] sm:$0xff]
      %2401 = vmatprep.subr.mxu0 0.0
      %2402 = vmatpush1.msra.mxu0 %v2385
      %2403 = vmatprep.subr.mxu0 0.0
      %2404 = vmatpush1.msra.mxu0 %v2386
      %2405 = vmatprep.subr.mxu0 0.0
      %2406 = vmatpush1.msra.mxu0 %v2387
      %2407 = vmatprep.subr.mxu0 0.0
      %2408 = vmatpush1.msra.mxu0 %v2388
      %2409 = vmatprep.subr.mxu0 0.0
      %2410 = vmatpush1.msra.mxu0 %v2389
      %2411 = vmatprep.subr.mxu0 0.0
      %2412 = vmatpush1.msra.mxu0 %v2390
      %2413 = vmatprep.subr.mxu0 0.0
      %2414 = vmatpush1.msra.mxu0 %v2391
      %2415 = vmatprep.subr.mxu0 0.0
      %2416 = vmatpush1.msra.mxu0 %v2392
      %2417 = vmatprep.subr.mxu0 0.0
      %2418 = vmatpush1.msra.mxu0 %v2393
      %2419 = vmatprep.subr.mxu0 0.0
      %2420 = vmatpush1.msra.mxu0 %v2394
      %2421 = vmatprep.subr.mxu0 0.0
      %2422 = vmatpush1.msra.mxu0 %v2395
      %2423 = vmatprep.subr.mxu0 0.0
      %2424 = vmatpush1.msra.mxu0 %v2396
      %2425 = vmatprep.subr.mxu0 0.0
      %2426 = vmatpush1.msra.mxu0 %v2397
      %2427 = vmatprep.subr.mxu0 0.0
      %2428 = vmatpush1.msra.mxu0 %v2398
      %2429 = vmatprep.subr.mxu0 0.0
      %2430 = vmatpush1.msra.mxu0 %v2399
      %2431 = vmatprep.subr.mxu0 0.0
      %2432 = vmatpush1.msra.mxu0 %v2400
      %2433 = vmatprep.subr.mxu0 0.0
      %2434 = vmatpush1.msra.mxu0 0.0
      %2435 = vmatprep.subr.mxu0 0.0
      %2436 = vmatpush1.msra.mxu0 0.0
      %2437 = vmatprep.subr.mxu0 0.0
      %2438 = vmatpush1.msra.mxu0 0.0
      %2439 = vmatprep.subr.mxu0 0.0
      %2440 = vmatpush1.msra.mxu0 0.0
      %2441 = vmatprep.subr.mxu0 0.0
      %2442 = vmatpush1.msra.mxu0 0.0
      %2443 = vmatprep.subr.mxu0 0.0
      %2444 = vmatpush1.msra.mxu0 0.0
      %2445 = vmatprep.subr.mxu0 0.0
      %2446 = vmatpush1.msra.mxu0 0.0
      %2447 = vmatprep.subr.mxu0 0.0
      %2448 = vmatpush1.msra.mxu0 0.0
      %2449 = vmatprep.subr.mxu0 0.0
      %2450 = vmatpush1.msra.mxu0 0.0
      %2451 = vmatprep.subr.mxu0 0.0
      %2452 = vmatpush1.msra.mxu0 0.0
      %2453 = vmatprep.subr.mxu0 0.0
      %2454 = vmatpush1.msra.mxu0 0.0
      %2455 = vmatprep.subr.mxu0 0.0
      %2456 = vmatpush1.msra.mxu0 0.0
      %2457 = vmatprep.subr.mxu0 0.0
      %2458 = vmatpush1.msra.mxu0 0.0
      %2459 = vmatprep.subr.mxu0 0.0
      %2460 = vmatpush1.msra.mxu0 0.0
      %2461 = vmatprep.subr.mxu0 0.0
      %2462 = vmatpush1.msra.mxu0 0.0
      %2463 = vmatprep.subr.mxu0 0.0
      %2464 = vmatpush1.msra.mxu0 0.0
      %2465 = vmatprep.mubr.f32.mxu0 0.0
      %2466 = vmatmul.mubr.f32.gmra.mrb[0].mxu0 %v2328
      %v2467 = vpop.f32.mrb[0].mxu0
      %v2468 = vadd.f32 0.0, %v2467
      %v2469 = vpop.f32.mrb[0].mxu0
      %2470 = vmatprep.mubr.f32.mxu0 0.0
      %2471 = vmatmul.mubr.f32.gmra.mrb[0].mxu0 %v2329
      %v2472 = vpop.f32.mrb[0].mxu0
      %v2473 = vadd.f32 0.0, %v2472
      %v2474 = vpop.f32.mrb[0].mxu0
      %2475 = vmatprep.mubr.f32.mxu0 0.0
      %2476 = vmatmul.mubr.f32.gmra.mrb[0].mxu0 %v2330
      %v2477 = vpop.f32.mrb[0].mxu0
      %v2478 = vadd.f32 0.0, %v2477
      %v2479 = vpop.f32.mrb[0].mxu0
      %2480 = vmatprep.mubr.f32.mxu0 0.0
      %2481 = vmatmul.mubr.f32.gmra.mrb[0].mxu0 %v2331
      %v2482 = vpop.f32.mrb[0].mxu0
      %v2483 = vadd.f32 0.0, %v2482
      %v2484 = vpop.f32.mrb[0].mxu0
      %2485 = vmatprep.mubr.f32.mxu0 0.0
      %2486 = vmatmul.mubr.f32.gmra.mrb[0].mxu0 %v2332
      %v2487 = vpop.f32.mrb[0].mxu0
      %v2488 = vadd.f32 0.0, %v2487
      %v2489 = vpop.f32.mrb[0].mxu0
      %2490 = vmatprep.mubr.f32.mxu0 0.0
      %2491 = vmatmul.mubr.f32.gmra.mrb[0].mxu0 %v2333
      %v2492 = vpop.f32.mrb[0].mxu0
      %v2493 = vadd.f32 0.0, %v2492
      %v2494 = vpop.f32.mrb[0].mxu0
      %2495 = vmatprep.mubr.f32.mxu0 0.0
      %2496 = vmatmul.mubr.f32.gmra.mrb[0].mxu0 %v2334
      %v2497 = vpop.f32.mrb[0].mxu0
      %v2498 = vadd.f32 0.0, %v2497
      %v2499 = vpop.f32.mrb[0].mxu0
      %2500 = vmatprep.mubr.f32.mxu0 0.0
      %2501 = vmatmul.mubr.f32.gmra.mrb[0].mxu0 %v2335
      %v2502 = vpop.f32.mrb[0].mxu0
      %v2503 = vadd.f32 0.0, %v2502
      %v2504 = vpop.f32.mrb[0].mxu0
      %2505 = vmatprep.mubr.f32.mxu0 0.0
      %2506 = vmatmul.mubr.f32.gmra.mrb[0].mxu0 %v2336
      %v2507 = vpop.f32.mrb[0].mxu0
      %v2508 = vadd.f32 0.0, %v2507
      %v2509 = vpop.f32.mrb[0].mxu0
      %2510 = vmatprep.mubr.f32.mxu0 0.0
      %2511 = vmatmul.mubr.f32.gmra.mrb[0].mxu0 %v2337
      %v2512 = vpop.f32.mrb[0].mxu0
      %v2513 = vadd.f32 0.0, %v2512
      %v2514 = vpop.f32.mrb[0].mxu0
      %2515 = vmatprep.mubr.f32.mxu0 0.0
      %2516 = vmatmul.mubr.f32.gmra.mrb[0].mxu0 %v2338
      %v2517 = vpop.f32.mrb[0].mxu0
      %v2518 = vadd.f32 0.0, %v2517
      %v2519 = vpop.f32.mrb[0].mxu0
      %2520 = vmatprep.mubr.f32.mxu0 0.0
      %2521 = vmatmul.mubr.f32.gmra.mrb[0].mxu0 %v2339
      %v2522 = vpop.f32.mrb[0].mxu0
      %v2523 = vadd.f32 0.0, %v2522
      %v2524 = vpop.f32.mrb[0].mxu0
      %2525 = vmatprep.mubr.f32.mxu0 0.0
      %2526 = vmatmul.mubr.f32.gmra.mrb[0].mxu0 %v2340
      %v2527 = vpop.f32.mrb[0].mxu0
      %v2528 = vadd.f32 0.0, %v2527
      %v2529 = vpop.f32.mrb[0].mxu0
      %2530 = vmatprep.mubr.f32.mxu0 0.0
      %2531 = vmatmul.mubr.f32.gmra.mrb[0].mxu0 %v2341
      %v2532 = vpop.f32.mrb[0].mxu0
      %v2533 = vadd.f32 0.0, %v2532
      %v2534 = vpop.f32.mrb[0].mxu0
      %2535 = vmatprep.mubr.f32.mxu0 0.0
      %2536 = vmatmul.mubr.f32.gmra.mrb[0].mxu0 %v2342
      %v2537 = vpop.f32.mrb[0].mxu0
      %v2538 = vadd.f32 0.0, %v2537
      %v2539 = vpop.f32.mrb[0].mxu0
      %2540 = vmatprep.mubr.f32.mxu0 0.0
      %2541 = vmatmul.mubr.f32.gmra.mrb[0].mxu0 %v2343
      %v2542 = vpop.f32.mrb[0].mxu0
      %v2543 = vadd.f32 0.0, %v2542
      %v2544 = vpop.f32.mrb[0].mxu0
      %2545 = vmatprep.mubr.f32.mxu0 0.0
      %2546 = vmatmul.mubr.f32.gmra.mrb[0].mxu0 %v2344
      %v2547 = vpop.f32.mrb[0].mxu0
      %v2548 = vadd.f32 0.0, %v2547
      %v2549 = vpop.f32.mrb[0].mxu0
      %2550 = vmatprep.mubr.f32.mxu0 0.0
      %2551 = vmatmul.mubr.f32.gmra.mrb[0].mxu0 %v2345
      %v2552 = vpop.f32.mrb[0].mxu0
      %v2553 = vadd.f32 0.0, %v2552
      %v2554 = vpop.f32.mrb[0].mxu0
      %2555 = vmatprep.mubr.f32.mxu0 0.0
      %2556 = vmatmul.mubr.f32.gmra.mrb[0].mxu0 %v2346
      %v2557 = vpop.f32.mrb[0].mxu0
      %v2558 = vadd.f32 0.0, %v2557
      %v2559 = vpop.f32.mrb[0].mxu0
      %2560 = vmatprep.mubr.f32.mxu0 0.0
      %2561 = vmatmul.mubr.f32.gmra.mrb[0].mxu0 %v2347
      %v2562 = vpop.f32.mrb[0].mxu0
      %v2563 = vadd.f32 0.0, %v2562
      %v2564 = vpop.f32.mrb[0].mxu0
      %2565 = vmatprep.mubr.f32.mxu0 0.0
      %2566 = vmatmul.mubr.f32.gmra.mrb[0].mxu0 %v2348
      %v2567 = vpop.f32.mrb[0].mxu0
      %v2568 = vadd.f32 0.0, %v2567
      %v2569 = vpop.f32.mrb[0].mxu0
      %2570 = vmatprep.mubr.f32.mxu0 0.0
      %2571 = vmatmul.mubr.f32.gmra.mrb[0].mxu0 %v2349
      %v2572 = vpop.f32.mrb[0].mxu0
      %v2573 = vadd.f32 0.0, %v2572
      %v2574 = vpop.f32.mrb[0].mxu0
      %2575 = vmatprep.mubr.f32.mxu0 0.0
      %2576 = vmatmul.mubr.f32.gmra.mrb[0].mxu0 %v2350
      %v2577 = vpop.f32.mrb[0].mxu0
      %v2578 = vadd.f32 0.0, %v2577
      %v2579 = vpop.f32.mrb[0].mxu0
      %2580 = vmatprep.mubr.f32.mxu0 0.0
      %2581 = vmatmul.mubr.f32.gmra.mrb[0].mxu0 %v2351
      %v2582 = vpop.f32.mrb[0].mxu0
      %v2583 = vadd.f32 0.0, %v2582
      %v2584 = vpop.f32.mrb[0].mxu0
      %2585 = vmatprep.mubr.f32.mxu0 0.0
      %2586 = vmatmul.mubr.f32.gmra.mrb[0].mxu0 %v2352
      %v2587 = vpop.f32.mrb[0].mxu0
      %v2588 = vadd.f32 0.0, %v2587
      %v2589 = vpop.f32.mrb[0].mxu0
      %2590 = vmatprep.mubr.f32.mxu0 0.0
      %2591 = vmatmul.mubr.f32.gmra.mrb[0].mxu0 %v2353
      %v2592 = vpop.f32.mrb[0].mxu0
      %v2593 = vadd.f32 0.0, %v2592
      %v2594 = vpop.f32.mrb[0].mxu0
      %2595 = vmatprep.mubr.f32.mxu0 0.0
      %2596 = vmatmul.mubr.f32.gmra.mrb[0].mxu0 %v2354
      %v2597 = vpop.f32.mrb[0].mxu0
      %v2598 = vadd.f32 0.0, %v2597
      %v2599 = vpop.f32.mrb[0].mxu0
      %2600 = vmatprep.mubr.f32.mxu0 0.0
      %2601 = vmatmul.mubr.f32.gmra.mrb[0].mxu0 %v2355
      %v2602 = vpop.f32.mrb[0].mxu0
      %v2603 = vadd.f32 0.0, %v2602
      %v2604 = vpop.f32.mrb[0].mxu0
      %2605 = vdwg.mxu0
      %v2606 = vadd.f32 %v2356, %v2468
      %v2607 = vadd.f32 %v2357, %v2473
      %v2608 = vadd.f32 %v2358, %v2478
      %v2609 = vadd.f32 %v2359, %v2483
      %v2610 = vadd.f32 %v2360, %v2488
      %v2611 = vadd.f32 %v2361, %v2493
      %v2612 = vadd.f32 %v2362, %v2498
      %v2613 = vadd.f32 %v2363, %v2503
      %v2614 = vadd.f32 %v2364, %v2508
      %v2615 = vadd.f32 %v2365, %v2513
      %v2616 = vadd.f32 %v2366, %v2518
      %v2617 = vadd.f32 %v2367, %v2523
      %v2618 = vadd.f32 %v2368, %v2528
      %v2619 = vadd.f32 %v2369, %v2533
      %v2620 = vadd.f32 %v2370, %v2538
      %v2621 = vadd.f32 %v2371, %v2543
      %v2622 = vadd.f32 %v2372, %v2548
      %v2623 = vadd.f32 %v2373, %v2553
      %v2624 = vadd.f32 %v2374, %v2558
      %v2625 = vadd.f32 %v2375, %v2563
      %v2626 = vadd.f32 %v2376, %v2568
      %v2627 = vadd.f32 %v2377, %v2573
      %v2628 = vadd.f32 %v2378, %v2578
      %v2629 = vadd.f32 %v2379, %v2583
      %v2630 = vadd.f32 %v2380, %v2588
      %v2631 = vadd.f32 %v2381, %v2593
      %v2632 = vadd.f32 %v2382, %v2598
      %v2633 = vadd.f32 %v2383, %v2603
      %2634 = vst [vmem:[#allocation2] sm:$0xff] %v2606
      %2635 = vst [vmem:[#allocation2 + $0x8] sm:$0xff] %v2607
      %2636 = vst [vmem:[#allocation2 + $0x10] sm:$0xff] %v2608
      %2637 = vst [vmem:[#allocation2 + $0x18] sm:$0xff] %v2609
      %2638 = vst [vmem:[#allocation2 + $0x20] sm:$0xff] %v2610
      %2639 = vst [vmem:[#allocation2 + $0x28] sm:$0xff] %v2611
      %2640 = vst [vmem:[#allocation2 + $0x30] sm:$0xff] %v2612
      %2641 = vst [vmem:[#allocation2 + $0x38] sm:$0xff] %v2613
      %2642 = vst [vmem:[#allocation2 + $0x40] sm:$0xff] %v2614
      %2643 = vst [vmem:[#allocation2 + $0x48] sm:$0xff] %v2615
      %2644 = vst [vmem:[#allocation2 + $0x50] sm:$0xff] %v2616
      %2645 = vst [vmem:[#allocation2 + $0x58] sm:$0xff] %v2617
      %2646 = vst [vmem:[#allocation2 + $0x60] sm:$0xff] %v2618
      %2647 = vst [vmem:[#allocation2 + $0x68] sm:$0xff] %v2619
      %2648 = vst [vmem:[#allocation2 + $0x70] sm:$0xff] %v2620
      %2649 = vst [vmem:[#allocation2 + $0x78] sm:$0xff] %v2621
      %2650 = vst [vmem:[#allocation2 + $0x80] sm:$0xff] %v2622
      %2651 = vst [vmem:[#allocation2 + $0x88] sm:$0xff] %v2623
      %2652 = vst [vmem:[#allocation2 + $0x90] sm:$0xff] %v2624
      %2653 = vst [vmem:[#allocation2 + $0x98] sm:$0xff] %v2625
      %2654 = vst [vmem:[#allocation2 + $0xa0] sm:$0xff] %v2626
      %2655 = vst [vmem:[#allocation2 + $0xa8] sm:$0xff] %v2627
      %2656 = vst [vmem:[#allocation2 + $0xb0] sm:$0xff] %v2628
      %2657 = vst [vmem:[#allocation2 + $0xb8] sm:$0xff] %v2629
      %2658 = vst [vmem:[#allocation2 + $0xc0] sm:$0xff] %v2630
      %2659 = vst [vmem:[#allocation2 + $0xc8] sm:$0xff] %v2631
      %2660 = vst [vmem:[#allocation2 + $0xd0] sm:$0xff] %v2632
      %2661 = vst [vmem:[#allocation2 + $0xd8] sm:$0xff] %v2633
      %v2662 = vld [vmem:[%s262 + $0x21] sm:$0xff]
      %v2663 = vld [vmem:[%s262 + $0x29] sm:$0xff]
      %v2664 = vld [vmem:[%s262 + $0x31] sm:$0xff]
      %v2665 = vld [vmem:[%s262 + $0x39] sm:$0xff]
      %v2666 = vld [vmem:[%s262 + $0x41] sm:$0xff]
      %v2667 = vld [vmem:[%s262 + $0x49] sm:$0xff]
      %v2668 = vld [vmem:[%s262 + $0x51] sm:$0xff]
      %v2669 = vld [vmem:[%s262 + $0x59] sm:$0xff]
      %v2670 = vld [vmem:[%s262 + $0x61] sm:$0xff]
      %v2671 = vld [vmem:[%s262 + $0x69] sm:$0xff]
      %v2672 = vld [vmem:[%s262 + $0x71] sm:$0xff]
      %v2673 = vld [vmem:[%s262 + $0x79] sm:$0xff]
      %v2674 = vld [vmem:[%s262 + $0x81] sm:$0xff]
      %v2675 = vld [vmem:[%s262 + $0x89] sm:$0xff]
      %v2676 = vld [vmem:[%s262 + $0x91] sm:$0xff]
      %v2677 = vld [vmem:[%s262 + $0x99] sm:$0xff]
      %v2678 = vld [vmem:[%s262 + $0xa1] sm:$0xff]
      %v2679 = vld [vmem:[%s262 + $0xa9] sm:$0xff]
      %v2680 = vld [vmem:[%s262 + $0xb1] sm:$0xff]
      %v2681 = vld [vmem:[%s262 + $0xb9] sm:$0xff]
      %v2682 = vld [vmem:[%s262 + $0xc1] sm:$0xff]
      %v2683 = vld [vmem:[%s262 + $0xc9] sm:$0xff]
      %v2684 = vld [vmem:[%s262 + $0xd1] sm:$0xff]
      %v2685 = vld [vmem:[%s262 + $0xd9] sm:$0xff]
      %v2686 = vld [vmem:[%s262 + $0xe1] sm:$0xff]
      %v2687 = vld [vmem:[%s262 + $0xe9] sm:$0xff]
      %v2688 = vld [vmem:[%s262 + $0xf1] sm:$0xff]
      %v2689 = vld [vmem:[%s262 + $0xf9] sm:$0xff]
      %v2690 = vld [vmem:[#allocation2] sm:$0xff]
      %v2691 = vld [vmem:[#allocation2 + $0x8] sm:$0xff]
      %v2692 = vld [vmem:[#allocation2 + $0x10] sm:$0xff]
      %v2693 = vld [vmem:[#allocation2 + $0x18] sm:$0xff]
      %v2694 = vld [vmem:[#allocation2 + $0x20] sm:$0xff]
      %v2695 = vld [vmem:[#allocation2 + $0x28] sm:$0xff]
      %v2696 = vld [vmem:[#allocation2 + $0x30] sm:$0xff]
      %v2697 = vld [vmem:[#allocation2 + $0x38] sm:$0xff]
      %v2698 = vld [vmem:[#allocation2 + $0x40] sm:$0xff]
      %v2699 = vld [vmem:[#allocation2 + $0x48] sm:$0xff]
      %v2700 = vld [vmem:[#allocation2 + $0x50] sm:$0xff]
      %v2701 = vld [vmem:[#allocation2 + $0x58] sm:$0xff]
      %v2702 = vld [vmem:[#allocation2 + $0x60] sm:$0xff]
      %v2703 = vld [vmem:[#allocation2 + $0x68] sm:$0xff]
      %v2704 = vld [vmem:[#allocation2 + $0x70] sm:$0xff]
      %v2705 = vld [vmem:[#allocation2 + $0x78] sm:$0xff]
      %v2706 = vld [vmem:[#allocation2 + $0x80] sm:$0xff]
      %v2707 = vld [vmem:[#allocation2 + $0x88] sm:$0xff]
      %v2708 = vld [vmem:[#allocation2 + $0x90] sm:$0xff]
      %v2709 = vld [vmem:[#allocation2 + $0x98] sm:$0xff]
      %v2710 = vld [vmem:[#allocation2 + $0xa0] sm:$0xff]
      %v2711 = vld [vmem:[#allocation2 + $0xa8] sm:$0xff]
      %v2712 = vld [vmem:[#allocation2 + $0xb0] sm:$0xff]
      %v2713 = vld [vmem:[#allocation2 + $0xb8] sm:$0xff]
      %v2714 = vld [vmem:[#allocation2 + $0xc0] sm:$0xff]
      %v2715 = vld [vmem:[#allocation2 + $0xc8] sm:$0xff]
      %v2716 = vld [vmem:[#allocation2 + $0xd0] sm:$0xff]
      %v2717 = vld [vmem:[#allocation2 + $0xd8] sm:$0xff]
      %s2718 = scalar_lea.vmem %s270, 896
      %v2719 = vld [vmem:[%s2718] sm:$0xff]
      %v2720 = vld [vmem:[%s2718 + $0x8] sm:$0xff]
      %v2721 = vld [vmem:[%s2718 + $0x10] sm:$0xff]
      %v2722 = vld [vmem:[%s2718 + $0x18] sm:$0xff]
      %v2723 = vld [vmem:[%s2718 + $0x20] sm:$0xff]
      %v2724 = vld [vmem:[%s2718 + $0x28] sm:$0xff]
      %v2725 = vld [vmem:[%s2718 + $0x30] sm:$0xff]
      %v2726 = vld [vmem:[%s2718 + $0x38] sm:$0xff]
      %v2727 = vld [vmem:[%s2718 + $0x40] sm:$0xff]
      %v2728 = vld [vmem:[%s2718 + $0x48] sm:$0xff]
      %v2729 = vld [vmem:[%s2718 + $0x50] sm:$0xff]
      %v2730 = vld [vmem:[%s2718 + $0x58] sm:$0xff]
      %v2731 = vld [vmem:[%s2718 + $0x60] sm:$0xff]
      %v2732 = vld [vmem:[%s2718 + $0x68] sm:$0xff]
      %v2733 = vld [vmem:[%s2718 + $0x70] sm:$0xff]
      %v2734 = vld [vmem:[%s2718 + $0x78] sm:$0xff]
      %2735 = vmatprep.subr.mxu0 0.0
      %2736 = vmatpush1.msra.mxu0 %v2719
      %2737 = vmatprep.subr.mxu0 0.0
      %2738 = vmatpush1.msra.mxu0 %v2720
      %2739 = vmatprep.subr.mxu0 0.0
      %2740 = vmatpush1.msra.mxu0 %v2721
      %2741 = vmatprep.subr.mxu0 0.0
      %2742 = vmatpush1.msra.mxu0 %v2722
      %2743 = vmatprep.subr.mxu0 0.0
      %2744 = vmatpush1.msra.mxu0 %v2723
      %2745 = vmatprep.subr.mxu0 0.0
      %2746 = vmatpush1.msra.mxu0 %v2724
      %2747 = vmatprep.subr.mxu0 0.0
      %2748 = vmatpush1.msra.mxu0 %v2725
      %2749 = vmatprep.subr.mxu0 0.0
      %2750 = vmatpush1.msra.mxu0 %v2726
      %2751 = vmatprep.subr.mxu0 0.0
      %2752 = vmatpush1.msra.mxu0 %v2727
      %2753 = vmatprep.subr.mxu0 0.0
      %2754 = vmatpush1.msra.mxu0 %v2728
      %2755 = vmatprep.subr.mxu0 0.0
      %2756 = vmatpush1.msra.mxu0 %v2729
      %2757 = vmatprep.subr.mxu0 0.0
      %2758 = vmatpush1.msra.mxu0 %v2730
      %2759 = vmatprep.subr.mxu0 0.0
      %2760 = vmatpush1.msra.mxu0 %v2731
      %2761 = vmatprep.subr.mxu0 0.0
      %2762 = vmatpush1.msra.mxu0 %v2732
      %2763 = vmatprep.subr.mxu0 0.0
      %2764 = vmatpush1.msra.mxu0 %v2733
      %2765 = vmatprep.subr.mxu0 0.0
      %2766 = vmatpush1.msra.mxu0 %v2734
      %2767 = vmatprep.subr.mxu0 0.0
      %2768 = vmatpush1.msra.mxu0 0.0
      %2769 = vmatprep.subr.mxu0 0.0
      %2770 = vmatpush1.msra.mxu0 0.0
      %2771 = vmatprep.subr.mxu0 0.0
      %2772 = vmatpush1.msra.mxu0 0.0
      %2773 = vmatprep.subr.mxu0 0.0
      %2774 = vmatpush1.msra.mxu0 0.0
      %2775 = vmatprep.subr.mxu0 0.0
      %2776 = vmatpush1.msra.mxu0 0.0
      %2777 = vmatprep.subr.mxu0 0.0
      %2778 = vmatpush1.msra.mxu0 0.0
      %2779 = vmatprep.subr.mxu0 0.0
      %2780 = vmatpush1.msra.mxu0 0.0
      %2781 = vmatprep.subr.mxu0 0.0
      %2782 = vmatpush1.msra.mxu0 0.0
      %2783 = vmatprep.subr.mxu0 0.0
      %2784 = vmatpush1.msra.mxu0 0.0
      %2785 = vmatprep.subr.mxu0 0.0
      %2786 = vmatpush1.msra.mxu0 0.0
      %2787 = vmatprep.subr.mxu0 0.0
      %2788 = vmatpush1.msra.mxu0 0.0
      %2789 = vmatprep.subr.mxu0 0.0
      %2790 = vmatpush1.msra.mxu0 0.0
      %2791 = vmatprep.subr.mxu0 0.0
      %2792 = vmatpush1.msra.mxu0 0.0
      %2793 = vmatprep.subr.mxu0 0.0
      %2794 = vmatpush1.msra.mxu0 0.0
      %2795 = vmatprep.subr.mxu0 0.0
      %2796 = vmatpush1.msra.mxu0 0.0
      %2797 = vmatprep.subr.mxu0 0.0
      %2798 = vmatpush1.msra.mxu0 0.0
      %2799 = vmatprep.mubr.f32.mxu0 0.0
      %2800 = vmatmul.mubr.f32.gmra.mrb[0].mxu0 %v2662
      %v2801 = vpop.f32.mrb[0].mxu0
      %v2802 = vadd.f32 0.0, %v2801
      %v2803 = vpop.f32.mrb[0].mxu0
      %2804 = vmatprep.mubr.f32.mxu0 0.0
      %2805 = vmatmul.mubr.f32.gmra.mrb[0].mxu0 %v2663
      %v2806 = vpop.f32.mrb[0].mxu0
      %v2807 = vadd.f32 0.0, %v2806
      %v2808 = vpop.f32.mrb[0].mxu0
      %2809 = vmatprep.mubr.f32.mxu0 0.0
      %2810 = vmatmul.mubr.f32.gmra.mrb[0].mxu0 %v2664
      %v2811 = vpop.f32.mrb[0].mxu0
      %v2812 = vadd.f32 0.0, %v2811
      %v2813 = vpop.f32.mrb[0].mxu0
      %2814 = vmatprep.mubr.f32.mxu0 0.0
      %2815 = vmatmul.mubr.f32.gmra.mrb[0].mxu0 %v2665
      %v2816 = vpop.f32.mrb[0].mxu0
      %v2817 = vadd.f32 0.0, %v2816
      %v2818 = vpop.f32.mrb[0].mxu0
      %2819 = vmatprep.mubr.f32.mxu0 0.0
      %2820 = vmatmul.mubr.f32.gmra.mrb[0].mxu0 %v2666
      %v2821 = vpop.f32.mrb[0].mxu0
      %v2822 = vadd.f32 0.0, %v2821
      %v2823 = vpop.f32.mrb[0].mxu0
      %2824 = vmatprep.mubr.f32.mxu0 0.0
      %2825 = vmatmul.mubr.f32.gmra.mrb[0].mxu0 %v2667
      %v2826 = vpop.f32.mrb[0].mxu0
      %v2827 = vadd.f32 0.0, %v2826
      %v2828 = vpop.f32.mrb[0].mxu0
      %2829 = vmatprep.mubr.f32.mxu0 0.0
      %2830 = vmatmul.mubr.f32.gmra.mrb[0].mxu0 %v2668
      %v2831 = vpop.f32.mrb[0].mxu0
      %v2832 = vadd.f32 0.0, %v2831
      %v2833 = vpop.f32.mrb[0].mxu0
      %2834 = vmatprep.mubr.f32.mxu0 0.0
      %2835 = vmatmul.mubr.f32.gmra.mrb[0].mxu0 %v2669
      %v2836 = vpop.f32.mrb[0].mxu0
      %v2837 = vadd.f32 0.0, %v2836
      %v2838 = vpop.f32.mrb[0].mxu0
      %2839 = vmatprep.mubr.f32.mxu0 0.0
      %2840 = vmatmul.mubr.f32.gmra.mrb[0].mxu0 %v2670
      %v2841 = vpop.f32.mrb[0].mxu0
      %v2842 = vadd.f32 0.0, %v2841
      %v2843 = vpop.f32.mrb[0].mxu0
      %2844 = vmatprep.mubr.f32.mxu0 0.0
      %2845 = vmatmul.mubr.f32.gmra.mrb[0].mxu0 %v2671
      %v2846 = vpop.f32.mrb[0].mxu0
      %v2847 = vadd.f32 0.0, %v2846
      %v2848 = vpop.f32.mrb[0].mxu0
      %2849 = vmatprep.mubr.f32.mxu0 0.0
      %2850 = vmatmul.mubr.f32.gmra.mrb[0].mxu0 %v2672
      %v2851 = vpop.f32.mrb[0].mxu0
      %v2852 = vadd.f32 0.0, %v2851
      %v2853 = vpop.f32.mrb[0].mxu0
      %2854 = vmatprep.mubr.f32.mxu0 0.0
      %2855 = vmatmul.mubr.f32.gmra.mrb[0].mxu0 %v2673
      %v2856 = vpop.f32.mrb[0].mxu0
      %v2857 = vadd.f32 0.0, %v2856
      %v2858 = vpop.f32.mrb[0].mxu0
      %2859 = vmatprep.mubr.f32.mxu0 0.0
      %2860 = vmatmul.mubr.f32.gmra.mrb[0].mxu0 %v2674
      %v2861 = vpop.f32.mrb[0].mxu0
      %v2862 = vadd.f32 0.0, %v2861
      %v2863 = vpop.f32.mrb[0].mxu0
      %2864 = vmatprep.mubr.f32.mxu0 0.0
      %2865 = vmatmul.mubr.f32.gmra.mrb[0].mxu0 %v2675
      %v2866 = vpop.f32.mrb[0].mxu0
      %v2867 = vadd.f32 0.0, %v2866
      %v2868 = vpop.f32.mrb[0].mxu0
      %2869 = vmatprep.mubr.f32.mxu0 0.0
      %2870 = vmatmul.mubr.f32.gmra.mrb[0].mxu0 %v2676
      %v2871 = vpop.f32.mrb[0].mxu0
      %v2872 = vadd.f32 0.0, %v2871
      %v2873 = vpop.f32.mrb[0].mxu0
      %2874 = vmatprep.mubr.f32.mxu0 0.0
      %2875 = vmatmul.mubr.f32.gmra.mrb[0].mxu0 %v2677
      %v2876 = vpop.f32.mrb[0].mxu0
      %v2877 = vadd.f32 0.0, %v2876
      %v2878 = vpop.f32.mrb[0].mxu0
      %2879 = vmatprep.mubr.f32.mxu0 0.0
      %2880 = vmatmul.mubr.f32.gmra.mrb[0].mxu0 %v2678
      %v2881 = vpop.f32.mrb[0].mxu0
      %v2882 = vadd.f32 0.0, %v2881
      %v2883 = vpop.f32.mrb[0].mxu0
      %2884 = vmatprep.mubr.f32.mxu0 0.0
      %2885 = vmatmul.mubr.f32.gmra.mrb[0].mxu0 %v2679
      %v2886 = vpop.f32.mrb[0].mxu0
      %v2887 = vadd.f32 0.0, %v2886
      %v2888 = vpop.f32.mrb[0].mxu0
      %2889 = vmatprep.mubr.f32.mxu0 0.0
      %2890 = vmatmul.mubr.f32.gmra.mrb[0].mxu0 %v2680
      %v2891 = vpop.f32.mrb[0].mxu0
      %v2892 = vadd.f32 0.0, %v2891
      %v2893 = vpop.f32.mrb[0].mxu0
      %2894 = vmatprep.mubr.f32.mxu0 0.0
      %2895 = vmatmul.mubr.f32.gmra.mrb[0].mxu0 %v2681
      %v2896 = vpop.f32.mrb[0].mxu0
      %v2897 = vadd.f32 0.0, %v2896
      %v2898 = vpop.f32.mrb[0].mxu0
      %2899 = vmatprep.mubr.f32.mxu0 0.0
      %2900 = vmatmul.mubr.f32.gmra.mrb[0].mxu0 %v2682
      %v2901 = vpop.f32.mrb[0].mxu0
      %v2902 = vadd.f32 0.0, %v2901
      %v2903 = vpop.f32.mrb[0].mxu0
      %2904 = vmatprep.mubr.f32.mxu0 0.0
      %2905 = vmatmul.mubr.f32.gmra.mrb[0].mxu0 %v2683
      %v2906 = vpop.f32.mrb[0].mxu0
      %v2907 = vadd.f32 0.0, %v2906
      %v2908 = vpop.f32.mrb[0].mxu0
      %2909 = vmatprep.mubr.f32.mxu0 0.0
      %2910 = vmatmul.mubr.f32.gmra.mrb[0].mxu0 %v2684
      %v2911 = vpop.f32.mrb[0].mxu0
      %v2912 = vadd.f32 0.0, %v2911
      %v2913 = vpop.f32.mrb[0].mxu0
      %2914 = vmatprep.mubr.f32.mxu0 0.0
      %2915 = vmatmul.mubr.f32.gmra.mrb[0].mxu0 %v2685
      %v2916 = vpop.f32.mrb[0].mxu0
      %v2917 = vadd.f32 0.0, %v2916
      %v2918 = vpop.f32.mrb[0].mxu0
      %2919 = vmatprep.mubr.f32.mxu0 0.0
      %2920 = vmatmul.mubr.f32.gmra.mrb[0].mxu0 %v2686
      %v2921 = vpop.f32.mrb[0].mxu0
      %v2922 = vadd.f32 0.0, %v2921
      %v2923 = vpop.f32.mrb[0].mxu0
      %2924 = vmatprep.mubr.f32.mxu0 0.0
      %2925 = vmatmul.mubr.f32.gmra.mrb[0].mxu0 %v2687
      %v2926 = vpop.f32.mrb[0].mxu0
      %v2927 = vadd.f32 0.0, %v2926
      %v2928 = vpop.f32.mrb[0].mxu0
      %2929 = vmatprep.mubr.f32.mxu0 0.0
      %2930 = vmatmul.mubr.f32.gmra.mrb[0].mxu0 %v2688
      %v2931 = vpop.f32.mrb[0].mxu0
      %v2932 = vadd.f32 0.0, %v2931
      %v2933 = vpop.f32.mrb[0].mxu0
      %2934 = vmatprep.mubr.f32.mxu0 0.0
      %2935 = vmatmul.mubr.f32.gmra.mrb[0].mxu0 %v2689
      %v2936 = vpop.f32.mrb[0].mxu0
      %v2937 = vadd.f32 0.0, %v2936
      %v2938 = vpop.f32.mrb[0].mxu0
      %2939 = vdwg.mxu0
      %v2940 = vadd.f32 %v2690, %v2802
      %v2941 = vadd.f32 %v2691, %v2807
      %v2942 = vadd.f32 %v2692, %v2812
      %v2943 = vadd.f32 %v2693, %v2817
      %v2944 = vadd.f32 %v2694, %v2822
      %v2945 = vadd.f32 %v2695, %v2827
      %v2946 = vadd.f32 %v2696, %v2832
      %v2947 = vadd.f32 %v2697, %v2837
      %v2948 = vadd.f32 %v2698, %v2842
      %v2949 = vadd.f32 %v2699, %v2847
      %v2950 = vadd.f32 %v2700, %v2852
      %v2951 = vadd.f32 %v2701, %v2857
      %v2952 = vadd.f32 %v2702, %v2862
      %v2953 = vadd.f32 %v2703, %v2867
      %v2954 = vadd.f32 %v2704, %v2872
      %v2955 = vadd.f32 %v2705, %v2877
      %v2956 = vadd.f32 %v2706, %v2882
      %v2957 = vadd.f32 %v2707, %v2887
      %v2958 = vadd.f32 %v2708, %v2892
      %v2959 = vadd.f32 %v2709, %v2897
      %v2960 = vadd.f32 %v2710, %v2902
      %v2961 = vadd.f32 %v2711, %v2907
      %v2962 = vadd.f32 %v2712, %v2912
      %v2963 = vadd.f32 %v2713, %v2917
      %v2964 = vadd.f32 %v2714, %v2922
      %v2965 = vadd.f32 %v2715, %v2927
      %v2966 = vadd.f32 %v2716, %v2932
      %v2967 = vadd.f32 %v2717, %v2937
      %2968 = vst [vmem:[#allocation2] sm:$0xff] %v2940
      %2969 = vst [vmem:[#allocation2 + $0x8] sm:$0xff] %v2941
      %2970 = vst [vmem:[#allocation2 + $0x10] sm:$0xff] %v2942
      %2971 = vst [vmem:[#allocation2 + $0x18] sm:$0xff] %v2943
      %2972 = vst [vmem:[#allocation2 + $0x20] sm:$0xff] %v2944
      %2973 = vst [vmem:[#allocation2 + $0x28] sm:$0xff] %v2945
      %2974 = vst [vmem:[#allocation2 + $0x30] sm:$0xff] %v2946
      %2975 = vst [vmem:[#allocation2 + $0x38] sm:$0xff] %v2947
      %2976 = vst [vmem:[#allocation2 + $0x40] sm:$0xff] %v2948
      %2977 = vst [vmem:[#allocation2 + $0x48] sm:$0xff] %v2949
      %2978 = vst [vmem:[#allocation2 + $0x50] sm:$0xff] %v2950
      %2979 = vst [vmem:[#allocation2 + $0x58] sm:$0xff] %v2951
      %2980 = vst [vmem:[#allocation2 + $0x60] sm:$0xff] %v2952
      %2981 = vst [vmem:[#allocation2 + $0x68] sm:$0xff] %v2953
      %2982 = vst [vmem:[#allocation2 + $0x70] sm:$0xff] %v2954
      %2983 = vst [vmem:[#allocation2 + $0x78] sm:$0xff] %v2955
      %2984 = vst [vmem:[#allocation2 + $0x80] sm:$0xff] %v2956
      %2985 = vst [vmem:[#allocation2 + $0x88] sm:$0xff] %v2957
      %2986 = vst [vmem:[#allocation2 + $0x90] sm:$0xff] %v2958
      %2987 = vst [vmem:[#allocation2 + $0x98] sm:$0xff] %v2959
      %2988 = vst [vmem:[#allocation2 + $0xa0] sm:$0xff] %v2960
      %2989 = vst [vmem:[#allocation2 + $0xa8] sm:$0xff] %v2961
      %2990 = vst [vmem:[#allocation2 + $0xb0] sm:$0xff] %v2962
      %2991 = vst [vmem:[#allocation2 + $0xb8] sm:$0xff] %v2963
      %2992 = vst [vmem:[#allocation2 + $0xc0] sm:$0xff] %v2964
      %2993 = vst [vmem:[#allocation2 + $0xc8] sm:$0xff] %v2965
      %2994 = vst [vmem:[#allocation2 + $0xd0] sm:$0xff] %v2966
      %2995 = vst [vmem:[#allocation2 + $0xd8] sm:$0xff] %v2967
      %v2996 = vld [vmem:[%s262 + $0x22] sm:$0xff]
      %v2997 = vld [vmem:[%s262 + $0x2a] sm:$0xff]
      %v2998 = vld [vmem:[%s262 + $0x32] sm:$0xff]
      %v2999 = vld [vmem:[%s262 + $0x3a] sm:$0xff]
      %v3000 = vld [vmem:[%s262 + $0x42] sm:$0xff]
      %v3001 = vld [vmem:[%s262 + $0x4a] sm:$0xff]
      %v3002 = vld [vmem:[%s262 + $0x52] sm:$0xff]
      %v3003 = vld [vmem:[%s262 + $0x5a] sm:$0xff]
      %v3004 = vld [vmem:[%s262 + $0x62] sm:$0xff]
      %v3005 = vld [vmem:[%s262 + $0x6a] sm:$0xff]
      %v3006 = vld [vmem:[%s262 + $0x72] sm:$0xff]
      %v3007 = vld [vmem:[%s262 + $0x7a] sm:$0xff]
      %v3008 = vld [vmem:[%s262 + $0x82] sm:$0xff]
      %v3009 = vld [vmem:[%s262 + $0x8a] sm:$0xff]
      %v3010 = vld [vmem:[%s262 + $0x92] sm:$0xff]
      %v3011 = vld [vmem:[%s262 + $0x9a] sm:$0xff]
      %v3012 = vld [vmem:[%s262 + $0xa2] sm:$0xff]
      %v3013 = vld [vmem:[%s262 + $0xaa] sm:$0xff]
      %v3014 = vld [vmem:[%s262 + $0xb2] sm:$0xff]
      %v3015 = vld [vmem:[%s262 + $0xba] sm:$0xff]
      %v3016 = vld [vmem:[%s262 + $0xc2] sm:$0xff]
      %v3017 = vld [vmem:[%s262 + $0xca] sm:$0xff]
      %v3018 = vld [vmem:[%s262 + $0xd2] sm:$0xff]
      %v3019 = vld [vmem:[%s262 + $0xda] sm:$0xff]
      %v3020 = vld [vmem:[%s262 + $0xe2] sm:$0xff]
      %v3021 = vld [vmem:[%s262 + $0xea] sm:$0xff]
      %v3022 = vld [vmem:[%s262 + $0xf2] sm:$0xff]
      %v3023 = vld [vmem:[%s262 + $0xfa] sm:$0xff]
      %v3024 = vld [vmem:[#allocation2] sm:$0xff]
      %v3025 = vld [vmem:[#allocation2 + $0x8] sm:$0xff]
      %v3026 = vld [vmem:[#allocation2 + $0x10] sm:$0xff]
      %v3027 = vld [vmem:[#allocation2 + $0x18] sm:$0xff]
      %v3028 = vld [vmem:[#allocation2 + $0x20] sm:$0xff]
      %v3029 = vld [vmem:[#allocation2 + $0x28] sm:$0xff]
      %v3030 = vld [vmem:[#allocation2 + $0x30] sm:$0xff]
      %v3031 = vld [vmem:[#allocation2 + $0x38] sm:$0xff]
      %v3032 = vld [vmem:[#allocation2 + $0x40] sm:$0xff]
      %v3033 = vld [vmem:[#allocation2 + $0x48] sm:$0xff]
      %v3034 = vld [vmem:[#allocation2 + $0x50] sm:$0xff]
      %v3035 = vld [vmem:[#allocation2 + $0x58] sm:$0xff]
      %v3036 = vld [vmem:[#allocation2 + $0x60] sm:$0xff]
      %v3037 = vld [vmem:[#allocation2 + $0x68] sm:$0xff]
      %v3038 = vld [vmem:[#allocation2 + $0x70] sm:$0xff]
      %v3039 = vld [vmem:[#allocation2 + $0x78] sm:$0xff]
      %v3040 = vld [vmem:[#allocation2 + $0x80] sm:$0xff]
      %v3041 = vld [vmem:[#allocation2 + $0x88] sm:$0xff]
      %v3042 = vld [vmem:[#allocation2 + $0x90] sm:$0xff]
      %v3043 = vld [vmem:[#allocation2 + $0x98] sm:$0xff]
      %v3044 = vld [vmem:[#allocation2 + $0xa0] sm:$0xff]
      %v3045 = vld [vmem:[#allocation2 + $0xa8] sm:$0xff]
      %v3046 = vld [vmem:[#allocation2 + $0xb0] sm:$0xff]
      %v3047 = vld [vmem:[#allocation2 + $0xb8] sm:$0xff]
      %v3048 = vld [vmem:[#allocation2 + $0xc0] sm:$0xff]
      %v3049 = vld [vmem:[#allocation2 + $0xc8] sm:$0xff]
      %v3050 = vld [vmem:[#allocation2 + $0xd0] sm:$0xff]
      %v3051 = vld [vmem:[#allocation2 + $0xd8] sm:$0xff]
      %s3052 = scalar_lea.vmem %s270, 1024
      %v3053 = vld [vmem:[%s3052] sm:$0xff]
      %v3054 = vld [vmem:[%s3052 + $0x8] sm:$0xff]
      %v3055 = vld [vmem:[%s3052 + $0x10] sm:$0xff]
      %v3056 = vld [vmem:[%s3052 + $0x18] sm:$0xff]
      %v3057 = vld [vmem:[%s3052 + $0x20] sm:$0xff]
      %v3058 = vld [vmem:[%s3052 + $0x28] sm:$0xff]
      %v3059 = vld [vmem:[%s3052 + $0x30] sm:$0xff]
      %v3060 = vld [vmem:[%s3052 + $0x38] sm:$0xff]
      %v3061 = vld [vmem:[%s3052 + $0x40] sm:$0xff]
      %v3062 = vld [vmem:[%s3052 + $0x48] sm:$0xff]
      %v3063 = vld [vmem:[%s3052 + $0x50] sm:$0xff]
      %v3064 = vld [vmem:[%s3052 + $0x58] sm:$0xff]
      %v3065 = vld [vmem:[%s3052 + $0x60] sm:$0xff]
      %v3066 = vld [vmem:[%s3052 + $0x68] sm:$0xff]
      %v3067 = vld [vmem:[%s3052 + $0x70] sm:$0xff]
      %v3068 = vld [vmem:[%s3052 + $0x78] sm:$0xff]
      %3069 = vmatprep.subr.mxu0 0.0
      %3070 = vmatpush1.msra.mxu0 %v3053
      %3071 = vmatprep.subr.mxu0 0.0
      %3072 = vmatpush1.msra.mxu0 %v3054
      %3073 = vmatprep.subr.mxu0 0.0
      %3074 = vmatpush1.msra.mxu0 %v3055
      %3075 = vmatprep.subr.mxu0 0.0
      %3076 = vmatpush1.msra.mxu0 %v3056
      %3077 = vmatprep.subr.mxu0 0.0
      %3078 = vmatpush1.msra.mxu0 %v3057
      %3079 = vmatprep.subr.mxu0 0.0
      %3080 = vmatpush1.msra.mxu0 %v3058
      %3081 = vmatprep.subr.mxu0 0.0
      %3082 = vmatpush1.msra.mxu0 %v3059
      %3083 = vmatprep.subr.mxu0 0.0
      %3084 = vmatpush1.msra.mxu0 %v3060
      %3085 = vmatprep.subr.mxu0 0.0
      %3086 = vmatpush1.msra.mxu0 %v3061
      %3087 = vmatprep.subr.mxu0 0.0
      %3088 = vmatpush1.msra.mxu0 %v3062
      %3089 = vmatprep.subr.mxu0 0.0
      %3090 = vmatpush1.msra.mxu0 %v3063
      %3091 = vmatprep.subr.mxu0 0.0
      %3092 = vmatpush1.msra.mxu0 %v3064
      %3093 = vmatprep.subr.mxu0 0.0
      %3094 = vmatpush1.msra.mxu0 %v3065
      %3095 = vmatprep.subr.mxu0 0.0
      %3096 = vmatpush1.msra.mxu0 %v3066
      %3097 = vmatprep.subr.mxu0 0.0
      %3098 = vmatpush1.msra.mxu0 %v3067
      %3099 = vmatprep.subr.mxu0 0.0
      %3100 = vmatpush1.msra.mxu0 %v3068
      %3101 = vmatprep.subr.mxu0 0.0
      %3102 = vmatpush1.msra.mxu0 0.0
      %3103 = vmatprep.subr.mxu0 0.0
      %3104 = vmatpush1.msra.mxu0 0.0
      %3105 = vmatprep.subr.mxu0 0.0
      %3106 = vmatpush1.msra.mxu0 0.0
      %3107 = vmatprep.subr.mxu0 0.0
      %3108 = vmatpush1.msra.mxu0 0.0
      %3109 = vmatprep.subr.mxu0 0.0
      %3110 = vmatpush1.msra.mxu0 0.0
      %3111 = vmatprep.subr.mxu0 0.0
      %3112 = vmatpush1.msra.mxu0 0.0
      %3113 = vmatprep.subr.mxu0 0.0
      %3114 = vmatpush1.msra.mxu0 0.0
      %3115 = vmatprep.subr.mxu0 0.0
      %3116 = vmatpush1.msra.mxu0 0.0
      %3117 = vmatprep.subr.mxu0 0.0
      %3118 = vmatpush1.msra.mxu0 0.0
      %3119 = vmatprep.subr.mxu0 0.0
      %3120 = vmatpush1.msra.mxu0 0.0
      %3121 = vmatprep.subr.mxu0 0.0
      %3122 = vmatpush1.msra.mxu0 0.0
      %3123 = vmatprep.subr.mxu0 0.0
      %3124 = vmatpush1.msra.mxu0 0.0
      %3125 = vmatprep.subr.mxu0 0.0
      %3126 = vmatpush1.msra.mxu0 0.0
      %3127 = vmatprep.subr.mxu0 0.0
      %3128 = vmatpush1.msra.mxu0 0.0
      %3129 = vmatprep.subr.mxu0 0.0
      %3130 = vmatpush1.msra.mxu0 0.0
      %3131 = vmatprep.subr.mxu0 0.0
      %3132 = vmatpush1.msra.mxu0 0.0
      %3133 = vmatprep.mubr.f32.mxu0 0.0
      %3134 = vmatmul.mubr.f32.gmra.mrb[0].mxu0 %v2996
      %v3135 = vpop.f32.mrb[0].mxu0
      %v3136 = vadd.f32 0.0, %v3135
      %v3137 = vpop.f32.mrb[0].mxu0
      %3138 = vmatprep.mubr.f32.mxu0 0.0
      %3139 = vmatmul.mubr.f32.gmra.mrb[0].mxu0 %v2997
      %v3140 = vpop.f32.mrb[0].mxu0
      %v3141 = vadd.f32 0.0, %v3140
      %v3142 = vpop.f32.mrb[0].mxu0
      %3143 = vmatprep.mubr.f32.mxu0 0.0
      %3144 = vmatmul.mubr.f32.gmra.mrb[0].mxu0 %v2998
      %v3145 = vpop.f32.mrb[0].mxu0
      %v3146 = vadd.f32 0.0, %v3145
      %v3147 = vpop.f32.mrb[0].mxu0
      %3148 = vmatprep.mubr.f32.mxu0 0.0
      %3149 = vmatmul.mubr.f32.gmra.mrb[0].mxu0 %v2999
      %v3150 = vpop.f32.mrb[0].mxu0
      %v3151 = vadd.f32 0.0, %v3150
      %v3152 = vpop.f32.mrb[0].mxu0
      %3153 = vmatprep.mubr.f32.mxu0 0.0
      %3154 = vmatmul.mubr.f32.gmra.mrb[0].mxu0 %v3000
      %v3155 = vpop.f32.mrb[0].mxu0
      %v3156 = vadd.f32 0.0, %v3155
      %v3157 = vpop.f32.mrb[0].mxu0
      %3158 = vmatprep.mubr.f32.mxu0 0.0
      %3159 = vmatmul.mubr.f32.gmra.mrb[0].mxu0 %v3001
      %v3160 = vpop.f32.mrb[0].mxu0
      %v3161 = vadd.f32 0.0, %v3160
      %v3162 = vpop.f32.mrb[0].mxu0
      %3163 = vmatprep.mubr.f32.mxu0 0.0
      %3164 = vmatmul.mubr.f32.gmra.mrb[0].mxu0 %v3002
      %v3165 = vpop.f32.mrb[0].mxu0
      %v3166 = vadd.f32 0.0, %v3165
      %v3167 = vpop.f32.mrb[0].mxu0
      %3168 = vmatprep.mubr.f32.mxu0 0.0
      %3169 = vmatmul.mubr.f32.gmra.mrb[0].mxu0 %v3003
      %v3170 = vpop.f32.mrb[0].mxu0
      %v3171 = vadd.f32 0.0, %v3170
      %v3172 = vpop.f32.mrb[0].mxu0
      %3173 = vmatprep.mubr.f32.mxu0 0.0
      %3174 = vmatmul.mubr.f32.gmra.mrb[0].mxu0 %v3004
      %v3175 = vpop.f32.mrb[0].mxu0
      %v3176 = vadd.f32 0.0, %v3175
      %v3177 = vpop.f32.mrb[0].mxu0
      %3178 = vmatprep.mubr.f32.mxu0 0.0
      %3179 = vmatmul.mubr.f32.gmra.mrb[0].mxu0 %v3005
      %v3180 = vpop.f32.mrb[0].mxu0
      %v3181 = vadd.f32 0.0, %v3180
      %v3182 = vpop.f32.mrb[0].mxu0
      %3183 = vmatprep.mubr.f32.mxu0 0.0
      %3184 = vmatmul.mubr.f32.gmra.mrb[0].mxu0 %v3006
      %v3185 = vpop.f32.mrb[0].mxu0
      %v3186 = vadd.f32 0.0, %v3185
      %v3187 = vpop.f32.mrb[0].mxu0
      %3188 = vmatprep.mubr.f32.mxu0 0.0
      %3189 = vmatmul.mubr.f32.gmra.mrb[0].mxu0 %v3007
      %v3190 = vpop.f32.mrb[0].mxu0
      %v3191 = vadd.f32 0.0, %v3190
      %v3192 = vpop.f32.mrb[0].mxu0
      %3193 = vmatprep.mubr.f32.mxu0 0.0
      %3194 = vmatmul.mubr.f32.gmra.mrb[0].mxu0 %v3008
      %v3195 = vpop.f32.mrb[0].mxu0
      %v3196 = vadd.f32 0.0, %v3195
      %v3197 = vpop.f32.mrb[0].mxu0
      %3198 = vmatprep.mubr.f32.mxu0 0.0
      %3199 = vmatmul.mubr.f32.gmra.mrb[0].mxu0 %v3009
      %v3200 = vpop.f32.mrb[0].mxu0
      %v3201 = vadd.f32 0.0, %v3200
      %v3202 = vpop.f32.mrb[0].mxu0
      %3203 = vmatprep.mubr.f32.mxu0 0.0
      %3204 = vmatmul.mubr.f32.gmra.mrb[0].mxu0 %v3010
      %v3205 = vpop.f32.mrb[0].mxu0
      %v3206 = vadd.f32 0.0, %v3205
      %v3207 = vpop.f32.mrb[0].mxu0
      %3208 = vmatprep.mubr.f32.mxu0 0.0
      %3209 = vmatmul.mubr.f32.gmra.mrb[0].mxu0 %v3011
      %v3210 = vpop.f32.mrb[0].mxu0
      %v3211 = vadd.f32 0.0, %v3210
      %v3212 = vpop.f32.mrb[0].mxu0
      %3213 = vmatprep.mubr.f32.mxu0 0.0
      %3214 = vmatmul.mubr.f32.gmra.mrb[0].mxu0 %v3012
      %v3215 = vpop.f32.mrb[0].mxu0
      %v3216 = vadd.f32 0.0, %v3215
      %v3217 = vpop.f32.mrb[0].mxu0
      %3218 = vmatprep.mubr.f32.mxu0 0.0
      %3219 = vmatmul.mubr.f32.gmra.mrb[0].mxu0 %v3013
      %v3220 = vpop.f32.mrb[0].mxu0
      %v3221 = vadd.f32 0.0, %v3220
      %v3222 = vpop.f32.mrb[0].mxu0
      %3223 = vmatprep.mubr.f32.mxu0 0.0
      %3224 = vmatmul.mubr.f32.gmra.mrb[0].mxu0 %v3014
      %v3225 = vpop.f32.mrb[0].mxu0
      %v3226 = vadd.f32 0.0, %v3225
      %v3227 = vpop.f32.mrb[0].mxu0
      %3228 = vmatprep.mubr.f32.mxu0 0.0
      %3229 = vmatmul.mubr.f32.gmra.mrb[0].mxu0 %v3015
      %v3230 = vpop.f32.mrb[0].mxu0
      %v3231 = vadd.f32 0.0, %v3230
      %v3232 = vpop.f32.mrb[0].mxu0
      %3233 = vmatprep.mubr.f32.mxu0 0.0
      %3234 = vmatmul.mubr.f32.gmra.mrb[0].mxu0 %v3016
      %v3235 = vpop.f32.mrb[0].mxu0
      %v3236 = vadd.f32 0.0, %v3235
      %v3237 = vpop.f32.mrb[0].mxu0
      %3238 = vmatprep.mubr.f32.mxu0 0.0
      %3239 = vmatmul.mubr.f32.gmra.mrb[0].mxu0 %v3017
      %v3240 = vpop.f32.mrb[0].mxu0
      %v3241 = vadd.f32 0.0, %v3240
      %v3242 = vpop.f32.mrb[0].mxu0
      %3243 = vmatprep.mubr.f32.mxu0 0.0
      %3244 = vmatmul.mubr.f32.gmra.mrb[0].mxu0 %v3018
      %v3245 = vpop.f32.mrb[0].mxu0
      %v3246 = vadd.f32 0.0, %v3245
      %v3247 = vpop.f32.mrb[0].mxu0
      %3248 = vmatprep.mubr.f32.mxu0 0.0
      %3249 = vmatmul.mubr.f32.gmra.mrb[0].mxu0 %v3019
      %v3250 = vpop.f32.mrb[0].mxu0
      %v3251 = vadd.f32 0.0, %v3250
      %v3252 = vpop.f32.mrb[0].mxu0
      %3253 = vmatprep.mubr.f32.mxu0 0.0
      %3254 = vmatmul.mubr.f32.gmra.mrb[0].mxu0 %v3020
      %v3255 = vpop.f32.mrb[0].mxu0
      %v3256 = vadd.f32 0.0, %v3255
      %v3257 = vpop.f32.mrb[0].mxu0
      %3258 = vmatprep.mubr.f32.mxu0 0.0
      %3259 = vmatmul.mubr.f32.gmra.mrb[0].mxu0 %v3021
      %v3260 = vpop.f32.mrb[0].mxu0
      %v3261 = vadd.f32 0.0, %v3260
      %v3262 = vpop.f32.mrb[0].mxu0
      %3263 = vmatprep.mubr.f32.mxu0 0.0
      %3264 = vmatmul.mubr.f32.gmra.mrb[0].mxu0 %v3022
      %v3265 = vpop.f32.mrb[0].mxu0
      %v3266 = vadd.f32 0.0, %v3265
      %v3267 = vpop.f32.mrb[0].mxu0
      %3268 = vmatprep.mubr.f32.mxu0 0.0
      %3269 = vmatmul.mubr.f32.gmra.mrb[0].mxu0 %v3023
      %v3270 = vpop.f32.mrb[0].mxu0
      %v3271 = vadd.f32 0.0, %v3270
      %v3272 = vpop.f32.mrb[0].mxu0
      %3273 = vdwg.mxu0
      %v3274 = vadd.f32 %v3024, %v3136
      %v3275 = vadd.f32 %v3025, %v3141
      %v3276 = vadd.f32 %v3026, %v3146
      %v3277 = vadd.f32 %v3027, %v3151
      %v3278 = vadd.f32 %v3028, %v3156
      %v3279 = vadd.f32 %v3029, %v3161
      %v3280 = vadd.f32 %v3030, %v3166
      %v3281 = vadd.f32 %v3031, %v3171
      %v3282 = vadd.f32 %v3032, %v3176
      %v3283 = vadd.f32 %v3033, %v3181
      %v3284 = vadd.f32 %v3034, %v3186
      %v3285 = vadd.f32 %v3035, %v3191
      %v3286 = vadd.f32 %v3036, %v3196
      %v3287 = vadd.f32 %v3037, %v3201
      %v3288 = vadd.f32 %v3038, %v3206
      %v3289 = vadd.f32 %v3039, %v3211
      %v3290 = vadd.f32 %v3040, %v3216
      %v3291 = vadd.f32 %v3041, %v3221
      %v3292 = vadd.f32 %v3042, %v3226
      %v3293 = vadd.f32 %v3043, %v3231
      %v3294 = vadd.f32 %v3044, %v3236
      %v3295 = vadd.f32 %v3045, %v3241
      %v3296 = vadd.f32 %v3046, %v3246
      %v3297 = vadd.f32 %v3047, %v3251
      %v3298 = vadd.f32 %v3048, %v3256
      %v3299 = vadd.f32 %v3049, %v3261
      %v3300 = vadd.f32 %v3050, %v3266
      %v3301 = vadd.f32 %v3051, %v3271
      %3302 = vst [vmem:[#allocation2] sm:$0xff] %v3274
      %3303 = vst [vmem:[#allocation2 + $0x8] sm:$0xff] %v3275
      %3304 = vst [vmem:[#allocation2 + $0x10] sm:$0xff] %v3276
      %3305 = vst [vmem:[#allocation2 + $0x18] sm:$0xff] %v3277
      %3306 = vst [vmem:[#allocation2 + $0x20] sm:$0xff] %v3278
      %3307 = vst [vmem:[#allocation2 + $0x28] sm:$0xff] %v3279
      %3308 = vst [vmem:[#allocation2 + $0x30] sm:$0xff] %v3280
      %3309 = vst [vmem:[#allocation2 + $0x38] sm:$0xff] %v3281
      %3310 = vst [vmem:[#allocation2 + $0x40] sm:$0xff] %v3282
      %3311 = vst [vmem:[#allocation2 + $0x48] sm:$0xff] %v3283
      %3312 = vst [vmem:[#allocation2 + $0x50] sm:$0xff] %v3284
      %3313 = vst [vmem:[#allocation2 + $0x58] sm:$0xff] %v3285
      %3314 = vst [vmem:[#allocation2 + $0x60] sm:$0xff] %v3286
      %3315 = vst [vmem:[#allocation2 + $0x68] sm:$0xff] %v3287
      %3316 = vst [vmem:[#allocation2 + $0x70] sm:$0xff] %v3288
      %3317 = vst [vmem:[#allocation2 + $0x78] sm:$0xff] %v3289
      %3318 = vst [vmem:[#allocation2 + $0x80] sm:$0xff] %v3290
      %3319 = vst [vmem:[#allocation2 + $0x88] sm:$0xff] %v3291
      %3320 = vst [vmem:[#allocation2 + $0x90] sm:$0xff] %v3292
      %3321 = vst [vmem:[#allocation2 + $0x98] sm:$0xff] %v3293
      %3322 = vst [vmem:[#allocation2 + $0xa0] sm:$0xff] %v3294
      %3323 = vst [vmem:[#allocation2 + $0xa8] sm:$0xff] %v3295
      %3324 = vst [vmem:[#allocation2 + $0xb0] sm:$0xff] %v3296
      %3325 = vst [vmem:[#allocation2 + $0xb8] sm:$0xff] %v3297
      %3326 = vst [vmem:[#allocation2 + $0xc0] sm:$0xff] %v3298
      %3327 = vst [vmem:[#allocation2 + $0xc8] sm:$0xff] %v3299
      %3328 = vst [vmem:[#allocation2 + $0xd0] sm:$0xff] %v3300
      %3329 = vst [vmem:[#allocation2 + $0xd8] sm:$0xff] %v3301
      // Predicated region
      $region37: #{up_block_2d.2} parent=27 // pred_check
        %p3330 = pneg %p286
      $region38: #{up_block_2d.2} parent=27 // pred_check_branch
        %3332 = sbr.rel (%p3330) target = $region40
      $region39: #{up_block_2d.2} parent=27 // pred_region
        %v3333 = vld [vmem:[#allocation2] sm:$0xff]
        %v3334 = vld [vmem:[#allocation2 + $0x8] sm:$0xff]
        %v3335 = vld [vmem:[#allocation2 + $0x10] sm:$0xff]
        %v3336 = vld [vmem:[#allocation2 + $0x18] sm:$0xff]
        %v3337 = vld [vmem:[#allocation2 + $0x20] sm:$0xff]
        %v3338 = vld [vmem:[#allocation2 + $0x28] sm:$0xff]
        %v3339 = vld [vmem:[#allocation2 + $0x30] sm:$0xff]
        %v3340 = vld [vmem:[#allocation2 + $0x38] sm:$0xff]
        %v3341 = vld [vmem:[#allocation2 + $0x40] sm:$0xff]
        %v3342 = vld [vmem:[#allocation2 + $0x48] sm:$0xff]
        %v3343 = vld [vmem:[#allocation2 + $0x50] sm:$0xff]
        %v3344 = vld [vmem:[#allocation2 + $0x58] sm:$0xff]
        %v3345 = vld [vmem:[#allocation2 + $0x60] sm:$0xff]
        %v3346 = vld [vmem:[#allocation2 + $0x68] sm:$0xff]
        %v3347 = vld [vmem:[#allocation2 + $0x70] sm:$0xff]
        %v3348 = vld [vmem:[#allocation2 + $0x78] sm:$0xff]
        %v3349 = vld [vmem:[#allocation2 + $0x80] sm:$0xff]
        %v3350 = vld [vmem:[#allocation2 + $0x88] sm:$0xff]
        %v3351 = vld [vmem:[#allocation2 + $0x90] sm:$0xff]
        %v3352 = vld [vmem:[#allocation2 + $0x98] sm:$0xff]
        %v3353 = vld [vmem:[#allocation2 + $0xa0] sm:$0xff]
        %v3354 = vld [vmem:[#allocation2 + $0xa8] sm:$0xff]
        %v3355 = vld [vmem:[#allocation2 + $0xb0] sm:$0xff]
        %v3356 = vld [vmem:[#allocation2 + $0xb8] sm:$0xff]
        %v3357 = vld [vmem:[#allocation2 + $0xc0] sm:$0xff]
        %v3358 = vld [vmem:[#allocation2 + $0xc8] sm:$0xff]
        %v3359 = vld [vmem:[#allocation2 + $0xd0] sm:$0xff]
        %v3360 = vld [vmem:[#allocation2 + $0xd8] sm:$0xff]
        %v3361 = vlaneseq
        %v3362 = vshrl.u32 %v3361, 7
        %v3363 = vadd.s32 %v3362, 8
        %v3364 = vadd.s32 %v3362, 16
        %v3365 = vadd.s32 %v3362, 24
        %v3366 = vadd.s32 %v3362, 32
        %v3367 = vadd.s32 %v3362, 40
        %v3368 = vadd.s32 %v3362, 48
        %v3369 = vadd.s32 %v3362, 56
        %v3370 = vadd.s32 %v3362, 64
        %v3371 = vadd.s32 %v3362, 72
        %v3372 = vadd.s32 %v3362, 80
        %v3373 = vadd.s32 %v3362, 88
        %v3374 = vadd.s32 %v3362, 96
        %v3375 = vadd.s32 %v3362, 104
        %v3376 = vadd.s32 %v3362, 112
        %v3377 = vadd.s32 %v3362, 120
        %v3378 = vadd.s32 %v3362, 128
        %v3379 = vadd.s32 %v3362, 136
        %v3380 = vadd.s32 %v3362, 144
        %v3381 = vadd.s32 %v3362, 152
        %v3382 = vadd.s32 %v3362, 160
        %v3383 = vadd.s32 %v3362, 168
        %v3384 = vadd.s32 %v3362, 176
        %v3385 = vadd.s32 %v3362, 184
        %v3386 = vadd.s32 %v3362, 192
        %v3387 = vadd.s32 %v3362, 200
        %v3388 = vadd.s32 %v3362, 208
        %v3389 = vadd.s32 %v3362, 216
        %vm3390 = vcmp.lt.s32.totalorder %v3362, 0
        %v3391 = vsub.s32 0, %v3362
        %v3392 = vsel %vm3390, %v3391, %v3362
        %v3393 = vshrl.u32 %v3392, 4
        %v3394 = vand.u32 %v3392, 15
        %v3395 = vsub.s32 0, %v3394
        %v3396 = vsel %vm3390, %v3395, %v3394
        %vm3397 = vcmp.lt.s32.totalorder %v3363, 0
        %v3398 = vsub.s32 0, %v3363
        %v3399 = vsel %vm3397, %v3398, %v3363
        %v3400 = vshrl.u32 %v3399, 4
        %v3401 = vand.u32 %v3399, 15
        %v3402 = vsub.s32 0, %v3401
        %v3403 = vsel %vm3397, %v3402, %v3401
        %vm3404 = vcmp.lt.s32.totalorder %v3364, 0
        %v3405 = vsub.s32 0, %v3364
        %v3406 = vsel %vm3404, %v3405, %v3364
        %v3407 = vshrl.u32 %v3406, 4
        %v3408 = vand.u32 %v3406, 15
        %v3409 = vsub.s32 0, %v3408
        %v3410 = vsel %vm3404, %v3409, %v3408
        %vm3411 = vcmp.lt.s32.totalorder %v3365, 0
        %v3412 = vsub.s32 0, %v3365
        %v3413 = vsel %vm3411, %v3412, %v3365
        %v3414 = vshrl.u32 %v3413, 4
        %v3415 = vand.u32 %v3413, 15
        %v3416 = vsub.s32 0, %v3415
        %v3417 = vsel %vm3411, %v3416, %v3415
        %vm3418 = vcmp.lt.s32.totalorder %v3366, 0
        %v3419 = vsub.s32 0, %v3366
        %v3420 = vsel %vm3418, %v3419, %v3366
        %v3421 = vshrl.u32 %v3420, 4
        %v3422 = vand.u32 %v3420, 15
        %v3423 = vsub.s32 0, %v3422
        %v3424 = vsel %vm3418, %v3423, %v3422
        %vm3425 = vcmp.lt.s32.totalorder %v3367, 0
        %v3426 = vsub.s32 0, %v3367
        %v3427 = vsel %vm3425, %v3426, %v3367
        %v3428 = vshrl.u32 %v3427, 4
        %v3429 = vand.u32 %v3427, 15
        %v3430 = vsub.s32 0, %v3429
        %v3431 = vsel %vm3425, %v3430, %v3429
        %vm3432 = vcmp.lt.s32.totalorder %v3368, 0
        %v3433 = vsub.s32 0, %v3368
        %v3434 = vsel %vm3432, %v3433, %v3368
        %v3435 = vshrl.u32 %v3434, 4
        %v3436 = vand.u32 %v3434, 15
        %v3437 = vsub.s32 0, %v3436
        %v3438 = vsel %vm3432, %v3437, %v3436
        %vm3439 = vcmp.lt.s32.totalorder %v3369, 0
        %v3440 = vsub.s32 0, %v3369
        %v3441 = vsel %vm3439, %v3440, %v3369
        %v3442 = vshrl.u32 %v3441, 4
        %v3443 = vand.u32 %v3441, 15
        %v3444 = vsub.s32 0, %v3443
        %v3445 = vsel %vm3439, %v3444, %v3443
        %vm3446 = vcmp.lt.s32.totalorder %v3370, 0
        %v3447 = vsub.s32 0, %v3370
        %v3448 = vsel %vm3446, %v3447, %v3370
        %v3449 = vshrl.u32 %v3448, 4
        %v3450 = vand.u32 %v3448, 15
        %v3451 = vsub.s32 0, %v3450
        %v3452 = vsel %vm3446, %v3451, %v3450
        %vm3453 = vcmp.lt.s32.totalorder %v3371, 0
        %v3454 = vsub.s32 0, %v3371
        %v3455 = vsel %vm3453, %v3454, %v3371
        %v3456 = vshrl.u32 %v3455, 4
        %v3457 = vand.u32 %v3455, 15
        %v3458 = vsub.s32 0, %v3457
        %v3459 = vsel %vm3453, %v3458, %v3457
        %vm3460 = vcmp.lt.s32.totalorder %v3372, 0
        %v3461 = vsub.s32 0, %v3372
        %v3462 = vsel %vm3460, %v3461, %v3372
        %v3463 = vshrl.u32 %v3462, 4
        %v3464 = vand.u32 %v3462, 15
        %v3465 = vsub.s32 0, %v3464
        %v3466 = vsel %vm3460, %v3465, %v3464
        %vm3467 = vcmp.lt.s32.totalorder %v3373, 0
        %v3468 = vsub.s32 0, %v3373
        %v3469 = vsel %vm3467, %v3468, %v3373
        %v3470 = vshrl.u32 %v3469, 4
        %v3471 = vand.u32 %v3469, 15
        %v3472 = vsub.s32 0, %v3471
        %v3473 = vsel %vm3467, %v3472, %v3471
        %vm3474 = vcmp.lt.s32.totalorder %v3374, 0
        %v3475 = vsub.s32 0, %v3374
        %v3476 = vsel %vm3474, %v3475, %v3374
        %v3477 = vshrl.u32 %v3476, 4
        %v3478 = vand.u32 %v3476, 15
        %v3479 = vsub.s32 0, %v3478
        %v3480 = vsel %vm3474, %v3479, %v3478
        %vm3481 = vcmp.lt.s32.totalorder %v3375, 0
        %v3482 = vsub.s32 0, %v3375
        %v3483 = vsel %vm3481, %v3482, %v3375
        %v3484 = vshrl.u32 %v3483, 4
        %v3485 = vand.u32 %v3483, 15
        %v3486 = vsub.s32 0, %v3485
        %v3487 = vsel %vm3481, %v3486, %v3485
        %vm3488 = vcmp.lt.s32.totalorder %v3376, 0
        %v3489 = vsub.s32 0, %v3376
        %v3490 = vsel %vm3488, %v3489, %v3376
        %v3491 = vshrl.u32 %v3490, 4
        %v3492 = vand.u32 %v3490, 15
        %v3493 = vsub.s32 0, %v3492
        %v3494 = vsel %vm3488, %v3493, %v3492
        %vm3495 = vcmp.lt.s32.totalorder %v3377, 0
        %v3496 = vsub.s32 0, %v3377
        %v3497 = vsel %vm3495, %v3496, %v3377
        %v3498 = vshrl.u32 %v3497, 4
        %v3499 = vand.u32 %v3497, 15
        %v3500 = vsub.s32 0, %v3499
        %v3501 = vsel %vm3495, %v3500, %v3499
        %vm3502 = vcmp.lt.s32.totalorder %v3378, 0
        %v3503 = vsub.s32 0, %v3378
        %v3504 = vsel %vm3502, %v3503, %v3378
        %v3505 = vshrl.u32 %v3504, 4
        %v3506 = vand.u32 %v3504, 15
        %v3507 = vsub.s32 0, %v3506
        %v3508 = vsel %vm3502, %v3507, %v3506
        %vm3509 = vcmp.lt.s32.totalorder %v3379, 0
        %v3510 = vsub.s32 0, %v3379
        %v3511 = vsel %vm3509, %v3510, %v3379
        %v3512 = vshrl.u32 %v3511, 4
        %v3513 = vand.u32 %v3511, 15
        %v3514 = vsub.s32 0, %v3513
        %v3515 = vsel %vm3509, %v3514, %v3513
        %vm3516 = vcmp.lt.s32.totalorder %v3380, 0
        %v3517 = vsub.s32 0, %v3380
        %v3518 = vsel %vm3516, %v3517, %v3380
        %v3519 = vshrl.u32 %v3518, 4
        %v3520 = vand.u32 %v3518, 15
        %v3521 = vsub.s32 0, %v3520
        %v3522 = vsel %vm3516, %v3521, %v3520
        %vm3523 = vcmp.lt.s32.totalorder %v3381, 0
        %v3524 = vsub.s32 0, %v3381
        %v3525 = vsel %vm3523, %v3524, %v3381
        %v3526 = vshrl.u32 %v3525, 4
        %v3527 = vand.u32 %v3525, 15
        %v3528 = vsub.s32 0, %v3527
        %v3529 = vsel %vm3523, %v3528, %v3527
        %vm3530 = vcmp.lt.s32.totalorder %v3382, 0
        %v3531 = vsub.s32 0, %v3382
        %v3532 = vsel %vm3530, %v3531, %v3382
        %v3533 = vshrl.u32 %v3532, 4
        %v3534 = vand.u32 %v3532, 15
        %v3535 = vsub.s32 0, %v3534
        %v3536 = vsel %vm3530, %v3535, %v3534
        %vm3537 = vcmp.lt.s32.totalorder %v3383, 0
        %v3538 = vsub.s32 0, %v3383
        %v3539 = vsel %vm3537, %v3538, %v3383
        %v3540 = vshrl.u32 %v3539, 4
        %v3541 = vand.u32 %v3539, 15
        %v3542 = vsub.s32 0, %v3541
        %v3543 = vsel %vm3537, %v3542, %v3541
        %vm3544 = vcmp.lt.s32.totalorder %v3384, 0
        %v3545 = vsub.s32 0, %v3384
        %v3546 = vsel %vm3544, %v3545, %v3384
        %v3547 = vshrl.u32 %v3546, 4
        %v3548 = vand.u32 %v3546, 15
        %v3549 = vsub.s32 0, %v3548
        %v3550 = vsel %vm3544, %v3549, %v3548
        %vm3551 = vcmp.lt.s32.totalorder %v3385, 0
        %v3552 = vsub.s32 0, %v3385
        %v3553 = vsel %vm3551, %v3552, %v3385
        %v3554 = vshrl.u32 %v3553, 4
        %v3555 = vand.u32 %v3553, 15
        %v3556 = vsub.s32 0, %v3555
        %v3557 = vsel %vm3551, %v3556, %v3555
        %vm3558 = vcmp.lt.s32.totalorder %v3386, 0
        %v3559 = vsub.s32 0, %v3386
        %v3560 = vsel %vm3558, %v3559, %v3386
        %v3561 = vshrl.u32 %v3560, 4
        %v3562 = vand.u32 %v3560, 15
        %v3563 = vsub.s32 0, %v3562
        %v3564 = vsel %vm3558, %v3563, %v3562
        %vm3565 = vcmp.lt.s32.totalorder %v3387, 0
        %v3566 = vsub.s32 0, %v3387
        %v3567 = vsel %vm3565, %v3566, %v3387
        %v3568 = vshrl.u32 %v3567, 4
        %v3569 = vand.u32 %v3567, 15
        %v3570 = vsub.s32 0, %v3569
        %v3571 = vsel %vm3565, %v3570, %v3569
        %vm3572 = vcmp.lt.s32.totalorder %v3388, 0
        %v3573 = vsub.s32 0, %v3388
        %v3574 = vsel %vm3572, %v3573, %v3388
        %v3575 = vshrl.u32 %v3574, 4
        %v3576 = vand.u32 %v3574, 15
        %v3577 = vsub.s32 0, %v3576
        %v3578 = vsel %vm3572, %v3577, %v3576
        %vm3579 = vcmp.lt.s32.totalorder %v3389, 0
        %v3580 = vsub.s32 0, %v3389
        %v3581 = vsel %vm3579, %v3580, %v3389
        %v3582 = vshrl.u32 %v3581, 4
        %v3583 = vand.u32 %v3581, 15
        %v3584 = vsub.s32 0, %v3583
        %v3585 = vsel %vm3579, %v3584, %v3583
        %vm3586 = vcmp.ne.s32.totalorder %v3396, 0
        %vm3587 = vcmp.ne.s32.totalorder %v3403, 0
        %vm3588 = vcmp.ne.s32.totalorder %v3410, 0
        %vm3589 = vcmp.ne.s32.totalorder %v3417, 0
        %vm3590 = vcmp.ne.s32.totalorder %v3424, 0
        %vm3591 = vcmp.ne.s32.totalorder %v3431, 0
        %vm3592 = vcmp.ne.s32.totalorder %v3438, 0
        %vm3593 = vcmp.ne.s32.totalorder %v3445, 0
        %vm3594 = vcmp.ne.s32.totalorder %v3452, 0
        %vm3595 = vcmp.ne.s32.totalorder %v3459, 0
        %vm3596 = vcmp.ne.s32.totalorder %v3466, 0
        %vm3597 = vcmp.ne.s32.totalorder %v3473, 0
        %vm3598 = vcmp.ne.s32.totalorder %v3480, 0
        %vm3599 = vcmp.ne.s32.totalorder %v3487, 0
        %vm3600 = vcmp.ne.s32.totalorder %v3494, 0
        %vm3601 = vcmp.ne.s32.totalorder %v3501, 0
        %vm3602 = vcmp.ne.s32.totalorder %v3508, 0
        %vm3603 = vcmp.ne.s32.totalorder %v3515, 0
        %vm3604 = vcmp.ne.s32.totalorder %v3522, 0
        %vm3605 = vcmp.ne.s32.totalorder %v3529, 0
        %vm3606 = vcmp.ne.s32.totalorder %v3536, 0
        %vm3607 = vcmp.ne.s32.totalorder %v3543, 0
        %vm3608 = vcmp.ne.s32.totalorder %v3550, 0
        %vm3609 = vcmp.ne.s32.totalorder %v3557, 0
        %vm3610 = vcmp.ne.s32.totalorder %v3564, 0
        %vm3611 = vcmp.ne.s32.totalorder %v3571, 0
        %vm3612 = vcmp.ne.s32.totalorder %v3578, 0
        %vm3613 = vcmp.ne.s32.totalorder %v3585, 0
        %vm3614 = vcmp.lt.s32.totalorder %v3396, 0
        %vm3615 = vcmp.lt.s32.totalorder %v3403, 0
        %vm3616 = vcmp.lt.s32.totalorder %v3410, 0
        %vm3617 = vcmp.lt.s32.totalorder %v3417, 0
        %vm3618 = vcmp.lt.s32.totalorder %v3424, 0
        %vm3619 = vcmp.lt.s32.totalorder %v3431, 0
        %vm3620 = vcmp.lt.s32.totalorder %v3438, 0
        %vm3621 = vcmp.lt.s32.totalorder %v3445, 0
        %vm3622 = vcmp.lt.s32.totalorder %v3452, 0
        %vm3623 = vcmp.lt.s32.totalorder %v3459, 0
        %vm3624 = vcmp.lt.s32.totalorder %v3466, 0
        %vm3625 = vcmp.lt.s32.totalorder %v3473, 0
        %vm3626 = vcmp.lt.s32.totalorder %v3480, 0
        %vm3627 = vcmp.lt.s32.totalorder %v3487, 0
        %vm3628 = vcmp.lt.s32.totalorder %v3494, 0
        %vm3629 = vcmp.lt.s32.totalorder %v3501, 0
        %vm3630 = vcmp.lt.s32.totalorder %v3508, 0
        %vm3631 = vcmp.lt.s32.totalorder %v3515, 0
        %vm3632 = vcmp.lt.s32.totalorder %v3522, 0
        %vm3633 = vcmp.lt.s32.totalorder %v3529, 0
        %vm3634 = vcmp.lt.s32.totalorder %v3536, 0
        %vm3635 = vcmp.lt.s32.totalorder %v3543, 0
        %vm3636 = vcmp.lt.s32.totalorder %v3550, 0
        %vm3637 = vcmp.lt.s32.totalorder %v3557, 0
        %vm3638 = vcmp.lt.s32.totalorder %v3564, 0
        %vm3639 = vcmp.lt.s32.totalorder %v3571, 0
        %vm3640 = vcmp.lt.s32.totalorder %v3578, 0
        %vm3641 = vcmp.lt.s32.totalorder %v3585, 0
        %vm3642 = vmand %vm3614, %vm3586
        %vm3643 = vmand %vm3615, %vm3587
        %vm3644 = vmand %vm3616, %vm3588
        %vm3645 = vmand %vm3617, %vm3589
        %vm3646 = vmand %vm3618, %vm3590
        %vm3647 = vmand %vm3619, %vm3591
        %vm3648 = vmand %vm3620, %vm3592
        %vm3649 = vmand %vm3621, %vm3593
        %vm3650 = vmand %vm3622, %vm3594
        %vm3651 = vmand %vm3623, %vm3595
        %vm3652 = vmand %vm3624, %vm3596
        %vm3653 = vmand %vm3625, %vm3597
        %vm3654 = vmand %vm3626, %vm3598
        %vm3655 = vmand %vm3627, %vm3599
        %vm3656 = vmand %vm3628, %vm3600
        %vm3657 = vmand %vm3629, %vm3601
        %vm3658 = vmand %vm3630, %vm3602
        %vm3659 = vmand %vm3631, %vm3603
        %vm3660 = vmand %vm3632, %vm3604
        %vm3661 = vmand %vm3633, %vm3605
        %vm3662 = vmand %vm3634, %vm3606
        %vm3663 = vmand %vm3635, %vm3607
        %vm3664 = vmand %vm3636, %vm3608
        %vm3665 = vmand %vm3637, %vm3609
        %vm3666 = vmand %vm3638, %vm3610
        %vm3667 = vmand %vm3639, %vm3611
        %vm3668 = vmand %vm3640, %vm3612
        %vm3669 = vmand %vm3641, %vm3613
        %v3670 = vadd.s32 %v3396, 16
        %v3671 = vadd.s32 %v3403, 16
        %v3672 = vadd.s32 %v3410, 16
        %v3673 = vadd.s32 %v3417, 16
        %v3674 = vadd.s32 %v3424, 16
        %v3675 = vadd.s32 %v3431, 16
        %v3676 = vadd.s32 %v3438, 16
        %v3677 = vadd.s32 %v3445, 16
        %v3678 = vadd.s32 %v3452, 16
        %v3679 = vadd.s32 %v3459, 16
        %v3680 = vadd.s32 %v3466, 16
        %v3681 = vadd.s32 %v3473, 16
        %v3682 = vadd.s32 %v3480, 16
        %v3683 = vadd.s32 %v3487, 16
        %v3684 = vadd.s32 %v3494, 16
        %v3685 = vadd.s32 %v3501, 16
        %v3686 = vadd.s32 %v3508, 16
        %v3687 = vadd.s32 %v3515, 16
        %v3688 = vadd.s32 %v3522, 16
        %v3689 = vadd.s32 %v3529, 16
        %v3690 = vadd.s32 %v3536, 16
        %v3691 = vadd.s32 %v3543, 16
        %v3692 = vadd.s32 %v3550, 16
        %v3693 = vadd.s32 %v3557, 16
        %v3694 = vadd.s32 %v3564, 16
        %v3695 = vadd.s32 %v3571, 16
        %v3696 = vadd.s32 %v3578, 16
        %v3697 = vadd.s32 %v3585, 16
        %v3698 = vsel %vm3642, %v3670, %v3396
        %v3699 = vsel %vm3643, %v3671, %v3403
        %v3700 = vsel %vm3644, %v3672, %v3410
        %v3701 = vsel %vm3645, %v3673, %v3417
        %v3702 = vsel %vm3646, %v3674, %v3424
        %v3703 = vsel %vm3647, %v3675, %v3431
        %v3704 = vsel %vm3648, %v3676, %v3438
        %v3705 = vsel %vm3649, %v3677, %v3445
        %v3706 = vsel %vm3650, %v3678, %v3452
        %v3707 = vsel %vm3651, %v3679, %v3459
        %v3708 = vsel %vm3652, %v3680, %v3466
        %v3709 = vsel %vm3653, %v3681, %v3473
        %v3710 = vsel %vm3654, %v3682, %v3480
        %v3711 = vsel %vm3655, %v3683, %v3487
        %v3712 = vsel %vm3656, %v3684, %v3494
        %v3713 = vsel %vm3657, %v3685, %v3501
        %v3714 = vsel %vm3658, %v3686, %v3508
        %v3715 = vsel %vm3659, %v3687, %v3515
        %v3716 = vsel %vm3660, %v3688, %v3522
        %v3717 = vsel %vm3661, %v3689, %v3529
        %v3718 = vsel %vm3662, %v3690, %v3536
        %v3719 = vsel %vm3663, %v3691, %v3543
        %v3720 = vsel %vm3664, %v3692, %v3550
        %v3721 = vsel %vm3665, %v3693, %v3557
        %v3722 = vsel %vm3666, %v3694, %v3564
        %v3723 = vsel %vm3667, %v3695, %v3571
        %v3724 = vsel %vm3668, %v3696, %v3578
        %v3725 = vsel %vm3669, %v3697, %v3585
        %vm3726 = vcmp.lt.s32.totalorder %v3698, 14
        %vm3727 = vcmp.lt.s32.totalorder %v3699, 14
        %vm3728 = vcmp.lt.s32.totalorder %v3700, 14
        %vm3729 = vcmp.lt.s32.totalorder %v3701, 14
        %vm3730 = vcmp.lt.s32.totalorder %v3702, 14
        %vm3731 = vcmp.lt.s32.totalorder %v3703, 14
        %vm3732 = vcmp.lt.s32.totalorder %v3704, 14
        %vm3733 = vcmp.lt.s32.totalorder %v3705, 14
        %vm3734 = vcmp.lt.s32.totalorder %v3706, 14
        %vm3735 = vcmp.lt.s32.totalorder %v3707, 14
        %vm3736 = vcmp.lt.s32.totalorder %v3708, 14
        %vm3737 = vcmp.lt.s32.totalorder %v3709, 14
        %vm3738 = vcmp.lt.s32.totalorder %v3710, 14
        %vm3739 = vcmp.lt.s32.totalorder %v3711, 14
        %vm3740 = vcmp.lt.s32.totalorder %v3712, 14
        %vm3741 = vcmp.lt.s32.totalorder %v3713, 14
        %vm3742 = vcmp.lt.s32.totalorder %v3714, 14
        %vm3743 = vcmp.lt.s32.totalorder %v3715, 14
        %vm3744 = vcmp.lt.s32.totalorder %v3716, 14
        %vm3745 = vcmp.lt.s32.totalorder %v3717, 14
        %vm3746 = vcmp.lt.s32.totalorder %v3718, 14
        %vm3747 = vcmp.lt.s32.totalorder %v3719, 14
        %vm3748 = vcmp.lt.s32.totalorder %v3720, 14
        %vm3749 = vcmp.lt.s32.totalorder %v3721, 14
        %vm3750 = vcmp.lt.s32.totalorder %v3722, 14
        %vm3751 = vcmp.lt.s32.totalorder %v3723, 14
        %vm3752 = vcmp.lt.s32.totalorder %v3724, 14
        %vm3753 = vcmp.lt.s32.totalorder %v3725, 14
        %v3754 = vsel %vm3726, 1, 0
        %v3755 = vsel %vm3727, 1, 0
        %v3756 = vsel %vm3728, 1, 0
        %v3757 = vsel %vm3729, 1, 0
        %v3758 = vsel %vm3730, 1, 0
        %v3759 = vsel %vm3731, 1, 0
        %v3760 = vsel %vm3732, 1, 0
        %v3761 = vsel %vm3733, 1, 0
        %v3762 = vsel %vm3734, 1, 0
        %v3763 = vsel %vm3735, 1, 0
        %v3764 = vsel %vm3736, 1, 0
        %v3765 = vsel %vm3737, 1, 0
        %v3766 = vsel %vm3738, 1, 0
        %v3767 = vsel %vm3739, 1, 0
        %v3768 = vsel %vm3740, 1, 0
        %v3769 = vsel %vm3741, 1, 0
        %v3770 = vsel %vm3742, 1, 0
        %v3771 = vsel %vm3743, 1, 0
        %v3772 = vsel %vm3744, 1, 0
        %v3773 = vsel %vm3745, 1, 0
        %v3774 = vsel %vm3746, 1, 0
        %v3775 = vsel %vm3747, 1, 0
        %v3776 = vsel %vm3748, 1, 0
        %v3777 = vsel %vm3749, 1, 0
        %v3778 = vsel %vm3750, 1, 0
        %v3779 = vsel %vm3751, 1, 0
        %v3780 = vsel %vm3752, 1, 0
        %v3781 = vsel %vm3753, 1, 0
        %vm3782 = vcmp.eq.s32.totalorder %v3754, 1
        %vm3783 = vcmp.eq.s32.totalorder %v3755, 1
        %vm3784 = vcmp.eq.s32.totalorder %v3756, 1
        %vm3785 = vcmp.eq.s32.totalorder %v3757, 1
        %vm3786 = vcmp.eq.s32.totalorder %v3758, 1
        %vm3787 = vcmp.eq.s32.totalorder %v3759, 1
        %vm3788 = vcmp.eq.s32.totalorder %v3760, 1
        %vm3789 = vcmp.eq.s32.totalorder %v3761, 1
        %vm3790 = vcmp.eq.s32.totalorder %v3762, 1
        %vm3791 = vcmp.eq.s32.totalorder %v3763, 1
        %vm3792 = vcmp.eq.s32.totalorder %v3764, 1
        %vm3793 = vcmp.eq.s32.totalorder %v3765, 1
        %vm3794 = vcmp.eq.s32.totalorder %v3766, 1
        %vm3795 = vcmp.eq.s32.totalorder %v3767, 1
        %vm3796 = vcmp.eq.s32.totalorder %v3768, 1
        %vm3797 = vcmp.eq.s32.totalorder %v3769, 1
        %vm3798 = vcmp.eq.s32.totalorder %v3770, 1
        %vm3799 = vcmp.eq.s32.totalorder %v3771, 1
        %vm3800 = vcmp.eq.s32.totalorder %v3772, 1
        %vm3801 = vcmp.eq.s32.totalorder %v3773, 1
        %vm3802 = vcmp.eq.s32.totalorder %v3774, 1
        %vm3803 = vcmp.eq.s32.totalorder %v3775, 1
        %vm3804 = vcmp.eq.s32.totalorder %v3776, 1
        %vm3805 = vcmp.eq.s32.totalorder %v3777, 1
        %vm3806 = vcmp.eq.s32.totalorder %v3778, 1
        %vm3807 = vcmp.eq.s32.totalorder %v3779, 1
        %vm3808 = vcmp.eq.s32.totalorder %v3780, 1
        %vm3809 = vcmp.eq.s32.totalorder %v3781, 1
        %v3810 = vsel %vm3782, %v3333, 0.0
        %v3811 = vsel %vm3783, %v3334, 0.0
        %v3812 = vsel %vm3784, %v3335, 0.0
        %v3813 = vsel %vm3785, %v3336, 0.0
        %v3814 = vsel %vm3786, %v3337, 0.0
        %v3815 = vsel %vm3787, %v3338, 0.0
        %v3816 = vsel %vm3788, %v3339, 0.0
        %v3817 = vsel %vm3789, %v3340, 0.0
        %v3818 = vsel %vm3790, %v3341, 0.0
        %v3819 = vsel %vm3791, %v3342, 0.0
        %v3820 = vsel %vm3792, %v3343, 0.0
        %v3821 = vsel %vm3793, %v3344, 0.0
        %v3822 = vsel %vm3794, %v3345, 0.0
        %v3823 = vsel %vm3795, %v3346, 0.0
        %v3824 = vsel %vm3796, %v3347, 0.0
        %v3825 = vsel %vm3797, %v3348, 0.0
        %v3826 = vsel %vm3798, %v3349, 0.0
        %v3827 = vsel %vm3799, %v3350, 0.0
        %v3828 = vsel %vm3800, %v3351, 0.0
        %v3829 = vsel %vm3801, %v3352, 0.0
        %v3830 = vsel %vm3802, %v3353, 0.0
        %v3831 = vsel %vm3803, %v3354, 0.0
        %v3832 = vsel %vm3804, %v3355, 0.0
        %v3833 = vsel %vm3805, %v3356, 0.0
        %v3834 = vsel %vm3806, %v3357, 0.0
        %v3835 = vsel %vm3807, %v3358, 0.0
        %v3836 = vsel %vm3808, %v3359, 0.0
        %v3837 = vsel %vm3809, %v3360, 0.0
        %v3838 = vld [vmem:[%s282] sm:$0x1]
        %v3839 = vadd.f32 %v3810, %v3811
        %v3840 = vadd.f32 %v3839, %v3812
        %v3841 = vadd.f32 %v3840, %v3813
        %v3842 = vadd.f32 %v3841, %v3814
        %v3843 = vadd.f32 %v3842, %v3815
        %v3844 = vadd.f32 %v3843, %v3816
        %v3845 = vadd.f32 %v3844, %v3817
        %v3846 = vadd.f32 %v3845, %v3818
        %v3847 = vadd.f32 %v3846, %v3819
        %v3848 = vadd.f32 %v3847, %v3820
        %v3849 = vadd.f32 %v3848, %v3821
        %v3850 = vadd.f32 %v3849, %v3822
        %v3851 = vadd.f32 %v3850, %v3823
        %v3852 = vadd.f32 %v3851, %v3824
        %v3853 = vadd.f32 %v3852, %v3825
        %v3854 = vadd.f32 %v3853, %v3826
        %v3855 = vadd.f32 %v3854, %v3827
        %v3856 = vadd.f32 %v3855, %v3828
        %v3857 = vadd.f32 %v3856, %v3829
        %v3858 = vadd.f32 %v3857, %v3830
        %v3859 = vadd.f32 %v3858, %v3831
        %v3860 = vadd.f32 %v3859, %v3832
        %v3861 = vadd.f32 %v3860, %v3833
        %v3862 = vadd.f32 %v3861, %v3834
        %v3863 = vadd.f32 %v3862, %v3835
        %v3864 = vadd.f32 %v3863, %v3836
        %v3865 = vadd.f32 %v3864, %v3837
        %v3866 = vrot.slane %v3865, 4
        %v3867 = vadd.f32 %v3865, %v3866
        %v3868 = vrot.slane %v3867, 2
        %v3869 = vadd.f32 %v3867, %v3868
        %v3870 = vrot.slane %v3869, 1
        %v3871 = vadd.f32 %v3869, %v3870
        %v3872 = vadd.f32 %v3838, %v3871
        %3873 = vst [vmem:[%s282] sm:$0x1] %v3872
        %v3874 = vld [vmem:[%s285] sm:$0x1]
        %v3875 = vmul.f32 %v3810, %v3810
        %v3876 = vmul.f32 %v3811, %v3811
        %v3877 = vmul.f32 %v3812, %v3812
        %v3878 = vmul.f32 %v3813, %v3813
        %v3879 = vmul.f32 %v3814, %v3814
        %v3880 = vmul.f32 %v3815, %v3815
        %v3881 = vmul.f32 %v3816, %v3816
        %v3882 = vmul.f32 %v3817, %v3817
        %v3883 = vmul.f32 %v3818, %v3818
        %v3884 = vmul.f32 %v3819, %v3819
        %v3885 = vmul.f32 %v3820, %v3820
        %v3886 = vmul.f32 %v3821, %v3821
        %v3887 = vmul.f32 %v3822, %v3822
        %v3888 = vmul.f32 %v3823, %v3823
        %v3889 = vmul.f32 %v3824, %v3824
        %v3890 = vmul.f32 %v3825, %v3825
        %v3891 = vmul.f32 %v3826, %v3826
        %v3892 = vmul.f32 %v3827, %v3827
        %v3893 = vmul.f32 %v3828, %v3828
        %v3894 = vmul.f32 %v3829, %v3829
        %v3895 = vmul.f32 %v3830, %v3830
        %v3896 = vmul.f32 %v3831, %v3831
        %v3897 = vmul.f32 %v3832, %v3832
        %v3898 = vmul.f32 %v3833, %v3833
        %v3899 = vmul.f32 %v3834, %v3834
        %v3900 = vmul.f32 %v3835, %v3835
        %v3901 = vmul.f32 %v3836, %v3836
        %v3902 = vmul.f32 %v3837, %v3837
        %v3903 = vadd.f32 %v3875, %v3876
        %v3904 = vadd.f32 %v3903, %v3877
        %v3905 = vadd.f32 %v3904, %v3878
        %v3906 = vadd.f32 %v3905, %v3879
        %v3907 = vadd.f32 %v3906, %v3880
        %v3908 = vadd.f32 %v3907, %v3881
        %v3909 = vadd.f32 %v3908, %v3882
        %v3910 = vadd.f32 %v3909, %v3883
        %v3911 = vadd.f32 %v3910, %v3884
        %v3912 = vadd.f32 %v3911, %v3885
        %v3913 = vadd.f32 %v3912, %v3886
        %v3914 = vadd.f32 %v3913, %v3887
        %v3915 = vadd.f32 %v3914, %v3888
        %v3916 = vadd.f32 %v3915, %v3889
        %v3917 = vadd.f32 %v3916, %v3890
        %v3918 = vadd.f32 %v3917, %v3891
        %v3919 = vadd.f32 %v3918, %v3892
        %v3920 = vadd.f32 %v3919, %v3893
        %v3921 = vadd.f32 %v3920, %v3894
        %v3922 = vadd.f32 %v3921, %v3895
        %v3923 = vadd.f32 %v3922, %v3896
        %v3924 = vadd.f32 %v3923, %v3897
        %v3925 = vadd.f32 %v3924, %v3898
        %v3926 = vadd.f32 %v3925, %v3899
        %v3927 = vadd.f32 %v3926, %v3900
        %v3928 = vadd.f32 %v3927, %v3901
        %v3929 = vadd.f32 %v3928, %v3902
        %v3930 = vrot.slane %v3929, 4
        %v3931 = vadd.f32 %v3929, %v3930
        %v3932 = vrot.slane %v3931, 2
        %v3933 = vadd.f32 %v3931, %v3932
        %v3934 = vrot.slane %v3933, 1
        %v3935 = vadd.f32 %v3933, %v3934
        %v3936 = vadd.f32 %v3874, %v3935
        %3937 = vst [vmem:[%s285] sm:$0x1] %v3936
        %3938 = vst [vmem:[%s279] sm:$0xff] %v3333
        %3939 = vst [vmem:[%s279 + $0x8] sm:$0xff] %v3334
        %3940 = vst [vmem:[%s279 + $0x10] sm:$0xff] %v3335
        %3941 = vst [vmem:[%s279 + $0x18] sm:$0xff] %v3336
        %3942 = vst [vmem:[%s279 + $0x20] sm:$0xff] %v3337
        %3943 = vst [vmem:[%s279 + $0x28] sm:$0xff] %v3338
        %3944 = vst [vmem:[%s279 + $0x30] sm:$0xff] %v3339
        %3945 = vst [vmem:[%s279 + $0x38] sm:$0xff] %v3340
        %3946 = vst [vmem:[%s279 + $0x40] sm:$0xff] %v3341
        %3947 = vst [vmem:[%s279 + $0x48] sm:$0xff] %v3342
        %3948 = vst [vmem:[%s279 + $0x50] sm:$0xff] %v3343
        %3949 = vst [vmem:[%s279 + $0x58] sm:$0xff] %v3344
        %3950 = vst [vmem:[%s279 + $0x60] sm:$0xff] %v3345
        %3951 = vst [vmem:[%s279 + $0x68] sm:$0xff] %v3346
        %3952 = vst [vmem:[%s279 + $0x70] sm:$0xff] %v3347
        %3953 = vst [vmem:[%s279 + $0x78] sm:$0xff] %v3348
        %3954 = vst [vmem:[%s279 + $0x80] sm:$0xff] %v3349
        %3955 = vst [vmem:[%s279 + $0x88] sm:$0xff] %v3350
        %3956 = vst [vmem:[%s279 + $0x90] sm:$0xff] %v3351
        %3957 = vst [vmem:[%s279 + $0x98] sm:$0xff] %v3352
        %3958 = vst [vmem:[%s279 + $0xa0] sm:$0xff] %v3353
        %3959 = vst [vmem:[%s279 + $0xa8] sm:$0xff] %v3354
        %3960 = vst [vmem:[%s279 + $0xb0] sm:$0xff] %v3355
        %3961 = vst [vmem:[%s279 + $0xb8] sm:$0xff] %v3356
        %3962 = vst [vmem:[%s279 + $0xc0] sm:$0xff] %v3357
        %3963 = vst [vmem:[%s279 + $0xc8] sm:$0xff] %v3358
        %3964 = vst [vmem:[%s279 + $0xd0] sm:$0xff] %v3359
        %3965 = vst [vmem:[%s279 + $0xd8] sm:$0xff] %v3360
      $region40: #{up_block_2d.2} parent=27 // pred_fallthru
        _
      %p3966 = scmp.lt.s32.totalorder %s22, 1
      %s3967 = scalar_select %p3966, %s22, 1
      %p3968 = scmp.lt.s32.totalorder %s21, 0
      %s3969 = scalar_select %p3968, %s21, 0
      %s3970 = smul.addr %s3967, 28
      %s3971 = sadd.s32 %s3969, %s3970
      %s3972 = smul.addr %s3971, 8
      %s3973 = scalar_lea.vmem %s2, %s3972
      %p3974 = scmp.lt.s32.totalorder %s21, 0
      %s3975 = scalar_select %p3974, %s21, 0
      %s3976 = scalar_lea.vmem %s3, %s3975
      %p3977 = scmp.lt.s32.totalorder %s21, 0
      %s3978 = scalar_select %p3977, %s21, 0
      %s3979 = scalar_lea.vmem %s4, %s3978
      // Predicated region
      $region41: #{up_block_2d.2} parent=27 // pred_check
        %p3980 = pneg %p111
      $region42: #{up_block_2d.2} parent=27 // pred_check_branch
        %3982 = sbr.rel (%p3980) target = $region44
      $region43: #{up_block_2d.2} parent=27 // pred_region
        _
      $region44: #{up_block_2d.2} parent=27 // pred_fallthru
        _
      // Predicated region
      $region45: #{up_block_2d.2} parent=27 // pred_check
        %p3983 = pneg %p137
      $region46: #{up_block_2d.2} parent=27 // pred_check_branch
        %3985 = sbr.rel (%p3983) target = $region48
      $region47: #{up_block_2d.2} parent=27 // pred_region
        _
      $region48: #{up_block_2d.2} parent=27 // pred_fallthru
        _
      // Predicated region
      $region49: #{up_block_2d.2} parent=27 // pred_check
        %p3986 = pneg %p163
      $region50: #{up_block_2d.2} parent=27 // pred_check_branch
        %3988 = sbr.rel (%p3986) target = $region52
      $region51: #{up_block_2d.2} parent=27 // pred_region
        _
      $region52: #{up_block_2d.2} parent=27 // pred_fallthru
        _
      // Predicated region
      $region53: #{up_block_2d.2} parent=27 // pred_check
        %p3989 = pneg %p137
      $region54: #{up_block_2d.2} parent=27 // pred_check_branch
        %3991 = sbr.rel (%p3989) target = $region56
      $region55: #{up_block_2d.2} parent=27 // pred_region
        %p3992 = scmp.lt.s32.totalorder %s21, 0
        %s3993 = scalar_select %p3992, %s21, 0
        %s3994 = scalar_lea.vmem %s3, %s3993
      $region56: #{up_block_2d.2} parent=27 // pred_fallthru
        _
      // Predicated region
      $region57: #{up_block_2d.2} parent=27 // pred_check
        %p3995 = pneg %p163
      $region58: #{up_block_2d.2} parent=27 // pred_check_branch
        %3997 = sbr.rel (%p3995) target = $region60
      $region59: #{up_block_2d.2} parent=27 // pred_region
        %p3998 = scmp.lt.s32.totalorder %s21, 0
        %s3999 = scalar_select %p3998, %s21, 0
        %s4000 = scalar_lea.vmem %s4, %s3999
      $region60: #{up_block_2d.2} parent=27 // pred_fallthru
        _
    $region28: #{up_block_2d.2} parent=5 // pred_fallthru
      _
    %p4001 = scmp.le.s32.totalorder 2, %s11
    // Predicated region
    $region61: #{up_block_2d.2} parent=5 // pred_check
      %p4002 = pneg %p4001
    $region62: #{up_block_2d.2} parent=5 // pred_check_branch
      %4004 = sbr.rel (%p4002) target = $region64
    $region63: #{up_block_2d.2} parent=5 // pred_region
      %s4005 = ssub.s32 %s11, 2
      // Predicated region
      $region65: #{up_block_2d.2} parent=63 // pred_check
        %p4006 = pneg %p117
      $region66: #{up_block_2d.2} parent=63 // pred_check_branch
        %4008 = sbr.rel (%p4006) target = $region68
      $region67: #{up_block_2d.2} parent=63 // pred_region
        %p4009 = scmp.lt.s32.totalorder %s25, 1
        %s4010 = scalar_select %p4009, %s25, 1
        %p4011 = scmp.lt.s32.totalorder %s24, 0
        %s4012 = scalar_select %p4011, %s24, 0
        %s4013 = smul.addr %s4010, 28
        %s4014 = sadd.s32 %s4012, %s4013
        %s4015 = smul.addr %s4014, 8
        %s4016 = scalar_lea.vmem %s2, %s4015
      $region68: #{up_block_2d.2} parent=63 // pred_fallthru
        _
    $region64: #{up_block_2d.2} parent=5 // pred_fallthru
      _
  $region6: #{up_block_2d.2} parent=0 // loop_footer
    %s15 = sadd.s32 1, %s11
  $region7: #{up_block_2d.2} parent=0 // loop_footer_branch
    %10 = sbr.rel target = $region3
  $region8: #{up_block_2d.2} parent=0 // loop_exit
    _

</llo_original>
